<compile_context>
chip_gen: v5e
topology: v5e:2x2
jax: 0.10.0
libtpu: 0.0.40
codegen_flags: <defaults>
</compile_context>

<pallas_src>
import functools
import math

import jax
import jax.numpy as jnp
from jax.experimental import pallas as pl
from jax.experimental.pallas import tpu as pltpu


# ----------------------------------------------------------------------------
# Fused decoder-layer kernel (single grid step, everything resident in VMEM)
# ----------------------------------------------------------------------------
def _decoder_layer_kernel(
    # activations (batch-major 2D: (N*L, E))
    tgt_ref, selfpos_ref, mem_ref, qpos_ref, pos_ref,
    # self-attention weights
    sa_wq_ref, sa_bq_ref, sa_wk_ref, sa_bk_ref, sa_wv_ref, sa_bv_ref,
    sa_wo_ref, sa_bo_ref,
    # cross-attention weights
    ca_wq_ref, ca_bq_ref, ca_wk_ref, ca_bk_ref, ca_wv_ref, ca_bv_ref,
    ca_wo_ref, ca_bo_ref,
    # layernorms
    ln1_g_ref, ln1_b_ref, ln2_g_ref, ln2_b_ref, ln3_g_ref, ln3_b_ref,
    # FFN
    w1_ref, b1_ref, w2_ref, b2_ref,
    # output
    out_ref,
    # scratch
    att_ref,
    *, n_batch: int, nhead: int, eps: float):

    f32 = jnp.float32
    nlt, e = tgt_ref.shape
    nlm = mem_ref.shape[0]
    lt = nlt // n_batch
    lm = nlm // n_batch
    dh = e // nhead
    scale = 1.0 / math.sqrt(dh)

    def layernorm(x, g, b):
        mu = jnp.mean(x, axis=-1, keepdims=True)
        var = jnp.mean(jnp.square(x - mu), axis=-1, keepdims=True)
        return (x - mu) * jax.lax.rsqrt(var + eps) * g + b

    def mm(x, w, b):
        return jnp.dot(x, w, preferred_element_type=f32) + b

    def attention(q, k, v, lq, lk):
        # q: (N*lq, E), k/v: (N*lk, E)  ->  (N*lq, E) assembled in att_ref.
        # Per-head work uses head-column masks so the data never leaves its
        # natural (rows, E) layout: no lane slicing, no lane concatenation.
        col_q = jax.lax.broadcasted_iota(jnp.int32, (lq, e), 1)
        col_v = jax.lax.broadcasted_iota(jnp.int32, (lk, e), 1)
        q_masks = [(col_q >= h * dh) & (col_q < (h + 1) * dh)
                   for h in range(nhead)]
        v_masks = [(col_v >= h * dh) & (col_v < (h + 1) * dh)
                   for h in range(nhead)]
        for n in range(n_batch):                       # tiny, static unroll
            q_n = q[n * lq:(n + 1) * lq, :]
            k_n = k[n * lk:(n + 1) * lk, :]
            v_n = v[n * lk:(n + 1) * lk, :]
            out_n = jnp.zeros((lq, e), f32)
            for h in range(nhead):
                qm = jnp.where(q_masks[h], q_n, 0.0)
                vm = jnp.where(v_masks[h], v_n, 0.0)
                # qm is zero outside head-h columns, so contracting over the
                # full E axis is exactly Q_h @ K_h^T ("NT" MXU matmul).
                s = jax.lax.dot_general(
                    qm, k_n, (((1,), (1,)), ((), ())),
                    preferred_element_type=f32) * scale
                s = s - jnp.max(s, axis=-1, keepdims=True)
                p = jnp.exp(s)
                p = p * pl.reciprocal(jnp.sum(p, axis=-1, keepdims=True),
                                      approx=True)
                # vm is zero outside head-h columns, so this lands the head
                # output directly in its own column block; the sum over heads
                # reassembles the multi-head output without any concat.
                out_n = out_n + jnp.dot(p, vm, preferred_element_type=f32)
            att_ref[n * lq:(n + 1) * lq, :] = out_n     # aligned store
        return att_ref[...]

    tgt = tgt_ref[...]

    # ---------------- self-attention ----------------
    qk_in = tgt + selfpos_ref[...]
    q_s = mm(qk_in, sa_wq_ref[...], sa_bq_ref[...])
    k_s = mm(qk_in, sa_wk_ref[...], sa_bk_ref[...])
    v_s = mm(tgt, sa_wv_ref[...], sa_bv_ref[...])
    att = attention(q_s, k_s, v_s, lt, lt)
    x = layernorm(tgt + mm(att, sa_wo_ref[...], sa_bo_ref[...]),
                  ln1_g_ref[...], ln1_b_ref[...])

    # ---------------- cross-attention ----------------
    mem = mem_ref[...]
    q_c = mm(x + qpos_ref[...], ca_wq_ref[...], ca_bq_ref[...])
    k_c = mm(mem + pos_ref[...], ca_wk_ref[...], ca_bk_ref[...])
    v_c = mm(mem, ca_wv_ref[...], ca_bv_ref[...])
    att2 = attention(q_c, k_c, v_c, lt, lm)
    x = layernorm(x + mm(att2, ca_wo_ref[...], ca_bo_ref[...]),
                  ln2_g_ref[...], ln2_b_ref[...])

    # ---------------- feed-forward ----------------
    h = jnp.maximum(mm(x, w1_ref[...], b1_ref[...]), 0.0)
    x = layernorm(x + mm(h, w2_ref[...], b2_ref[...]),
                  ln3_g_ref[...], ln3_b_ref[...])

    out_ref[...] = x


def _full_spec(shape):
    nd = len(shape)
    return pl.BlockSpec(shape, lambda i, _nd=nd: (0,) * _nd)


# ----------------------------------------------------------------------------
# Wrapper: single pallas_call for the whole decoder layer (forward_post)
# ----------------------------------------------------------------------------
def decoder_layer_forward(params, tgt, memory, query_pos, pos,
                          coordinate_points_embed, nhead,
                          prediction_token_num, eps=1e-5):
    Lt, N, E = tgt.shape
    P = prediction_token_num

    # positional tensor used for self-attention q/k:
    #   rows [:P]  -> coordinate_points_embed (broadcast over P)
    #   rows [P:]  -> query_pos[P:]
    self_pos = jnp.concatenate(
        [jnp.broadcast_to(coordinate_points_embed, (P, N, E)),
         query_pos[P:]], axis=0)                               # (Lt, N, E)

    def bm(x):  # (L, N, E) -> batch-major (N*L, E)
        return x.transpose(1, 0, 2).reshape(-1, E)

    def b2d(v):  # (X,) -> (1, X)
        return v.reshape(1, -1)

    sa = params["self_attn"]
    ca = params["cross_attn"]
    fp = params["ffn"]

    args = [
        bm(tgt), bm(self_pos), bm(memory), bm(query_pos), bm(pos),
        sa["wq"], b2d(sa["bq"]), sa["wk"], b2d(sa["bk"]),
        sa["wv"], b2d(sa["bv"]), sa["wo"], b2d(sa["bo"]),
        ca["wq"], b2d(ca["bq"]), ca["wk"], b2d(ca["bk"]),
        ca["wv"], b2d(ca["bv"]), ca["wo"], b2d(ca["bo"]),
        b2d(params["norm1"]["g"]), b2d(params["norm1"]["b"]),
        b2d(params["norm2"]["g"]), b2d(params["norm2"]["b"]),
        b2d(params["norm3"]["g"]), b2d(params["norm3"]["b"]),
        fp["w1"], b2d(fp["b1"]), fp["w2"], b2d(fp["b2"]),
    ]

    kern = functools.partial(_decoder_layer_kernel,
                             n_batch=N, nhead=nhead, eps=eps)

    out2d = pl.pallas_call(
        kern,
        grid=(1,),
        in_specs=[_full_spec(a.shape) for a in args],
        out_specs=_full_spec((N * Lt, E)),
        out_shape=jax.ShapeDtypeStruct((N * Lt, E), jnp.float32),
        scratch_shapes=[pltpu.VMEM((N * Lt, E), jnp.float32)],
        compiler_params=pltpu.CompilerParams(
            dimension_semantics=("arbitrary",)),
    )(*args)

    return out2d.reshape(N, Lt, E).transpose(1, 0, 2)          # (Lt, N, E)


# ----------------------------------------------------------------------------
# Pure-JAX reference (same math, exact softmax) for a sanity check
# ----------------------------------------------------------------------------
def decoder_layer_reference(params, tgt, memory, query_pos, pos,
                            coordinate_points_embed, nhead,
                            prediction_token_num, eps=1e-5):
    Lt, N, E = tgt.shape
    P = prediction_token_num
    dh = E // nhead
    scale = 1.0 / math.sqrt(dh)

    def ln(x, p):
        mu = x.mean(-1, keepdims=True)
        var = ((x - mu) ** 2).mean(-1, keepdims=True)
        return (x - mu) / jnp.sqrt(var + eps) * p["g"] + p["b"]

    def mha(q_in, k_in, v_in, p):
        q = q_in @ p["wq"] + p["bq"]
        k = k_in @ p["wk"] + p["bk"]
        v = v_in @ p["wv"] + p["bv"]

        def split(x):  # (L, N, E) -> (N, H, L, dh)
            L = x.shape[0]
            return x.transpose(1, 0, 2).reshape(N, L, nhead, dh).transpose(
                0, 2, 1, 3)

        qh, kh, vh = split(q), split(k), split(v)
        s = jnp.einsum("nhqd,nhkd->nhqk", qh, kh) * scale
        w = jax.nn.softmax(s, axis=-1)
        o = jnp.einsum("nhqk,nhkd->nhqd", w, vh)
        o = o.transpose(0, 2, 1, 3).reshape(N, q_in.shape[0], E).transpose(
            1, 0, 2)
        return o @ p["wo"] + p["bo"]

    self_pos = jnp.concatenate(
        [jnp.broadcast_to(coordinate_points_embed, (P, N, E)),
         query_pos[P:]], axis=0)

    qk_in = tgt + self_pos
    x = ln(tgt + mha(qk_in, qk_in, tgt, params["self_attn"]), params["norm1"])
    x = ln(x + mha(x + query_pos, memory + pos, memory, params["cross_attn"]),
           params["norm2"])
    f = params["ffn"]
    h = jax.nn.relu(x @ f["w1"] + f["b1"])
    x = ln(x + h @ f["w2"] + f["b2"], params["norm3"])
    return x


# ----------------------------------------------------------------------------
# Deterministic parameter construction
# ----------------------------------------------------------------------------
def make_params(key, d_model, nhead, dim_feedforward):
    def nrm(k, shape, scale=0.02):
        return (scale * jax.random.normal(k, shape)).astype(jnp.float32)

    keys = jax.random.split(key, 20)
    ki = iter(keys)

    def attn_params():
        return {
            "wq": nrm(next(ki), (d_model, d_model)),
            "bq": nrm(next(ki), (d_model,)),
            "wk": nrm(next(ki), (d_model, d_model)),
            "bk": nrm(next(ki), (d_model,)),
            "wv": nrm(next(ki), (d_model, d_model)),
            "bv": nrm(next(ki), (d_model,)),
            "wo": nrm(next(ki), (d_model, d_model)),
            "bo": nrm(next(ki), (d_model,)),
        }

    return {
        "self_attn": attn_params(),
        "cross_attn": attn_params(),
        "ffn": {
            "w1": nrm(next(ki), (d_model, dim_feedforward)),
            "b1": nrm(next(ki), (dim_feedforward,)),
            "w2": nrm(next(ki), (dim_feedforward, d_model)),
            "b2": nrm(next(ki), (d_model,)),
        },
        "norm1": {"g": jnp.ones((d_model,), jnp.float32),
                  "b": jnp.zeros((d_model,), jnp.float32)},
        "norm2": {"g": jnp.ones((d_model,), jnp.float32),
                  "b": jnp.zeros((d_model,), jnp.float32)},
        "norm3": {"g": jnp.ones((d_model,), jnp.float32),
                  "b": jnp.zeros((d_model,), jnp.float32)},
    }


# ----------------------------------------------------------------------------
if __name__ == "__main__":
    d_model = 32
    nhead = 4
    dim_feedforward = 64
    prediction_token_num = 3
    L_tgt = 8          # number of queries (>= prediction_token_num)
    L_mem = 16         # memory length
    N = 2              # batch

    root = jax.random.PRNGKey(0)
    kp, k1, k2, k3, k4, k5 = jax.random.split(root, 6)

    params = make_params(kp, d_model, nhead, dim_feedforward)

    tgt = jax.random.normal(k1, (L_tgt, N, d_model), jnp.float32)
    memory = jax.random.normal(k2, (L_mem, N, d_model), jnp.float32)
    query_pos = jax.random.normal(k3, (L_tgt, N, d_model), jnp.float32)
    pos = jax.random.normal(k4, (L_mem, N, d_model), jnp.float32)
    coord_embed = jax.random.normal(k5, (1, N, d_model), jnp.float32)

    fwd = jax.jit(
        functools.partial(
            decoder_layer_forward,
            nhead=nhead,
            prediction_token_num=prediction_token_num,
        )
    )
    out = fwd(params, tgt, memory, query_pos, pos, coord_embed)
    jax.block_until_ready(out)

    assert out.shape == (L_tgt, N, d_model), out.shape
    assert bool(jnp.all(jnp.isfinite(out)))

    ref = decoder_layer_reference(params, tgt, memory, query_pos, pos,
                                  coord_embed, nhead, prediction_token_num)
    err = float(jnp.max(jnp.abs(out - ref)))
    assert err < 2e-2, f"max abs error vs reference: {err}"
    print("KERNEL_OK")
</pallas_src>

<mosaic_0001>
module attributes {stable_mosaic.version = 11 : i64} {
  func.func @_decoder_layer_kernel(%arg0: i32, %arg1: memref<16x32xf32, #tpu.memory_space<vmem>>, %arg2: memref<16x32xf32, #tpu.memory_space<vmem>>, %arg3: memref<32x32xf32, #tpu.memory_space<vmem>>, %arg4: memref<16x32xf32, #tpu.memory_space<vmem>>, %arg5: memref<32x32xf32, #tpu.memory_space<vmem>>, %arg6: memref<32x32xf32, #tpu.memory_space<vmem>>, %arg7: memref<1x32xf32, #tpu.memory_space<vmem>>, %arg8: memref<32x32xf32, #tpu.memory_space<vmem>>, %arg9: memref<1x32xf32, #tpu.memory_space<vmem>>, %arg10: memref<32x32xf32, #tpu.memory_space<vmem>>, %arg11: memref<1x32xf32, #tpu.memory_space<vmem>>, %arg12: memref<32x32xf32, #tpu.memory_space<vmem>>, %arg13: memref<1x32xf32, #tpu.memory_space<vmem>>, %arg14: memref<32x32xf32, #tpu.memory_space<vmem>>, %arg15: memref<1x32xf32, #tpu.memory_space<vmem>>, %arg16: memref<32x32xf32, #tpu.memory_space<vmem>>, %arg17: memref<1x32xf32, #tpu.memory_space<vmem>>, %arg18: memref<32x32xf32, #tpu.memory_space<vmem>>, %arg19: memref<1x32xf32, #tpu.memory_space<vmem>>, %arg20: memref<32x32xf32, #tpu.memory_space<vmem>>, %arg21: memref<1x32xf32, #tpu.memory_space<vmem>>, %arg22: memref<1x32xf32, #tpu.memory_space<vmem>>, %arg23: memref<1x32xf32, #tpu.memory_space<vmem>>, %arg24: memref<1x32xf32, #tpu.memory_space<vmem>>, %arg25: memref<1x32xf32, #tpu.memory_space<vmem>>, %arg26: memref<1x32xf32, #tpu.memory_space<vmem>>, %arg27: memref<1x32xf32, #tpu.memory_space<vmem>>, %arg28: memref<32x64xf32, #tpu.memory_space<vmem>>, %arg29: memref<1x64xf32, #tpu.memory_space<vmem>>, %arg30: memref<64x32xf32, #tpu.memory_space<vmem>>, %arg31: memref<1x32xf32, #tpu.memory_space<vmem>>, %arg32: memref<16x32xf32, #tpu.memory_space<vmem>>, %arg33: memref<16x32xf32, #tpu.memory_space<vmem>>) attributes {dimension_semantics = [#tpu.dimension_semantics<arbitrary>], iteration_bounds = array<i64: 1>, scalar_prefetch = 0 : i64, scratch_operands = 1 : i64, tpu.core_type = #tpu.core_type<tc>, window_params = [{pipeline_mode = #tpu.pipeline_mode<synchronous>, transform_indices = @transform_0, window_bounds = array<i64: 16, 32>}, {pipeline_mode = #tpu.pipeline_mode<synchronous>, transform_indices = @transform_1, window_bounds = array<i64: 16, 32>}, {pipeline_mode = #tpu.pipeline_mode<synchronous>, transform_indices = @transform_2, window_bounds = array<i64: 32, 32>}, {pipeline_mode = #tpu.pipeline_mode<synchronous>, transform_indices = @transform_3, window_bounds = array<i64: 16, 32>}, {pipeline_mode = #tpu.pipeline_mode<synchronous>, transform_indices = @transform_4, window_bounds = array<i64: 32, 32>}, {pipeline_mode = #tpu.pipeline_mode<synchronous>, transform_indices = @transform_5, window_bounds = array<i64: 32, 32>}, {pipeline_mode = #tpu.pipeline_mode<synchronous>, transform_indices = @transform_6, window_bounds = array<i64: 1, 32>}, {pipeline_mode = #tpu.pipeline_mode<synchronous>, transform_indices = @transform_7, window_bounds = array<i64: 32, 32>}, {pipeline_mode = #tpu.pipeline_mode<synchronous>, transform_indices = @transform_8, window_bounds = array<i64: 1, 32>}, {pipeline_mode = #tpu.pipeline_mode<synchronous>, transform_indices = @transform_9, window_bounds = array<i64: 32, 32>}, {pipeline_mode = #tpu.pipeline_mode<synchronous>, transform_indices = @transform_10, window_bounds = array<i64: 1, 32>}, {pipeline_mode = #tpu.pipeline_mode<synchronous>, transform_indices = @transform_11, window_bounds = array<i64: 32, 32>}, {pipeline_mode = #tpu.pipeline_mode<synchronous>, transform_indices = @transform_12, window_bounds = array<i64: 1, 32>}, {pipeline_mode = #tpu.pipeline_mode<synchronous>, transform_indices = @transform_13, window_bounds = array<i64: 32, 32>}, {pipeline_mode = #tpu.pipeline_mode<synchronous>, transform_indices = @transform_14, window_bounds = array<i64: 1, 32>}, {pipeline_mode = #tpu.pipeline_mode<synchronous>, transform_indices = @transform_15, window_bounds = array<i64: 32, 32>}, {pipeline_mode = #tpu.pipeline_mode<synchronous>, transform_indices = @transform_16, window_bounds = array<i64: 1, 32>}, {pipeline_mode = #tpu.pipeline_mode<synchronous>, transform_indices = @transform_17, window_bounds = array<i64: 32, 32>}, {pipeline_mode = #tpu.pipeline_mode<synchronous>, transform_indices = @transform_18, window_bounds = array<i64: 1, 32>}, {pipeline_mode = #tpu.pipeline_mode<synchronous>, transform_indices = @transform_19, window_bounds = array<i64: 32, 32>}, {pipeline_mode = #tpu.pipeline_mode<synchronous>, transform_indices = @transform_20, window_bounds = array<i64: 1, 32>}, {pipeline_mode = #tpu.pipeline_mode<synchronous>, transform_indices = @transform_21, window_bounds = array<i64: 1, 32>}, {pipeline_mode = #tpu.pipeline_mode<synchronous>, transform_indices = @transform_22, window_bounds = array<i64: 1, 32>}, {pipeline_mode = #tpu.pipeline_mode<synchronous>, transform_indices = @transform_23, window_bounds = array<i64: 1, 32>}, {pipeline_mode = #tpu.pipeline_mode<synchronous>, transform_indices = @transform_24, window_bounds = array<i64: 1, 32>}, {pipeline_mode = #tpu.pipeline_mode<synchronous>, transform_indices = @transform_25, window_bounds = array<i64: 1, 32>}, {pipeline_mode = #tpu.pipeline_mode<synchronous>, transform_indices = @transform_26, window_bounds = array<i64: 1, 32>}, {pipeline_mode = #tpu.pipeline_mode<synchronous>, transform_indices = @transform_27, window_bounds = array<i64: 32, 64>}, {pipeline_mode = #tpu.pipeline_mode<synchronous>, transform_indices = @transform_28, window_bounds = array<i64: 1, 64>}, {pipeline_mode = #tpu.pipeline_mode<synchronous>, transform_indices = @transform_29, window_bounds = array<i64: 64, 32>}, {pipeline_mode = #tpu.pipeline_mode<synchronous>, transform_indices = @transform_30, window_bounds = array<i64: 1, 32>}, {pipeline_mode = #tpu.pipeline_mode<synchronous>, transform_indices = @transform_31, window_bounds = array<i64: 16, 32>}]} {
    %c0 = arith.constant 0 : index
    %c0_0 = arith.constant 0 : index
    %0 = vector.load %arg1[%c0, %c0_0] : memref<16x32xf32, #tpu.memory_space<vmem>>, vector<16x32xf32>
    %c0_1 = arith.constant 0 : index
    %c0_2 = arith.constant 0 : index
    %1 = vector.load %arg2[%c0_1, %c0_2] : memref<16x32xf32, #tpu.memory_space<vmem>>, vector<16x32xf32>
    %2 = arith.addf %0, %1 : vector<16x32xf32>
    %c0_3 = arith.constant 0 : index
    %c0_4 = arith.constant 0 : index
    %3 = vector.load %arg6[%c0_3, %c0_4] : memref<32x32xf32, #tpu.memory_space<vmem>>, vector<32x32xf32>
    %c0_5 = arith.constant 0 : index
    %c0_6 = arith.constant 0 : index
    %4 = vector.load %arg7[%c0_5, %c0_6] : memref<1x32xf32, #tpu.memory_space<vmem>>, vector<1x32xf32>
    %cst = arith.constant dense<0.000000e+00> : vector<16x32xf32>
    %5 = tpu.matmul %2, %3, %cst {dimension_numbers = #tpu.dot_dimension_numbers<[1], [0], [0], [1], [0, 0, 1, 1], [], []>} : vector<16x32xf32>, vector<32x32xf32>, vector<16x32xf32> -> vector<16x32xf32>
    %6 = vector.broadcast %4 : vector<1x32xf32> to vector<16x32xf32>
    %7 = arith.addf %5, %6 : vector<16x32xf32>
    %c0_7 = arith.constant 0 : index
    %c0_8 = arith.constant 0 : index
    %8 = vector.load %arg8[%c0_7, %c0_8] : memref<32x32xf32, #tpu.memory_space<vmem>>, vector<32x32xf32>
    %c0_9 = arith.constant 0 : index
    %c0_10 = arith.constant 0 : index
    %9 = vector.load %arg9[%c0_9, %c0_10] : memref<1x32xf32, #tpu.memory_space<vmem>>, vector<1x32xf32>
    %cst_11 = arith.constant dense<0.000000e+00> : vector<16x32xf32>
    %10 = tpu.matmul %2, %8, %cst_11 {dimension_numbers = #tpu.dot_dimension_numbers<[1], [0], [0], [1], [0, 0, 1, 1], [], []>} : vector<16x32xf32>, vector<32x32xf32>, vector<16x32xf32> -> vector<16x32xf32>
    %11 = vector.broadcast %9 : vector<1x32xf32> to vector<16x32xf32>
    %12 = arith.addf %10, %11 : vector<16x32xf32>
    %c0_12 = arith.constant 0 : index
    %c0_13 = arith.constant 0 : index
    %13 = vector.load %arg10[%c0_12, %c0_13] : memref<32x32xf32, #tpu.memory_space<vmem>>, vector<32x32xf32>
    %c0_14 = arith.constant 0 : index
    %c0_15 = arith.constant 0 : index
    %14 = vector.load %arg11[%c0_14, %c0_15] : memref<1x32xf32, #tpu.memory_space<vmem>>, vector<1x32xf32>
    %cst_16 = arith.constant dense<0.000000e+00> : vector<16x32xf32>
    %15 = tpu.matmul %0, %13, %cst_16 {dimension_numbers = #tpu.dot_dimension_numbers<[1], [0], [0], [1], [0, 0, 1, 1], [], []>} : vector<16x32xf32>, vector<32x32xf32>, vector<16x32xf32> -> vector<16x32xf32>
    %16 = vector.broadcast %14 : vector<1x32xf32> to vector<16x32xf32>
    %17 = arith.addf %15, %16 : vector<16x32xf32>
    %18 = tpu.iota {dimensions = array<i32: 1>} : vector<8x32xi32>
    %19 = tpu.iota {dimensions = array<i32: 1>} : vector<8x32xi32>
    %c0_i32 = arith.constant 0 : i32
    %20 = vector.broadcast %c0_i32 : i32 to vector<8x32xi32>
    %21 = arith.cmpi sge, %18, %20 : vector<8x32xi32>
    %c8_i32 = arith.constant 8 : i32
    %22 = vector.broadcast %c8_i32 : i32 to vector<8x32xi32>
    %23 = arith.cmpi slt, %18, %22 : vector<8x32xi32>
    %24 = arith.andi %21, %23 : vector<8x32xi1>
    %c8_i32_17 = arith.constant 8 : i32
    %25 = vector.broadcast %c8_i32_17 : i32 to vector<8x32xi32>
    %26 = arith.cmpi sge, %18, %25 : vector<8x32xi32>
    %c16_i32 = arith.constant 16 : i32
    %27 = vector.broadcast %c16_i32 : i32 to vector<8x32xi32>
    %28 = arith.cmpi slt, %18, %27 : vector<8x32xi32>
    %29 = arith.andi %26, %28 : vector<8x32xi1>
    %c16_i32_18 = arith.constant 16 : i32
    %30 = vector.broadcast %c16_i32_18 : i32 to vector<8x32xi32>
    %31 = arith.cmpi sge, %18, %30 : vector<8x32xi32>
    %c24_i32 = arith.constant 24 : i32
    %32 = vector.broadcast %c24_i32 : i32 to vector<8x32xi32>
    %33 = arith.cmpi slt, %18, %32 : vector<8x32xi32>
    %34 = arith.andi %31, %33 : vector<8x32xi1>
    %c24_i32_19 = arith.constant 24 : i32
    %35 = vector.broadcast %c24_i32_19 : i32 to vector<8x32xi32>
    %36 = arith.cmpi sge, %18, %35 : vector<8x32xi32>
    %c32_i32 = arith.constant 32 : i32
    %37 = vector.broadcast %c32_i32 : i32 to vector<8x32xi32>
    %38 = arith.cmpi slt, %18, %37 : vector<8x32xi32>
    %39 = arith.andi %36, %38 : vector<8x32xi1>
    %c0_i32_20 = arith.constant 0 : i32
    %40 = vector.broadcast %c0_i32_20 : i32 to vector<8x32xi32>
    %41 = arith.cmpi sge, %19, %40 : vector<8x32xi32>
    %c8_i32_21 = arith.constant 8 : i32
    %42 = vector.broadcast %c8_i32_21 : i32 to vector<8x32xi32>
    %43 = arith.cmpi slt, %19, %42 : vector<8x32xi32>
    %44 = arith.andi %41, %43 : vector<8x32xi1>
    %c8_i32_22 = arith.constant 8 : i32
    %45 = vector.broadcast %c8_i32_22 : i32 to vector<8x32xi32>
    %46 = arith.cmpi sge, %19, %45 : vector<8x32xi32>
    %c16_i32_23 = arith.constant 16 : i32
    %47 = vector.broadcast %c16_i32_23 : i32 to vector<8x32xi32>
    %48 = arith.cmpi slt, %19, %47 : vector<8x32xi32>
    %49 = arith.andi %46, %48 : vector<8x32xi1>
    %c16_i32_24 = arith.constant 16 : i32
    %50 = vector.broadcast %c16_i32_24 : i32 to vector<8x32xi32>
    %51 = arith.cmpi sge, %19, %50 : vector<8x32xi32>
    %c24_i32_25 = arith.constant 24 : i32
    %52 = vector.broadcast %c24_i32_25 : i32 to vector<8x32xi32>
    %53 = arith.cmpi slt, %19, %52 : vector<8x32xi32>
    %54 = arith.andi %51, %53 : vector<8x32xi1>
    %c24_i32_26 = arith.constant 24 : i32
    %55 = vector.broadcast %c24_i32_26 : i32 to vector<8x32xi32>
    %56 = arith.cmpi sge, %19, %55 : vector<8x32xi32>
    %c32_i32_27 = arith.constant 32 : i32
    %57 = vector.broadcast %c32_i32_27 : i32 to vector<8x32xi32>
    %58 = arith.cmpi slt, %19, %57 : vector<8x32xi32>
    %59 = arith.andi %56, %58 : vector<8x32xi1>
    %60 = vector.extract_strided_slice %7 {offsets = [0, 0], sizes = [8, 32], strides = [1, 1]} : vector<16x32xf32> to vector<8x32xf32>
    %61 = vector.extract_strided_slice %12 {offsets = [0, 0], sizes = [8, 32], strides = [1, 1]} : vector<16x32xf32> to vector<8x32xf32>
    %62 = vector.extract_strided_slice %17 {offsets = [0, 0], sizes = [8, 32], strides = [1, 1]} : vector<16x32xf32> to vector<8x32xf32>
    %cst_28 = arith.constant 0.000000e+00 : f32
    %63 = vector.broadcast %cst_28 : f32 to vector<8x32xf32>
    %cst_29 = arith.constant 0.000000e+00 : f32
    %64 = vector.broadcast %cst_29 : f32 to vector<8x32xf32>
    %65 = arith.select %24, %60, %64 : vector<8x32xi1>, vector<8x32xf32>
    %cst_30 = arith.constant 0.000000e+00 : f32
    %66 = vector.broadcast %cst_30 : f32 to vector<8x32xf32>
    %67 = arith.select %44, %62, %66 : vector<8x32xi1>, vector<8x32xf32>
    %cst_31 = arith.constant dense<0.000000e+00> : vector<8x8xf32>
    %68 = tpu.matmul %65, %61, %cst_31 {dimension_numbers = #tpu.dot_dimension_numbers<[1], [1], [0], [0], [0, 0, 1, 0], [], []>} : vector<8x32xf32>, vector<8x32xf32>, vector<8x8xf32> -> vector<8x8xf32>
    %cst_32 = arith.constant 0.353553385 : f32
    %69 = vector.broadcast %cst_32 : f32 to vector<8x8xf32>
    %70 = arith.mulf %68, %69 : vector<8x8xf32>
    %cst_33 = arith.constant dense<0xFF800000> : vector<8xf32>
    %71 = vector.multi_reduction <maximumf>, %70, %cst_33 [1] : vector<8x8xf32> to vector<8xf32>
    %72 = vector.shape_cast %71 : vector<8xf32> to vector<8x1xf32>
    %73 = vector.broadcast %72 : vector<8x1xf32> to vector<8x8xf32>
    %74 = arith.subf %70, %73 : vector<8x8xf32>
    %75 = math.exp %74 : vector<8x8xf32>
    %cst_34 = arith.constant dense<0.000000e+00> : vector<8xf32>
    %76 = vector.multi_reduction <add>, %75, %cst_34 [1] : vector<8x8xf32> to vector<8xf32>
    %77 = vector.shape_cast %76 : vector<8xf32> to vector<8x1xf32>
    %78 = tpu.reciprocal %77 {approx = true} : vector<8x1xf32> -> vector<8x1xf32>
    %79 = vector.broadcast %78 : vector<8x1xf32> to vector<8x8xf32>
    %80 = arith.mulf %75, %79 : vector<8x8xf32>
    %cst_35 = arith.constant dense<0.000000e+00> : vector<8x32xf32>
    %81 = tpu.matmul %80, %67, %cst_35 {dimension_numbers = #tpu.dot_dimension_numbers<[1], [0], [0], [1], [0, 0, 1, 1], [], []>} : vector<8x8xf32>, vector<8x32xf32>, vector<8x32xf32> -> vector<8x32xf32>
    %82 = arith.addf %63, %81 : vector<8x32xf32>
    %cst_36 = arith.constant 0.000000e+00 : f32
    %83 = vector.broadcast %cst_36 : f32 to vector<8x32xf32>
    %84 = arith.select %29, %60, %83 : vector<8x32xi1>, vector<8x32xf32>
    %cst_37 = arith.constant 0.000000e+00 : f32
    %85 = vector.broadcast %cst_37 : f32 to vector<8x32xf32>
    %86 = arith.select %49, %62, %85 : vector<8x32xi1>, vector<8x32xf32>
    %cst_38 = arith.constant dense<0.000000e+00> : vector<8x8xf32>
    %87 = tpu.matmul %84, %61, %cst_38 {dimension_numbers = #tpu.dot_dimension_numbers<[1], [1], [0], [0], [0, 0, 1, 0], [], []>} : vector<8x32xf32>, vector<8x32xf32>, vector<8x8xf32> -> vector<8x8xf32>
    %cst_39 = arith.constant 0.353553385 : f32
    %88 = vector.broadcast %cst_39 : f32 to vector<8x8xf32>
    %89 = arith.mulf %87, %88 : vector<8x8xf32>
    %cst_40 = arith.constant dense<0xFF800000> : vector<8xf32>
    %90 = vector.multi_reduction <maximumf>, %89, %cst_40 [1] : vector<8x8xf32> to vector<8xf32>
    %91 = vector.shape_cast %90 : vector<8xf32> to vector<8x1xf32>
    %92 = vector.broadcast %91 : vector<8x1xf32> to vector<8x8xf32>
    %93 = arith.subf %89, %92 : vector<8x8xf32>
    %94 = math.exp %93 : vector<8x8xf32>
    %cst_41 = arith.constant dense<0.000000e+00> : vector<8xf32>
    %95 = vector.multi_reduction <add>, %94, %cst_41 [1] : vector<8x8xf32> to vector<8xf32>
    %96 = vector.shape_cast %95 : vector<8xf32> to vector<8x1xf32>
    %97 = tpu.reciprocal %96 {approx = true} : vector<8x1xf32> -> vector<8x1xf32>
    %98 = vector.broadcast %97 : vector<8x1xf32> to vector<8x8xf32>
    %99 = arith.mulf %94, %98 : vector<8x8xf32>
    %cst_42 = arith.constant dense<0.000000e+00> : vector<8x32xf32>
    %100 = tpu.matmul %99, %86, %cst_42 {dimension_numbers = #tpu.dot_dimension_numbers<[1], [0], [0], [1], [0, 0, 1, 1], [], []>} : vector<8x8xf32>, vector<8x32xf32>, vector<8x32xf32> -> vector<8x32xf32>
    %101 = arith.addf %82, %100 : vector<8x32xf32>
    %cst_43 = arith.constant 0.000000e+00 : f32
    %102 = vector.broadcast %cst_43 : f32 to vector<8x32xf32>
    %103 = arith.select %34, %60, %102 : vector<8x32xi1>, vector<8x32xf32>
    %cst_44 = arith.constant 0.000000e+00 : f32
    %104 = vector.broadcast %cst_44 : f32 to vector<8x32xf32>
    %105 = arith.select %54, %62, %104 : vector<8x32xi1>, vector<8x32xf32>
    %cst_45 = arith.constant dense<0.000000e+00> : vector<8x8xf32>
    %106 = tpu.matmul %103, %61, %cst_45 {dimension_numbers = #tpu.dot_dimension_numbers<[1], [1], [0], [0], [0, 0, 1, 0], [], []>} : vector<8x32xf32>, vector<8x32xf32>, vector<8x8xf32> -> vector<8x8xf32>
    %cst_46 = arith.constant 0.353553385 : f32
    %107 = vector.broadcast %cst_46 : f32 to vector<8x8xf32>
    %108 = arith.mulf %106, %107 : vector<8x8xf32>
    %cst_47 = arith.constant dense<0xFF800000> : vector<8xf32>
    %109 = vector.multi_reduction <maximumf>, %108, %cst_47 [1] : vector<8x8xf32> to vector<8xf32>
    %110 = vector.shape_cast %109 : vector<8xf32> to vector<8x1xf32>
    %111 = vector.broadcast %110 : vector<8x1xf32> to vector<8x8xf32>
    %112 = arith.subf %108, %111 : vector<8x8xf32>
    %113 = math.exp %112 : vector<8x8xf32>
    %cst_48 = arith.constant dense<0.000000e+00> : vector<8xf32>
    %114 = vector.multi_reduction <add>, %113, %cst_48 [1] : vector<8x8xf32> to vector<8xf32>
    %115 = vector.shape_cast %114 : vector<8xf32> to vector<8x1xf32>
    %116 = tpu.reciprocal %115 {approx = true} : vector<8x1xf32> -> vector<8x1xf32>
    %117 = vector.broadcast %116 : vector<8x1xf32> to vector<8x8xf32>
    %118 = arith.mulf %113, %117 : vector<8x8xf32>
    %cst_49 = arith.constant dense<0.000000e+00> : vector<8x32xf32>
    %119 = tpu.matmul %118, %105, %cst_49 {dimension_numbers = #tpu.dot_dimension_numbers<[1], [0], [0], [1], [0, 0, 1, 1], [], []>} : vector<8x8xf32>, vector<8x32xf32>, vector<8x32xf32> -> vector<8x32xf32>
    %120 = arith.addf %101, %119 : vector<8x32xf32>
    %cst_50 = arith.constant 0.000000e+00 : f32
    %121 = vector.broadcast %cst_50 : f32 to vector<8x32xf32>
    %122 = arith.select %39, %60, %121 : vector<8x32xi1>, vector<8x32xf32>
    %cst_51 = arith.constant 0.000000e+00 : f32
    %123 = vector.broadcast %cst_51 : f32 to vector<8x32xf32>
    %124 = arith.select %59, %62, %123 : vector<8x32xi1>, vector<8x32xf32>
    %cst_52 = arith.constant dense<0.000000e+00> : vector<8x8xf32>
    %125 = tpu.matmul %122, %61, %cst_52 {dimension_numbers = #tpu.dot_dimension_numbers<[1], [1], [0], [0], [0, 0, 1, 0], [], []>} : vector<8x32xf32>, vector<8x32xf32>, vector<8x8xf32> -> vector<8x8xf32>
    %cst_53 = arith.constant 0.353553385 : f32
    %126 = vector.broadcast %cst_53 : f32 to vector<8x8xf32>
    %127 = arith.mulf %125, %126 : vector<8x8xf32>
    %cst_54 = arith.constant dense<0xFF800000> : vector<8xf32>
    %128 = vector.multi_reduction <maximumf>, %127, %cst_54 [1] : vector<8x8xf32> to vector<8xf32>
    %129 = vector.shape_cast %128 : vector<8xf32> to vector<8x1xf32>
    %130 = vector.broadcast %129 : vector<8x1xf32> to vector<8x8xf32>
    %131 = arith.subf %127, %130 : vector<8x8xf32>
    %132 = math.exp %131 : vector<8x8xf32>
    %cst_55 = arith.constant dense<0.000000e+00> : vector<8xf32>
    %133 = vector.multi_reduction <add>, %132, %cst_55 [1] : vector<8x8xf32> to vector<8xf32>
    %134 = vector.shape_cast %133 : vector<8xf32> to vector<8x1xf32>
    %135 = tpu.reciprocal %134 {approx = true} : vector<8x1xf32> -> vector<8x1xf32>
    %136 = vector.broadcast %135 : vector<8x1xf32> to vector<8x8xf32>
    %137 = arith.mulf %132, %136 : vector<8x8xf32>
    %cst_56 = arith.constant dense<0.000000e+00> : vector<8x32xf32>
    %138 = tpu.matmul %137, %124, %cst_56 {dimension_numbers = #tpu.dot_dimension_numbers<[1], [0], [0], [1], [0, 0, 1, 1], [], []>} : vector<8x8xf32>, vector<8x32xf32>, vector<8x32xf32> -> vector<8x32xf32>
    %139 = arith.addf %120, %138 : vector<8x32xf32>
    %c0_57 = arith.constant 0 : index
    %c0_58 = arith.constant 0 : index
    %140 = vector.load %arg33[%c0_57, %c0_58] : memref<16x32xf32, #tpu.memory_space<vmem>>, vector<8x32xf32>
    tpu.vector_store %arg33[%c0_57, %c0_58], %139 {strides = array<i32>} : memref<16x32xf32, #tpu.memory_space<vmem>>, vector<8x32xf32>,
    %141 = vector.extract_strided_slice %7 {offsets = [8, 0], sizes = [8, 32], strides = [1, 1]} : vector<16x32xf32> to vector<8x32xf32>
    %142 = vector.extract_strided_slice %12 {offsets = [8, 0], sizes = [8, 32], strides = [1, 1]} : vector<16x32xf32> to vector<8x32xf32>
    %143 = vector.extract_strided_slice %17 {offsets = [8, 0], sizes = [8, 32], strides = [1, 1]} : vector<16x32xf32> to vector<8x32xf32>
    %cst_59 = arith.constant 0.000000e+00 : f32
    %144 = vector.broadcast %cst_59 : f32 to vector<8x32xf32>
    %cst_60 = arith.constant 0.000000e+00 : f32
    %145 = vector.broadcast %cst_60 : f32 to vector<8x32xf32>
    %146 = arith.select %24, %141, %145 : vector<8x32xi1>, vector<8x32xf32>
    %cst_61 = arith.constant 0.000000e+00 : f32
    %147 = vector.broadcast %cst_61 : f32 to vector<8x32xf32>
    %148 = arith.select %44, %143, %147 : vector<8x32xi1>, vector<8x32xf32>
    %cst_62 = arith.constant dense<0.000000e+00> : vector<8x8xf32>
    %149 = tpu.matmul %146, %142, %cst_62 {dimension_numbers = #tpu.dot_dimension_numbers<[1], [1], [0], [0], [0, 0, 1, 0], [], []>} : vector<8x32xf32>, vector<8x32xf32>, vector<8x8xf32> -> vector<8x8xf32>
    %cst_63 = arith.constant 0.353553385 : f32
    %150 = vector.broadcast %cst_63 : f32 to vector<8x8xf32>
    %151 = arith.mulf %149, %150 : vector<8x8xf32>
    %cst_64 = arith.constant dense<0xFF800000> : vector<8xf32>
    %152 = vector.multi_reduction <maximumf>, %151, %cst_64 [1] : vector<8x8xf32> to vector<8xf32>
    %153 = vector.shape_cast %152 : vector<8xf32> to vector<8x1xf32>
    %154 = vector.broadcast %153 : vector<8x1xf32> to vector<8x8xf32>
    %155 = arith.subf %151, %154 : vector<8x8xf32>
    %156 = math.exp %155 : vector<8x8xf32>
    %cst_65 = arith.constant dense<0.000000e+00> : vector<8xf32>
    %157 = vector.multi_reduction <add>, %156, %cst_65 [1] : vector<8x8xf32> to vector<8xf32>
    %158 = vector.shape_cast %157 : vector<8xf32> to vector<8x1xf32>
    %159 = tpu.reciprocal %158 {approx = true} : vector<8x1xf32> -> vector<8x1xf32>
    %160 = vector.broadcast %159 : vector<8x1xf32> to vector<8x8xf32>
    %161 = arith.mulf %156, %160 : vector<8x8xf32>
    %cst_66 = arith.constant dense<0.000000e+00> : vector<8x32xf32>
    %162 = tpu.matmul %161, %148, %cst_66 {dimension_numbers = #tpu.dot_dimension_numbers<[1], [0], [0], [1], [0, 0, 1, 1], [], []>} : vector<8x8xf32>, vector<8x32xf32>, vector<8x32xf32> -> vector<8x32xf32>
    %163 = arith.addf %144, %162 : vector<8x32xf32>
    %cst_67 = arith.constant 0.000000e+00 : f32
    %164 = vector.broadcast %cst_67 : f32 to vector<8x32xf32>
    %165 = arith.select %29, %141, %164 : vector<8x32xi1>, vector<8x32xf32>
    %cst_68 = arith.constant 0.000000e+00 : f32
    %166 = vector.broadcast %cst_68 : f32 to vector<8x32xf32>
    %167 = arith.select %49, %143, %166 : vector<8x32xi1>, vector<8x32xf32>
    %cst_69 = arith.constant dense<0.000000e+00> : vector<8x8xf32>
    %168 = tpu.matmul %165, %142, %cst_69 {dimension_numbers = #tpu.dot_dimension_numbers<[1], [1], [0], [0], [0, 0, 1, 0], [], []>} : vector<8x32xf32>, vector<8x32xf32>, vector<8x8xf32> -> vector<8x8xf32>
    %cst_70 = arith.constant 0.353553385 : f32
    %169 = vector.broadcast %cst_70 : f32 to vector<8x8xf32>
    %170 = arith.mulf %168, %169 : vector<8x8xf32>
    %cst_71 = arith.constant dense<0xFF800000> : vector<8xf32>
    %171 = vector.multi_reduction <maximumf>, %170, %cst_71 [1] : vector<8x8xf32> to vector<8xf32>
    %172 = vector.shape_cast %171 : vector<8xf32> to vector<8x1xf32>
    %173 = vector.broadcast %172 : vector<8x1xf32> to vector<8x8xf32>
    %174 = arith.subf %170, %173 : vector<8x8xf32>
    %175 = math.exp %174 : vector<8x8xf32>
    %cst_72 = arith.constant dense<0.000000e+00> : vector<8xf32>
    %176 = vector.multi_reduction <add>, %175, %cst_72 [1] : vector<8x8xf32> to vector<8xf32>
    %177 = vector.shape_cast %176 : vector<8xf32> to vector<8x1xf32>
    %178 = tpu.reciprocal %177 {approx = true} : vector<8x1xf32> -> vector<8x1xf32>
    %179 = vector.broadcast %178 : vector<8x1xf32> to vector<8x8xf32>
    %180 = arith.mulf %175, %179 : vector<8x8xf32>
    %cst_73 = arith.constant dense<0.000000e+00> : vector<8x32xf32>
    %181 = tpu.matmul %180, %167, %cst_73 {dimension_numbers = #tpu.dot_dimension_numbers<[1], [0], [0], [1], [0, 0, 1, 1], [], []>} : vector<8x8xf32>, vector<8x32xf32>, vector<8x32xf32> -> vector<8x32xf32>
    %182 = arith.addf %163, %181 : vector<8x32xf32>
    %cst_74 = arith.constant 0.000000e+00 : f32
    %183 = vector.broadcast %cst_74 : f32 to vector<8x32xf32>
    %184 = arith.select %34, %141, %183 : vector<8x32xi1>, vector<8x32xf32>
    %cst_75 = arith.constant 0.000000e+00 : f32
    %185 = vector.broadcast %cst_75 : f32 to vector<8x32xf32>
    %186 = arith.select %54, %143, %185 : vector<8x32xi1>, vector<8x32xf32>
    %cst_76 = arith.constant dense<0.000000e+00> : vector<8x8xf32>
    %187 = tpu.matmul %184, %142, %cst_76 {dimension_numbers = #tpu.dot_dimension_numbers<[1], [1], [0], [0], [0, 0, 1, 0], [], []>} : vector<8x32xf32>, vector<8x32xf32>, vector<8x8xf32> -> vector<8x8xf32>
    %cst_77 = arith.constant 0.353553385 : f32
    %188 = vector.broadcast %cst_77 : f32 to vector<8x8xf32>
    %189 = arith.mulf %187, %188 : vector<8x8xf32>
    %cst_78 = arith.constant dense<0xFF800000> : vector<8xf32>
    %190 = vector.multi_reduction <maximumf>, %189, %cst_78 [1] : vector<8x8xf32> to vector<8xf32>
    %191 = vector.shape_cast %190 : vector<8xf32> to vector<8x1xf32>
    %192 = vector.broadcast %191 : vector<8x1xf32> to vector<8x8xf32>
    %193 = arith.subf %189, %192 : vector<8x8xf32>
    %194 = math.exp %193 : vector<8x8xf32>
    %cst_79 = arith.constant dense<0.000000e+00> : vector<8xf32>
    %195 = vector.multi_reduction <add>, %194, %cst_79 [1] : vector<8x8xf32> to vector<8xf32>
    %196 = vector.shape_cast %195 : vector<8xf32> to vector<8x1xf32>
    %197 = tpu.reciprocal %196 {approx = true} : vector<8x1xf32> -> vector<8x1xf32>
    %198 = vector.broadcast %197 : vector<8x1xf32> to vector<8x8xf32>
    %199 = arith.mulf %194, %198 : vector<8x8xf32>
    %cst_80 = arith.constant dense<0.000000e+00> : vector<8x32xf32>
    %200 = tpu.matmul %199, %186, %cst_80 {dimension_numbers = #tpu.dot_dimension_numbers<[1], [0], [0], [1], [0, 0, 1, 1], [], []>} : vector<8x8xf32>, vector<8x32xf32>, vector<8x32xf32> -> vector<8x32xf32>
    %201 = arith.addf %182, %200 : vector<8x32xf32>
    %cst_81 = arith.constant 0.000000e+00 : f32
    %202 = vector.broadcast %cst_81 : f32 to vector<8x32xf32>
    %203 = arith.select %39, %141, %202 : vector<8x32xi1>, vector<8x32xf32>
    %cst_82 = arith.constant 0.000000e+00 : f32
    %204 = vector.broadcast %cst_82 : f32 to vector<8x32xf32>
    %205 = arith.select %59, %143, %204 : vector<8x32xi1>, vector<8x32xf32>
    %cst_83 = arith.constant dense<0.000000e+00> : vector<8x8xf32>
    %206 = tpu.matmul %203, %142, %cst_83 {dimension_numbers = #tpu.dot_dimension_numbers<[1], [1], [0], [0], [0, 0, 1, 0], [], []>} : vector<8x32xf32>, vector<8x32xf32>, vector<8x8xf32> -> vector<8x8xf32>
    %cst_84 = arith.constant 0.353553385 : f32
    %207 = vector.broadcast %cst_84 : f32 to vector<8x8xf32>
    %208 = arith.mulf %206, %207 : vector<8x8xf32>
    %cst_85 = arith.constant dense<0xFF800000> : vector<8xf32>
    %209 = vector.multi_reduction <maximumf>, %208, %cst_85 [1] : vector<8x8xf32> to vector<8xf32>
    %210 = vector.shape_cast %209 : vector<8xf32> to vector<8x1xf32>
    %211 = vector.broadcast %210 : vector<8x1xf32> to vector<8x8xf32>
    %212 = arith.subf %208, %211 : vector<8x8xf32>
    %213 = math.exp %212 : vector<8x8xf32>
    %cst_86 = arith.constant dense<0.000000e+00> : vector<8xf32>
    %214 = vector.multi_reduction <add>, %213, %cst_86 [1] : vector<8x8xf32> to vector<8xf32>
    %215 = vector.shape_cast %214 : vector<8xf32> to vector<8x1xf32>
    %216 = tpu.reciprocal %215 {approx = true} : vector<8x1xf32> -> vector<8x1xf32>
    %217 = vector.broadcast %216 : vector<8x1xf32> to vector<8x8xf32>
    %218 = arith.mulf %213, %217 : vector<8x8xf32>
    %cst_87 = arith.constant dense<0.000000e+00> : vector<8x32xf32>
    %219 = tpu.matmul %218, %205, %cst_87 {dimension_numbers = #tpu.dot_dimension_numbers<[1], [0], [0], [1], [0, 0, 1, 1], [], []>} : vector<8x8xf32>, vector<8x32xf32>, vector<8x32xf32> -> vector<8x32xf32>
    %220 = arith.addf %201, %219 : vector<8x32xf32>
    %c8 = arith.constant 8 : index
    %c0_88 = arith.constant 0 : index
    %221 = vector.load %arg33[%c8, %c0_88] : memref<16x32xf32, #tpu.memory_space<vmem>>, vector<8x32xf32>
    tpu.vector_store %arg33[%c8, %c0_88], %220 {strides = array<i32>} : memref<16x32xf32, #tpu.memory_space<vmem>>, vector<8x32xf32>,
    %c0_89 = arith.constant 0 : index
    %c0_90 = arith.constant 0 : index
    %222 = vector.load %arg33[%c0_89, %c0_90] : memref<16x32xf32, #tpu.memory_space<vmem>>, vector<16x32xf32>
    %c0_91 = arith.constant 0 : index
    %c0_92 = arith.constant 0 : index
    %223 = vector.load %arg12[%c0_91, %c0_92] : memref<32x32xf32, #tpu.memory_space<vmem>>, vector<32x32xf32>
    %c0_93 = arith.constant 0 : index
    %c0_94 = arith.constant 0 : index
    %224 = vector.load %arg13[%c0_93, %c0_94] : memref<1x32xf32, #tpu.memory_space<vmem>>, vector<1x32xf32>
    %cst_95 = arith.constant dense<0.000000e+00> : vector<16x32xf32>
    %225 = tpu.matmul %222, %223, %cst_95 {dimension_numbers = #tpu.dot_dimension_numbers<[1], [0], [0], [1], [0, 0, 1, 1], [], []>} : vector<16x32xf32>, vector<32x32xf32>, vector<16x32xf32> -> vector<16x32xf32>
    %226 = vector.broadcast %224 : vector<1x32xf32> to vector<16x32xf32>
    %227 = arith.addf %225, %226 : vector<16x32xf32>
    %228 = arith.addf %0, %227 : vector<16x32xf32>
    %c0_96 = arith.constant 0 : index
    %c0_97 = arith.constant 0 : index
    %229 = vector.load %arg22[%c0_96, %c0_97] : memref<1x32xf32, #tpu.memory_space<vmem>>, vector<1x32xf32>
    %c0_98 = arith.constant 0 : index
    %c0_99 = arith.constant 0 : index
    %230 = vector.load %arg23[%c0_98, %c0_99] : memref<1x32xf32, #tpu.memory_space<vmem>>, vector<1x32xf32>
    %cst_100 = arith.constant dense<0.000000e+00> : vector<16xf32>
    %231 = vector.multi_reduction <add>, %228, %cst_100 [1] : vector<16x32xf32> to vector<16xf32>
    %232 = vector.shape_cast %231 : vector<16xf32> to vector<16x1xf32>
    %cst_101 = arith.constant 3.200000e+01 : f32
    %233 = vector.broadcast %cst_101 : f32 to vector<16x1xf32>
    %234 = arith.divf %232, %233 : vector<16x1xf32>
    %235 = vector.broadcast %234 : vector<16x1xf32> to vector<16x32xf32>
    %236 = arith.subf %228, %235 : vector<16x32xf32>
    %237 = arith.mulf %236, %236 : vector<16x32xf32>
    %cst_102 = arith.constant dense<0.000000e+00> : vector<16xf32>
    %238 = vector.multi_reduction <add>, %237, %cst_102 [1] : vector<16x32xf32> to vector<16xf32>
    %239 = vector.shape_cast %238 : vector<16xf32> to vector<16x1xf32>
    %cst_103 = arith.constant 3.200000e+01 : f32
    %240 = vector.broadcast %cst_103 : f32 to vector<16x1xf32>
    %241 = arith.divf %239, %240 : vector<16x1xf32>
    %242 = vector.broadcast %234 : vector<16x1xf32> to vector<16x32xf32>
    %243 = arith.subf %228, %242 : vector<16x32xf32>
    %cst_104 = arith.constant 9.99999974E-6 : f32
    %244 = vector.broadcast %cst_104 : f32 to vector<16x1xf32>
    %245 = arith.addf %241, %244 : vector<16x1xf32>
    %246 = math.rsqrt %245 : vector<16x1xf32>
    %247 = vector.broadcast %246 : vector<16x1xf32> to vector<16x32xf32>
    %248 = arith.mulf %243, %247 : vector<16x32xf32>
    %249 = vector.broadcast %229 : vector<1x32xf32> to vector<16x32xf32>
    %250 = arith.mulf %248, %249 : vector<16x32xf32>
    %251 = vector.broadcast %230 : vector<1x32xf32> to vector<16x32xf32>
    %252 = arith.addf %250, %251 : vector<16x32xf32>
    %c0_105 = arith.constant 0 : index
    %c0_106 = arith.constant 0 : index
    %253 = vector.load %arg3[%c0_105, %c0_106] : memref<32x32xf32, #tpu.memory_space<vmem>>, vector<32x32xf32>
    %c0_107 = arith.constant 0 : index
    %c0_108 = arith.constant 0 : index
    %254 = vector.load %arg4[%c0_107, %c0_108] : memref<16x32xf32, #tpu.memory_space<vmem>>, vector<16x32xf32>
    %255 = arith.addf %252, %254 : vector<16x32xf32>
    %c0_109 = arith.constant 0 : index
    %c0_110 = arith.constant 0 : index
    %256 = vector.load %arg14[%c0_109, %c0_110] : memref<32x32xf32, #tpu.memory_space<vmem>>, vector<32x32xf32>
    %c0_111 = arith.constant 0 : index
    %c0_112 = arith.constant 0 : index
    %257 = vector.load %arg15[%c0_111, %c0_112] : memref<1x32xf32, #tpu.memory_space<vmem>>, vector<1x32xf32>
    %cst_113 = arith.constant dense<0.000000e+00> : vector<16x32xf32>
    %258 = tpu.matmul %255, %256, %cst_113 {dimension_numbers = #tpu.dot_dimension_numbers<[1], [0], [0], [1], [0, 0, 1, 1], [], []>} : vector<16x32xf32>, vector<32x32xf32>, vector<16x32xf32> -> vector<16x32xf32>
    %259 = vector.broadcast %257 : vector<1x32xf32> to vector<16x32xf32>
    %260 = arith.addf %258, %259 : vector<16x32xf32>
    %c0_114 = arith.constant 0 : index
    %c0_115 = arith.constant 0 : index
    %261 = vector.load %arg5[%c0_114, %c0_115] : memref<32x32xf32, #tpu.memory_space<vmem>>, vector<32x32xf32>
    %262 = arith.addf %253, %261 : vector<32x32xf32>
    %c0_116 = arith.constant 0 : index
    %c0_117 = arith.constant 0 : index
    %263 = vector.load %arg16[%c0_116, %c0_117] : memref<32x32xf32, #tpu.memory_space<vmem>>, vector<32x32xf32>
    %c0_118 = arith.constant 0 : index
    %c0_119 = arith.constant 0 : index
    %264 = vector.load %arg17[%c0_118, %c0_119] : memref<1x32xf32, #tpu.memory_space<vmem>>, vector<1x32xf32>
    %cst_120 = arith.constant dense<0.000000e+00> : vector<32x32xf32>
    %265 = tpu.matmul %262, %263, %cst_120 {dimension_numbers = #tpu.dot_dimension_numbers<[1], [0], [0], [1], [0, 0, 1, 1], [], []>} : vector<32x32xf32>, vector<32x32xf32>, vector<32x32xf32> -> vector<32x32xf32>
    %266 = vector.broadcast %264 : vector<1x32xf32> to vector<32x32xf32>
    %267 = arith.addf %265, %266 : vector<32x32xf32>
    %c0_121 = arith.constant 0 : index
    %c0_122 = arith.constant 0 : index
    %268 = vector.load %arg18[%c0_121, %c0_122] : memref<32x32xf32, #tpu.memory_space<vmem>>, vector<32x32xf32>
    %c0_123 = arith.constant 0 : index
    %c0_124 = arith.constant 0 : index
    %269 = vector.load %arg19[%c0_123, %c0_124] : memref<1x32xf32, #tpu.memory_space<vmem>>, vector<1x32xf32>
    %cst_125 = arith.constant dense<0.000000e+00> : vector<32x32xf32>
    %270 = tpu.matmul %253, %268, %cst_125 {dimension_numbers = #tpu.dot_dimension_numbers<[1], [0], [0], [1], [0, 0, 1, 1], [], []>} : vector<32x32xf32>, vector<32x32xf32>, vector<32x32xf32> -> vector<32x32xf32>
    %271 = vector.broadcast %269 : vector<1x32xf32> to vector<32x32xf32>
    %272 = arith.addf %270, %271 : vector<32x32xf32>
    %273 = tpu.iota {dimensions = array<i32: 1>} : vector<8x32xi32>
    %274 = tpu.iota {dimensions = array<i32: 1>} : vector<16x32xi32>
    %c0_i32_126 = arith.constant 0 : i32
    %275 = vector.broadcast %c0_i32_126 : i32 to vector<8x32xi32>
    %276 = arith.cmpi sge, %273, %275 : vector<8x32xi32>
    %c8_i32_127 = arith.constant 8 : i32
    %277 = vector.broadcast %c8_i32_127 : i32 to vector<8x32xi32>
    %278 = arith.cmpi slt, %273, %277 : vector<8x32xi32>
    %279 = arith.andi %276, %278 : vector<8x32xi1>
    %c8_i32_128 = arith.constant 8 : i32
    %280 = vector.broadcast %c8_i32_128 : i32 to vector<8x32xi32>
    %281 = arith.cmpi sge, %273, %280 : vector<8x32xi32>
    %c16_i32_129 = arith.constant 16 : i32
    %282 = vector.broadcast %c16_i32_129 : i32 to vector<8x32xi32>
    %283 = arith.cmpi slt, %273, %282 : vector<8x32xi32>
    %284 = arith.andi %281, %283 : vector<8x32xi1>
    %c16_i32_130 = arith.constant 16 : i32
    %285 = vector.broadcast %c16_i32_130 : i32 to vector<8x32xi32>
    %286 = arith.cmpi sge, %273, %285 : vector<8x32xi32>
    %c24_i32_131 = arith.constant 24 : i32
    %287 = vector.broadcast %c24_i32_131 : i32 to vector<8x32xi32>
    %288 = arith.cmpi slt, %273, %287 : vector<8x32xi32>
    %289 = arith.andi %286, %288 : vector<8x32xi1>
    %c24_i32_132 = arith.constant 24 : i32
    %290 = vector.broadcast %c24_i32_132 : i32 to vector<8x32xi32>
    %291 = arith.cmpi sge, %273, %290 : vector<8x32xi32>
    %c32_i32_133 = arith.constant 32 : i32
    %292 = vector.broadcast %c32_i32_133 : i32 to vector<8x32xi32>
    %293 = arith.cmpi slt, %273, %292 : vector<8x32xi32>
    %294 = arith.andi %291, %293 : vector<8x32xi1>
    %c0_i32_134 = arith.constant 0 : i32
    %295 = vector.broadcast %c0_i32_134 : i32 to vector<16x32xi32>
    %296 = arith.cmpi sge, %274, %295 : vector<16x32xi32>
    %c8_i32_135 = arith.constant 8 : i32
    %297 = vector.broadcast %c8_i32_135 : i32 to vector<16x32xi32>
    %298 = arith.cmpi slt, %274, %297 : vector<16x32xi32>
    %299 = arith.andi %296, %298 : vector<16x32xi1>
    %c8_i32_136 = arith.constant 8 : i32
    %300 = vector.broadcast %c8_i32_136 : i32 to vector<16x32xi32>
    %301 = arith.cmpi sge, %274, %300 : vector<16x32xi32>
    %c16_i32_137 = arith.constant 16 : i32
    %302 = vector.broadcast %c16_i32_137 : i32 to vector<16x32xi32>
    %303 = arith.cmpi slt, %274, %302 : vector<16x32xi32>
    %304 = arith.andi %301, %303 : vector<16x32xi1>
    %c16_i32_138 = arith.constant 16 : i32
    %305 = vector.broadcast %c16_i32_138 : i32 to vector<16x32xi32>
    %306 = arith.cmpi sge, %274, %305 : vector<16x32xi32>
    %c24_i32_139 = arith.constant 24 : i32
    %307 = vector.broadcast %c24_i32_139 : i32 to vector<16x32xi32>
    %308 = arith.cmpi slt, %274, %307 : vector<16x32xi32>
    %309 = arith.andi %306, %308 : vector<16x32xi1>
    %c24_i32_140 = arith.constant 24 : i32
    %310 = vector.broadcast %c24_i32_140 : i32 to vector<16x32xi32>
    %311 = arith.cmpi sge, %274, %310 : vector<16x32xi32>
    %c32_i32_141 = arith.constant 32 : i32
    %312 = vector.broadcast %c32_i32_141 : i32 to vector<16x32xi32>
    %313 = arith.cmpi slt, %274, %312 : vector<16x32xi32>
    %314 = arith.andi %311, %313 : vector<16x32xi1>
    %315 = vector.extract_strided_slice %260 {offsets = [0, 0], sizes = [8, 32], strides = [1, 1]} : vector<16x32xf32> to vector<8x32xf32>
    %316 = vector.extract_strided_slice %267 {offsets = [0, 0], sizes = [16, 32], strides = [1, 1]} : vector<32x32xf32> to vector<16x32xf32>
    %317 = vector.extract_strided_slice %272 {offsets = [0, 0], sizes = [16, 32], strides = [1, 1]} : vector<32x32xf32> to vector<16x32xf32>
    %cst_142 = arith.constant 0.000000e+00 : f32
    %318 = vector.broadcast %cst_142 : f32 to vector<8x32xf32>
    %cst_143 = arith.constant 0.000000e+00 : f32
    %319 = vector.broadcast %cst_143 : f32 to vector<8x32xf32>
    %320 = arith.select %279, %315, %319 : vector<8x32xi1>, vector<8x32xf32>
    %cst_144 = arith.constant 0.000000e+00 : f32
    %321 = vector.broadcast %cst_144 : f32 to vector<16x32xf32>
    %322 = arith.select %299, %317, %321 : vector<16x32xi1>, vector<16x32xf32>
    %cst_145 = arith.constant dense<0.000000e+00> : vector<8x16xf32>
    %323 = tpu.matmul %320, %316, %cst_145 {dimension_numbers = #tpu.dot_dimension_numbers<[1], [1], [0], [0], [0, 0, 1, 0], [], []>} : vector<8x32xf32>, vector<16x32xf32>, vector<8x16xf32> -> vector<8x16xf32>
    %cst_146 = arith.constant 0.353553385 : f32
    %324 = vector.broadcast %cst_146 : f32 to vector<8x16xf32>
    %325 = arith.mulf %323, %324 : vector<8x16xf32>
    %cst_147 = arith.constant dense<0xFF800000> : vector<8xf32>
    %326 = vector.multi_reduction <maximumf>, %325, %cst_147 [1] : vector<8x16xf32> to vector<8xf32>
    %327 = vector.shape_cast %326 : vector<8xf32> to vector<8x1xf32>
    %328 = vector.broadcast %327 : vector<8x1xf32> to vector<8x16xf32>
    %329 = arith.subf %325, %328 : vector<8x16xf32>
    %330 = math.exp %329 : vector<8x16xf32>
    %cst_148 = arith.constant dense<0.000000e+00> : vector<8xf32>
    %331 = vector.multi_reduction <add>, %330, %cst_148 [1] : vector<8x16xf32> to vector<8xf32>
    %332 = vector.shape_cast %331 : vector<8xf32> to vector<8x1xf32>
    %333 = tpu.reciprocal %332 {approx = true} : vector<8x1xf32> -> vector<8x1xf32>
    %334 = vector.broadcast %333 : vector<8x1xf32> to vector<8x16xf32>
    %335 = arith.mulf %330, %334 : vector<8x16xf32>
    %cst_149 = arith.constant dense<0.000000e+00> : vector<8x32xf32>
    %336 = tpu.matmul %335, %322, %cst_149 {dimension_numbers = #tpu.dot_dimension_numbers<[1], [0], [0], [1], [0, 0, 1, 1], [], []>} : vector<8x16xf32>, vector<16x32xf32>, vector<8x32xf32> -> vector<8x32xf32>
    %337 = arith.addf %318, %336 : vector<8x32xf32>
    %cst_150 = arith.constant 0.000000e+00 : f32
    %338 = vector.broadcast %cst_150 : f32 to vector<8x32xf32>
    %339 = arith.select %284, %315, %338 : vector<8x32xi1>, vector<8x32xf32>
    %cst_151 = arith.constant 0.000000e+00 : f32
    %340 = vector.broadcast %cst_151 : f32 to vector<16x32xf32>
    %341 = arith.select %304, %317, %340 : vector<16x32xi1>, vector<16x32xf32>
    %cst_152 = arith.constant dense<0.000000e+00> : vector<8x16xf32>
    %342 = tpu.matmul %339, %316, %cst_152 {dimension_numbers = #tpu.dot_dimension_numbers<[1], [1], [0], [0], [0, 0, 1, 0], [], []>} : vector<8x32xf32>, vector<16x32xf32>, vector<8x16xf32> -> vector<8x16xf32>
    %cst_153 = arith.constant 0.353553385 : f32
    %343 = vector.broadcast %cst_153 : f32 to vector<8x16xf32>
    %344 = arith.mulf %342, %343 : vector<8x16xf32>
    %cst_154 = arith.constant dense<0xFF800000> : vector<8xf32>
    %345 = vector.multi_reduction <maximumf>, %344, %cst_154 [1] : vector<8x16xf32> to vector<8xf32>
    %346 = vector.shape_cast %345 : vector<8xf32> to vector<8x1xf32>
    %347 = vector.broadcast %346 : vector<8x1xf32> to vector<8x16xf32>
    %348 = arith.subf %344, %347 : vector<8x16xf32>
    %349 = math.exp %348 : vector<8x16xf32>
    %cst_155 = arith.constant dense<0.000000e+00> : vector<8xf32>
    %350 = vector.multi_reduction <add>, %349, %cst_155 [1] : vector<8x16xf32> to vector<8xf32>
    %351 = vector.shape_cast %350 : vector<8xf32> to vector<8x1xf32>
    %352 = tpu.reciprocal %351 {approx = true} : vector<8x1xf32> -> vector<8x1xf32>
    %353 = vector.broadcast %352 : vector<8x1xf32> to vector<8x16xf32>
    %354 = arith.mulf %349, %353 : vector<8x16xf32>
    %cst_156 = arith.constant dense<0.000000e+00> : vector<8x32xf32>
    %355 = tpu.matmul %354, %341, %cst_156 {dimension_numbers = #tpu.dot_dimension_numbers<[1], [0], [0], [1], [0, 0, 1, 1], [], []>} : vector<8x16xf32>, vector<16x32xf32>, vector<8x32xf32> -> vector<8x32xf32>
    %356 = arith.addf %337, %355 : vector<8x32xf32>
    %cst_157 = arith.constant 0.000000e+00 : f32
    %357 = vector.broadcast %cst_157 : f32 to vector<8x32xf32>
    %358 = arith.select %289, %315, %357 : vector<8x32xi1>, vector<8x32xf32>
    %cst_158 = arith.constant 0.000000e+00 : f32
    %359 = vector.broadcast %cst_158 : f32 to vector<16x32xf32>
    %360 = arith.select %309, %317, %359 : vector<16x32xi1>, vector<16x32xf32>
    %cst_159 = arith.constant dense<0.000000e+00> : vector<8x16xf32>
    %361 = tpu.matmul %358, %316, %cst_159 {dimension_numbers = #tpu.dot_dimension_numbers<[1], [1], [0], [0], [0, 0, 1, 0], [], []>} : vector<8x32xf32>, vector<16x32xf32>, vector<8x16xf32> -> vector<8x16xf32>
    %cst_160 = arith.constant 0.353553385 : f32
    %362 = vector.broadcast %cst_160 : f32 to vector<8x16xf32>
    %363 = arith.mulf %361, %362 : vector<8x16xf32>
    %cst_161 = arith.constant dense<0xFF800000> : vector<8xf32>
    %364 = vector.multi_reduction <maximumf>, %363, %cst_161 [1] : vector<8x16xf32> to vector<8xf32>
    %365 = vector.shape_cast %364 : vector<8xf32> to vector<8x1xf32>
    %366 = vector.broadcast %365 : vector<8x1xf32> to vector<8x16xf32>
    %367 = arith.subf %363, %366 : vector<8x16xf32>
    %368 = math.exp %367 : vector<8x16xf32>
    %cst_162 = arith.constant dense<0.000000e+00> : vector<8xf32>
    %369 = vector.multi_reduction <add>, %368, %cst_162 [1] : vector<8x16xf32> to vector<8xf32>
    %370 = vector.shape_cast %369 : vector<8xf32> to vector<8x1xf32>
    %371 = tpu.reciprocal %370 {approx = true} : vector<8x1xf32> -> vector<8x1xf32>
    %372 = vector.broadcast %371 : vector<8x1xf32> to vector<8x16xf32>
    %373 = arith.mulf %368, %372 : vector<8x16xf32>
    %cst_163 = arith.constant dense<0.000000e+00> : vector<8x32xf32>
    %374 = tpu.matmul %373, %360, %cst_163 {dimension_numbers = #tpu.dot_dimension_numbers<[1], [0], [0], [1], [0, 0, 1, 1], [], []>} : vector<8x16xf32>, vector<16x32xf32>, vector<8x32xf32> -> vector<8x32xf32>
    %375 = arith.addf %356, %374 : vector<8x32xf32>
    %cst_164 = arith.constant 0.000000e+00 : f32
    %376 = vector.broadcast %cst_164 : f32 to vector<8x32xf32>
    %377 = arith.select %294, %315, %376 : vector<8x32xi1>, vector<8x32xf32>
    %cst_165 = arith.constant 0.000000e+00 : f32
    %378 = vector.broadcast %cst_165 : f32 to vector<16x32xf32>
    %379 = arith.select %314, %317, %378 : vector<16x32xi1>, vector<16x32xf32>
    %cst_166 = arith.constant dense<0.000000e+00> : vector<8x16xf32>
    %380 = tpu.matmul %377, %316, %cst_166 {dimension_numbers = #tpu.dot_dimension_numbers<[1], [1], [0], [0], [0, 0, 1, 0], [], []>} : vector<8x32xf32>, vector<16x32xf32>, vector<8x16xf32> -> vector<8x16xf32>
    %cst_167 = arith.constant 0.353553385 : f32
    %381 = vector.broadcast %cst_167 : f32 to vector<8x16xf32>
    %382 = arith.mulf %380, %381 : vector<8x16xf32>
    %cst_168 = arith.constant dense<0xFF800000> : vector<8xf32>
    %383 = vector.multi_reduction <maximumf>, %382, %cst_168 [1] : vector<8x16xf32> to vector<8xf32>
    %384 = vector.shape_cast %383 : vector<8xf32> to vector<8x1xf32>
    %385 = vector.broadcast %384 : vector<8x1xf32> to vector<8x16xf32>
    %386 = arith.subf %382, %385 : vector<8x16xf32>
    %387 = math.exp %386 : vector<8x16xf32>
    %cst_169 = arith.constant dense<0.000000e+00> : vector<8xf32>
    %388 = vector.multi_reduction <add>, %387, %cst_169 [1] : vector<8x16xf32> to vector<8xf32>
    %389 = vector.shape_cast %388 : vector<8xf32> to vector<8x1xf32>
    %390 = tpu.reciprocal %389 {approx = true} : vector<8x1xf32> -> vector<8x1xf32>
    %391 = vector.broadcast %390 : vector<8x1xf32> to vector<8x16xf32>
    %392 = arith.mulf %387, %391 : vector<8x16xf32>
    %cst_170 = arith.constant dense<0.000000e+00> : vector<8x32xf32>
    %393 = tpu.matmul %392, %379, %cst_170 {dimension_numbers = #tpu.dot_dimension_numbers<[1], [0], [0], [1], [0, 0, 1, 1], [], []>} : vector<8x16xf32>, vector<16x32xf32>, vector<8x32xf32> -> vector<8x32xf32>
    %394 = arith.addf %375, %393 : vector<8x32xf32>
    %c0_171 = arith.constant 0 : index
    %c0_172 = arith.constant 0 : index
    %395 = vector.load %arg33[%c0_171, %c0_172] : memref<16x32xf32, #tpu.memory_space<vmem>>, vector<8x32xf32>
    tpu.vector_store %arg33[%c0_171, %c0_172], %394 {strides = array<i32>} : memref<16x32xf32, #tpu.memory_space<vmem>>, vector<8x32xf32>,
    %396 = vector.extract_strided_slice %260 {offsets = [8, 0], sizes = [8, 32], strides = [1, 1]} : vector<16x32xf32> to vector<8x32xf32>
    %397 = vector.extract_strided_slice %267 {offsets = [16, 0], sizes = [16, 32], strides = [1, 1]} : vector<32x32xf32> to vector<16x32xf32>
    %398 = vector.extract_strided_slice %272 {offsets = [16, 0], sizes = [16, 32], strides = [1, 1]} : vector<32x32xf32> to vector<16x32xf32>
    %cst_173 = arith.constant 0.000000e+00 : f32
    %399 = vector.broadcast %cst_173 : f32 to vector<8x32xf32>
    %cst_174 = arith.constant 0.000000e+00 : f32
    %400 = vector.broadcast %cst_174 : f32 to vector<8x32xf32>
    %401 = arith.select %279, %396, %400 : vector<8x32xi1>, vector<8x32xf32>
    %cst_175 = arith.constant 0.000000e+00 : f32
    %402 = vector.broadcast %cst_175 : f32 to vector<16x32xf32>
    %403 = arith.select %299, %398, %402 : vector<16x32xi1>, vector<16x32xf32>
    %cst_176 = arith.constant dense<0.000000e+00> : vector<8x16xf32>
    %404 = tpu.matmul %401, %397, %cst_176 {dimension_numbers = #tpu.dot_dimension_numbers<[1], [1], [0], [0], [0, 0, 1, 0], [], []>} : vector<8x32xf32>, vector<16x32xf32>, vector<8x16xf32> -> vector<8x16xf32>
    %cst_177 = arith.constant 0.353553385 : f32
    %405 = vector.broadcast %cst_177 : f32 to vector<8x16xf32>
    %406 = arith.mulf %404, %405 : vector<8x16xf32>
    %cst_178 = arith.constant dense<0xFF800000> : vector<8xf32>
    %407 = vector.multi_reduction <maximumf>, %406, %cst_178 [1] : vector<8x16xf32> to vector<8xf32>
    %408 = vector.shape_cast %407 : vector<8xf32> to vector<8x1xf32>
    %409 = vector.broadcast %408 : vector<8x1xf32> to vector<8x16xf32>
    %410 = arith.subf %406, %409 : vector<8x16xf32>
    %411 = math.exp %410 : vector<8x16xf32>
    %cst_179 = arith.constant dense<0.000000e+00> : vector<8xf32>
    %412 = vector.multi_reduction <add>, %411, %cst_179 [1] : vector<8x16xf32> to vector<8xf32>
    %413 = vector.shape_cast %412 : vector<8xf32> to vector<8x1xf32>
    %414 = tpu.reciprocal %413 {approx = true} : vector<8x1xf32> -> vector<8x1xf32>
    %415 = vector.broadcast %414 : vector<8x1xf32> to vector<8x16xf32>
    %416 = arith.mulf %411, %415 : vector<8x16xf32>
    %cst_180 = arith.constant dense<0.000000e+00> : vector<8x32xf32>
    %417 = tpu.matmul %416, %403, %cst_180 {dimension_numbers = #tpu.dot_dimension_numbers<[1], [0], [0], [1], [0, 0, 1, 1], [], []>} : vector<8x16xf32>, vector<16x32xf32>, vector<8x32xf32> -> vector<8x32xf32>
    %418 = arith.addf %399, %417 : vector<8x32xf32>
    %cst_181 = arith.constant 0.000000e+00 : f32
    %419 = vector.broadcast %cst_181 : f32 to vector<8x32xf32>
    %420 = arith.select %284, %396, %419 : vector<8x32xi1>, vector<8x32xf32>
    %cst_182 = arith.constant 0.000000e+00 : f32
    %421 = vector.broadcast %cst_182 : f32 to vector<16x32xf32>
    %422 = arith.select %304, %398, %421 : vector<16x32xi1>, vector<16x32xf32>
    %cst_183 = arith.constant dense<0.000000e+00> : vector<8x16xf32>
    %423 = tpu.matmul %420, %397, %cst_183 {dimension_numbers = #tpu.dot_dimension_numbers<[1], [1], [0], [0], [0, 0, 1, 0], [], []>} : vector<8x32xf32>, vector<16x32xf32>, vector<8x16xf32> -> vector<8x16xf32>
    %cst_184 = arith.constant 0.353553385 : f32
    %424 = vector.broadcast %cst_184 : f32 to vector<8x16xf32>
    %425 = arith.mulf %423, %424 : vector<8x16xf32>
    %cst_185 = arith.constant dense<0xFF800000> : vector<8xf32>
    %426 = vector.multi_reduction <maximumf>, %425, %cst_185 [1] : vector<8x16xf32> to vector<8xf32>
    %427 = vector.shape_cast %426 : vector<8xf32> to vector<8x1xf32>
    %428 = vector.broadcast %427 : vector<8x1xf32> to vector<8x16xf32>
    %429 = arith.subf %425, %428 : vector<8x16xf32>
    %430 = math.exp %429 : vector<8x16xf32>
    %cst_186 = arith.constant dense<0.000000e+00> : vector<8xf32>
    %431 = vector.multi_reduction <add>, %430, %cst_186 [1] : vector<8x16xf32> to vector<8xf32>
    %432 = vector.shape_cast %431 : vector<8xf32> to vector<8x1xf32>
    %433 = tpu.reciprocal %432 {approx = true} : vector<8x1xf32> -> vector<8x1xf32>
    %434 = vector.broadcast %433 : vector<8x1xf32> to vector<8x16xf32>
    %435 = arith.mulf %430, %434 : vector<8x16xf32>
    %cst_187 = arith.constant dense<0.000000e+00> : vector<8x32xf32>
    %436 = tpu.matmul %435, %422, %cst_187 {dimension_numbers = #tpu.dot_dimension_numbers<[1], [0], [0], [1], [0, 0, 1, 1], [], []>} : vector<8x16xf32>, vector<16x32xf32>, vector<8x32xf32> -> vector<8x32xf32>
    %437 = arith.addf %418, %436 : vector<8x32xf32>
    %cst_188 = arith.constant 0.000000e+00 : f32
    %438 = vector.broadcast %cst_188 : f32 to vector<8x32xf32>
    %439 = arith.select %289, %396, %438 : vector<8x32xi1>, vector<8x32xf32>
    %cst_189 = arith.constant 0.000000e+00 : f32
    %440 = vector.broadcast %cst_189 : f32 to vector<16x32xf32>
    %441 = arith.select %309, %398, %440 : vector<16x32xi1>, vector<16x32xf32>
    %cst_190 = arith.constant dense<0.000000e+00> : vector<8x16xf32>
    %442 = tpu.matmul %439, %397, %cst_190 {dimension_numbers = #tpu.dot_dimension_numbers<[1], [1], [0], [0], [0, 0, 1, 0], [], []>} : vector<8x32xf32>, vector<16x32xf32>, vector<8x16xf32> -> vector<8x16xf32>
    %cst_191 = arith.constant 0.353553385 : f32
    %443 = vector.broadcast %cst_191 : f32 to vector<8x16xf32>
    %444 = arith.mulf %442, %443 : vector<8x16xf32>
    %cst_192 = arith.constant dense<0xFF800000> : vector<8xf32>
    %445 = vector.multi_reduction <maximumf>, %444, %cst_192 [1] : vector<8x16xf32> to vector<8xf32>
    %446 = vector.shape_cast %445 : vector<8xf32> to vector<8x1xf32>
    %447 = vector.broadcast %446 : vector<8x1xf32> to vector<8x16xf32>
    %448 = arith.subf %444, %447 : vector<8x16xf32>
    %449 = math.exp %448 : vector<8x16xf32>
    %cst_193 = arith.constant dense<0.000000e+00> : vector<8xf32>
    %450 = vector.multi_reduction <add>, %449, %cst_193 [1] : vector<8x16xf32> to vector<8xf32>
    %451 = vector.shape_cast %450 : vector<8xf32> to vector<8x1xf32>
    %452 = tpu.reciprocal %451 {approx = true} : vector<8x1xf32> -> vector<8x1xf32>
    %453 = vector.broadcast %452 : vector<8x1xf32> to vector<8x16xf32>
    %454 = arith.mulf %449, %453 : vector<8x16xf32>
    %cst_194 = arith.constant dense<0.000000e+00> : vector<8x32xf32>
    %455 = tpu.matmul %454, %441, %cst_194 {dimension_numbers = #tpu.dot_dimension_numbers<[1], [0], [0], [1], [0, 0, 1, 1], [], []>} : vector<8x16xf32>, vector<16x32xf32>, vector<8x32xf32> -> vector<8x32xf32>
    %456 = arith.addf %437, %455 : vector<8x32xf32>
    %cst_195 = arith.constant 0.000000e+00 : f32
    %457 = vector.broadcast %cst_195 : f32 to vector<8x32xf32>
    %458 = arith.select %294, %396, %457 : vector<8x32xi1>, vector<8x32xf32>
    %cst_196 = arith.constant 0.000000e+00 : f32
    %459 = vector.broadcast %cst_196 : f32 to vector<16x32xf32>
    %460 = arith.select %314, %398, %459 : vector<16x32xi1>, vector<16x32xf32>
    %cst_197 = arith.constant dense<0.000000e+00> : vector<8x16xf32>
    %461 = tpu.matmul %458, %397, %cst_197 {dimension_numbers = #tpu.dot_dimension_numbers<[1], [1], [0], [0], [0, 0, 1, 0], [], []>} : vector<8x32xf32>, vector<16x32xf32>, vector<8x16xf32> -> vector<8x16xf32>
    %cst_198 = arith.constant 0.353553385 : f32
    %462 = vector.broadcast %cst_198 : f32 to vector<8x16xf32>
    %463 = arith.mulf %461, %462 : vector<8x16xf32>
    %cst_199 = arith.constant dense<0xFF800000> : vector<8xf32>
    %464 = vector.multi_reduction <maximumf>, %463, %cst_199 [1] : vector<8x16xf32> to vector<8xf32>
    %465 = vector.shape_cast %464 : vector<8xf32> to vector<8x1xf32>
    %466 = vector.broadcast %465 : vector<8x1xf32> to vector<8x16xf32>
    %467 = arith.subf %463, %466 : vector<8x16xf32>
    %468 = math.exp %467 : vector<8x16xf32>
    %cst_200 = arith.constant dense<0.000000e+00> : vector<8xf32>
    %469 = vector.multi_reduction <add>, %468, %cst_200 [1] : vector<8x16xf32> to vector<8xf32>
    %470 = vector.shape_cast %469 : vector<8xf32> to vector<8x1xf32>
    %471 = tpu.reciprocal %470 {approx = true} : vector<8x1xf32> -> vector<8x1xf32>
    %472 = vector.broadcast %471 : vector<8x1xf32> to vector<8x16xf32>
    %473 = arith.mulf %468, %472 : vector<8x16xf32>
    %cst_201 = arith.constant dense<0.000000e+00> : vector<8x32xf32>
    %474 = tpu.matmul %473, %460, %cst_201 {dimension_numbers = #tpu.dot_dimension_numbers<[1], [0], [0], [1], [0, 0, 1, 1], [], []>} : vector<8x16xf32>, vector<16x32xf32>, vector<8x32xf32> -> vector<8x32xf32>
    %475 = arith.addf %456, %474 : vector<8x32xf32>
    %c8_202 = arith.constant 8 : index
    %c0_203 = arith.constant 0 : index
    %476 = vector.load %arg33[%c8_202, %c0_203] : memref<16x32xf32, #tpu.memory_space<vmem>>, vector<8x32xf32>
    tpu.vector_store %arg33[%c8_202, %c0_203], %475 {strides = array<i32>} : memref<16x32xf32, #tpu.memory_space<vmem>>, vector<8x32xf32>,
    %c0_204 = arith.constant 0 : index
    %c0_205 = arith.constant 0 : index
    %477 = vector.load %arg33[%c0_204, %c0_205] : memref<16x32xf32, #tpu.memory_space<vmem>>, vector<16x32xf32>
    %c0_206 = arith.constant 0 : index
    %c0_207 = arith.constant 0 : index
    %478 = vector.load %arg20[%c0_206, %c0_207] : memref<32x32xf32, #tpu.memory_space<vmem>>, vector<32x32xf32>
    %c0_208 = arith.constant 0 : index
    %c0_209 = arith.constant 0 : index
    %479 = vector.load %arg21[%c0_208, %c0_209] : memref<1x32xf32, #tpu.memory_space<vmem>>, vector<1x32xf32>
    %cst_210 = arith.constant dense<0.000000e+00> : vector<16x32xf32>
    %480 = tpu.matmul %477, %478, %cst_210 {dimension_numbers = #tpu.dot_dimension_numbers<[1], [0], [0], [1], [0, 0, 1, 1], [], []>} : vector<16x32xf32>, vector<32x32xf32>, vector<16x32xf32> -> vector<16x32xf32>
    %481 = vector.broadcast %479 : vector<1x32xf32> to vector<16x32xf32>
    %482 = arith.addf %480, %481 : vector<16x32xf32>
    %483 = arith.addf %252, %482 : vector<16x32xf32>
    %c0_211 = arith.constant 0 : index
    %c0_212 = arith.constant 0 : index
    %484 = vector.load %arg24[%c0_211, %c0_212] : memref<1x32xf32, #tpu.memory_space<vmem>>, vector<1x32xf32>
    %c0_213 = arith.constant 0 : index
    %c0_214 = arith.constant 0 : index
    %485 = vector.load %arg25[%c0_213, %c0_214] : memref<1x32xf32, #tpu.memory_space<vmem>>, vector<1x32xf32>
    %cst_215 = arith.constant dense<0.000000e+00> : vector<16xf32>
    %486 = vector.multi_reduction <add>, %483, %cst_215 [1] : vector<16x32xf32> to vector<16xf32>
    %487 = vector.shape_cast %486 : vector<16xf32> to vector<16x1xf32>
    %cst_216 = arith.constant 3.200000e+01 : f32
    %488 = vector.broadcast %cst_216 : f32 to vector<16x1xf32>
    %489 = arith.divf %487, %488 : vector<16x1xf32>
    %490 = vector.broadcast %489 : vector<16x1xf32> to vector<16x32xf32>
    %491 = arith.subf %483, %490 : vector<16x32xf32>
    %492 = arith.mulf %491, %491 : vector<16x32xf32>
    %cst_217 = arith.constant dense<0.000000e+00> : vector<16xf32>
    %493 = vector.multi_reduction <add>, %492, %cst_217 [1] : vector<16x32xf32> to vector<16xf32>
    %494 = vector.shape_cast %493 : vector<16xf32> to vector<16x1xf32>
    %cst_218 = arith.constant 3.200000e+01 : f32
    %495 = vector.broadcast %cst_218 : f32 to vector<16x1xf32>
    %496 = arith.divf %494, %495 : vector<16x1xf32>
    %497 = vector.broadcast %489 : vector<16x1xf32> to vector<16x32xf32>
    %498 = arith.subf %483, %497 : vector<16x32xf32>
    %cst_219 = arith.constant 9.99999974E-6 : f32
    %499 = vector.broadcast %cst_219 : f32 to vector<16x1xf32>
    %500 = arith.addf %496, %499 : vector<16x1xf32>
    %501 = math.rsqrt %500 : vector<16x1xf32>
    %502 = vector.broadcast %501 : vector<16x1xf32> to vector<16x32xf32>
    %503 = arith.mulf %498, %502 : vector<16x32xf32>
    %504 = vector.broadcast %484 : vector<1x32xf32> to vector<16x32xf32>
    %505 = arith.mulf %503, %504 : vector<16x32xf32>
    %506 = vector.broadcast %485 : vector<1x32xf32> to vector<16x32xf32>
    %507 = arith.addf %505, %506 : vector<16x32xf32>
    %c0_220 = arith.constant 0 : index
    %c0_221 = arith.constant 0 : index
    %508 = vector.load %arg28[%c0_220, %c0_221] : memref<32x64xf32, #tpu.memory_space<vmem>>, vector<32x64xf32>
    %c0_222 = arith.constant 0 : index
    %c0_223 = arith.constant 0 : index
    %509 = vector.load %arg29[%c0_222, %c0_223] : memref<1x64xf32, #tpu.memory_space<vmem>>, vector<1x64xf32>
    %cst_224 = arith.constant dense<0.000000e+00> : vector<16x64xf32>
    %510 = tpu.matmul %507, %508, %cst_224 {dimension_numbers = #tpu.dot_dimension_numbers<[1], [0], [0], [1], [0, 0, 1, 1], [], []>} : vector<16x32xf32>, vector<32x64xf32>, vector<16x64xf32> -> vector<16x64xf32>
    %511 = vector.broadcast %509 : vector<1x64xf32> to vector<16x64xf32>
    %512 = arith.addf %510, %511 : vector<16x64xf32>
    %cst_225 = arith.constant 0.000000e+00 : f32
    %513 = vector.broadcast %cst_225 : f32 to vector<16x64xf32>
    %514 = arith.maximumf %512, %513 : vector<16x64xf32>
    %c0_226 = arith.constant 0 : index
    %c0_227 = arith.constant 0 : index
    %515 = vector.load %arg30[%c0_226, %c0_227] : memref<64x32xf32, #tpu.memory_space<vmem>>, vector<64x32xf32>
    %c0_228 = arith.constant 0 : index
    %c0_229 = arith.constant 0 : index
    %516 = vector.load %arg31[%c0_228, %c0_229] : memref<1x32xf32, #tpu.memory_space<vmem>>, vector<1x32xf32>
    %cst_230 = arith.constant dense<0.000000e+00> : vector<16x32xf32>
    %517 = tpu.matmul %514, %515, %cst_230 {dimension_numbers = #tpu.dot_dimension_numbers<[1], [0], [0], [1], [0, 0, 1, 1], [], []>} : vector<16x64xf32>, vector<64x32xf32>, vector<16x32xf32> -> vector<16x32xf32>
    %518 = vector.broadcast %516 : vector<1x32xf32> to vector<16x32xf32>
    %519 = arith.addf %517, %518 : vector<16x32xf32>
    %520 = arith.addf %507, %519 : vector<16x32xf32>
    %c0_231 = arith.constant 0 : index
    %c0_232 = arith.constant 0 : index
    %521 = vector.load %arg26[%c0_231, %c0_232] : memref<1x32xf32, #tpu.memory_space<vmem>>, vector<1x32xf32>
    %c0_233 = arith.constant 0 : index
    %c0_234 = arith.constant 0 : index
    %522 = vector.load %arg27[%c0_233, %c0_234] : memref<1x32xf32, #tpu.memory_space<vmem>>, vector<1x32xf32>
    %cst_235 = arith.constant dense<0.000000e+00> : vector<16xf32>
    %523 = vector.multi_reduction <add>, %520, %cst_235 [1] : vector<16x32xf32> to vector<16xf32>
    %524 = vector.shape_cast %523 : vector<16xf32> to vector<16x1xf32>
    %cst_236 = arith.constant 3.200000e+01 : f32
    %525 = vector.broadcast %cst_236 : f32 to vector<16x1xf32>
    %526 = arith.divf %524, %525 : vector<16x1xf32>
    %527 = vector.broadcast %526 : vector<16x1xf32> to vector<16x32xf32>
    %528 = arith.subf %520, %527 : vector<16x32xf32>
    %529 = arith.mulf %528, %528 : vector<16x32xf32>
    %cst_237 = arith.constant dense<0.000000e+00> : vector<16xf32>
    %530 = vector.multi_reduction <add>, %529, %cst_237 [1] : vector<16x32xf32> to vector<16xf32>
    %531 = vector.shape_cast %530 : vector<16xf32> to vector<16x1xf32>
    %cst_238 = arith.constant 3.200000e+01 : f32
    %532 = vector.broadcast %cst_238 : f32 to vector<16x1xf32>
    %533 = arith.divf %531, %532 : vector<16x1xf32>
    %534 = vector.broadcast %526 : vector<16x1xf32> to vector<16x32xf32>
    %535 = arith.subf %520, %534 : vector<16x32xf32>
    %cst_239 = arith.constant 9.99999974E-6 : f32
    %536 = vector.broadcast %cst_239 : f32 to vector<16x1xf32>
    %537 = arith.addf %533, %536 : vector<16x1xf32>
    %538 = math.rsqrt %537 : vector<16x1xf32>
    %539 = vector.broadcast %538 : vector<16x1xf32> to vector<16x32xf32>
    %540 = arith.mulf %535, %539 : vector<16x32xf32>
    %541 = vector.broadcast %521 : vector<1x32xf32> to vector<16x32xf32>
    %542 = arith.mulf %540, %541 : vector<16x32xf32>
    %543 = vector.broadcast %522 : vector<1x32xf32> to vector<16x32xf32>
    %544 = arith.addf %542, %543 : vector<16x32xf32>
    %c0_240 = arith.constant 0 : index
    %c0_241 = arith.constant 0 : index
    %545 = vector.load %arg32[%c0_240, %c0_241] : memref<16x32xf32, #tpu.memory_space<vmem>>, vector<16x32xf32>
    tpu.vector_store %arg32[%c0_240, %c0_241], %544 {strides = array<i32>} : memref<16x32xf32, #tpu.memory_space<vmem>>, vector<16x32xf32>,
    return
  }
  func.func @transform_0(%arg0: i32) -> (i32, i32) {
    %c0_i32 = arith.constant 0 : i32
    %c0_i32_0 = arith.constant 0 : i32
    %c0_i32_1 = arith.constant 0 : i32
    return %c0_i32, %c0_i32_0 : i32, i32
  }
  func.func @transform_1(%arg0: i32) -> (i32, i32) {
    %c0_i32 = arith.constant 0 : i32
    %c0_i32_0 = arith.constant 0 : i32
    %c0_i32_1 = arith.constant 0 : i32
    return %c0_i32, %c0_i32_0 : i32, i32
  }
  func.func @transform_2(%arg0: i32) -> (i32, i32) {
    %c0_i32 = arith.constant 0 : i32
    %c0_i32_0 = arith.constant 0 : i32
    %c0_i32_1 = arith.constant 0 : i32
    return %c0_i32, %c0_i32_0 : i32, i32
  }
  func.func @transform_3(%arg0: i32) -> (i32, i32) {
    %c0_i32 = arith.constant 0 : i32
    %c0_i32_0 = arith.constant 0 : i32
    %c0_i32_1 = arith.constant 0 : i32
    return %c0_i32, %c0_i32_0 : i32, i32
  }
  func.func @transform_4(%arg0: i32) -> (i32, i32) {
    %c0_i32 = arith.constant 0 : i32
    %c0_i32_0 = arith.constant 0 : i32
    %c0_i32_1 = arith.constant 0 : i32
    return %c0_i32, %c0_i32_0 : i32, i32
  }
  func.func @transform_5(%arg0: i32) -> (i32, i32) {
    %c0_i32 = arith.constant 0 : i32
    %c0_i32_0 = arith.constant 0 : i32
    %c0_i32_1 = arith.constant 0 : i32
    return %c0_i32, %c0_i32_0 : i32, i32
  }
  func.func @transform_6(%arg0: i32) -> (i32, i32) {
    %c0_i32 = arith.constant 0 : i32
    %c0_i32_0 = arith.constant 0 : i32
    %c0_i32_1 = arith.constant 0 : i32
    return %c0_i32, %c0_i32_0 : i32, i32
  }
  func.func @transform_7(%arg0: i32) -> (i32, i32) {
    %c0_i32 = arith.constant 0 : i32
    %c0_i32_0 = arith.constant 0 : i32
    %c0_i32_1 = arith.constant 0 : i32
    return %c0_i32, %c0_i32_0 : i32, i32
  }
  func.func @transform_8(%arg0: i32) -> (i32, i32) {
    %c0_i32 = arith.constant 0 : i32
    %c0_i32_0 = arith.constant 0 : i32
    %c0_i32_1 = arith.constant 0 : i32
    return %c0_i32, %c0_i32_0 : i32, i32
  }
  func.func @transform_9(%arg0: i32) -> (i32, i32) {
    %c0_i32 = arith.constant 0 : i32
    %c0_i32_0 = arith.constant 0 : i32
    %c0_i32_1 = arith.constant 0 : i32
    return %c0_i32, %c0_i32_0 : i32, i32
  }
  func.func @transform_10(%arg0: i32) -> (i32, i32) {
    %c0_i32 = arith.constant 0 : i32
    %c0_i32_0 = arith.constant 0 : i32
    %c0_i32_1 = arith.constant 0 : i32
    return %c0_i32, %c0_i32_0 : i32, i32
  }
  func.func @transform_11(%arg0: i32) -> (i32, i32) {
    %c0_i32 = arith.constant 0 : i32
    %c0_i32_0 = arith.constant 0 : i32
    %c0_i32_1 = arith.constant 0 : i32
    return %c0_i32, %c0_i32_0 : i32, i32
  }
  func.func @transform_12(%arg0: i32) -> (i32, i32) {
    %c0_i32 = arith.constant 0 : i32
    %c0_i32_0 = arith.constant 0 : i32
    %c0_i32_1 = arith.constant 0 : i32
    return %c0_i32, %c0_i32_0 : i32, i32
  }
  func.func @transform_13(%arg0: i32) -> (i32, i32) {
    %c0_i32 = arith.constant 0 : i32
    %c0_i32_0 = arith.constant 0 : i32
    %c0_i32_1 = arith.constant 0 : i32
    return %c0_i32, %c0_i32_0 : i32, i32
  }
  func.func @transform_14(%arg0: i32) -> (i32, i32) {
    %c0_i32 = arith.constant 0 : i32
    %c0_i32_0 = arith.constant 0 : i32
    %c0_i32_1 = arith.constant 0 : i32
    return %c0_i32, %c0_i32_0 : i32, i32
  }
  func.func @transform_15(%arg0: i32) -> (i32, i32) {
    %c0_i32 = arith.constant 0 : i32
    %c0_i32_0 = arith.constant 0 : i32
    %c0_i32_1 = arith.constant 0 : i32
    return %c0_i32, %c0_i32_0 : i32, i32
  }
  func.func @transform_16(%arg0: i32) -> (i32, i32) {
    %c0_i32 = arith.constant 0 : i32
    %c0_i32_0 = arith.constant 0 : i32
    %c0_i32_1 = arith.constant 0 : i32
    return %c0_i32, %c0_i32_0 : i32, i32
  }
  func.func @transform_17(%arg0: i32) -> (i32, i32) {
    %c0_i32 = arith.constant 0 : i32
    %c0_i32_0 = arith.constant 0 : i32
    %c0_i32_1 = arith.constant 0 : i32
    return %c0_i32, %c0_i32_0 : i32, i32
  }
  func.func @transform_18(%arg0: i32) -> (i32, i32) {
    %c0_i32 = arith.constant 0 : i32
    %c0_i32_0 = arith.constant 0 : i32
    %c0_i32_1 = arith.constant 0 : i32
    return %c0_i32, %c0_i32_0 : i32, i32
  }
  func.func @transform_19(%arg0: i32) -> (i32, i32) {
    %c0_i32 = arith.constant 0 : i32
    %c0_i32_0 = arith.constant 0 : i32
    %c0_i32_1 = arith.constant 0 : i32
    return %c0_i32, %c0_i32_0 : i32, i32
  }
  func.func @transform_20(%arg0: i32) -> (i32, i32) {
    %c0_i32 = arith.constant 0 : i32
    %c0_i32_0 = arith.constant 0 : i32
    %c0_i32_1 = arith.constant 0 : i32
    return %c0_i32, %c0_i32_0 : i32, i32
  }
  func.func @transform_21(%arg0: i32) -> (i32, i32) {
    %c0_i32 = arith.constant 0 : i32
    %c0_i32_0 = arith.constant 0 : i32
    %c0_i32_1 = arith.constant 0 : i32
    return %c0_i32, %c0_i32_0 : i32, i32
  }
  func.func @transform_22(%arg0: i32) -> (i32, i32) {
    %c0_i32 = arith.constant 0 : i32
    %c0_i32_0 = arith.constant 0 : i32
    %c0_i32_1 = arith.constant 0 : i32
    return %c0_i32, %c0_i32_0 : i32, i32
  }
  func.func @transform_23(%arg0: i32) -> (i32, i32) {
    %c0_i32 = arith.constant 0 : i32
    %c0_i32_0 = arith.constant 0 : i32
    %c0_i32_1 = arith.constant 0 : i32
    return %c0_i32, %c0_i32_0 : i32, i32
  }
  func.func @transform_24(%arg0: i32) -> (i32, i32) {
    %c0_i32 = arith.constant 0 : i32
    %c0_i32_0 = arith.constant 0 : i32
    %c0_i32_1 = arith.constant 0 : i32
    return %c0_i32, %c0_i32_0 : i32, i32
  }
  func.func @transform_25(%arg0: i32) -> (i32, i32) {
    %c0_i32 = arith.constant 0 : i32
    %c0_i32_0 = arith.constant 0 : i32
    %c0_i32_1 = arith.constant 0 : i32
    return %c0_i32, %c0_i32_0 : i32, i32
  }
  func.func @transform_26(%arg0: i32) -> (i32, i32) {
    %c0_i32 = arith.constant 0 : i32
    %c0_i32_0 = arith.constant 0 : i32
    %c0_i32_1 = arith.constant 0 : i32
    return %c0_i32, %c0_i32_0 : i32, i32
  }
  func.func @transform_27(%arg0: i32) -> (i32, i32) {
    %c0_i32 = arith.constant 0 : i32
    %c0_i32_0 = arith.constant 0 : i32
    %c0_i32_1 = arith.constant 0 : i32
    return %c0_i32, %c0_i32_0 : i32, i32
  }
  func.func @transform_28(%arg0: i32) -> (i32, i32) {
    %c0_i32 = arith.constant 0 : i32
    %c0_i32_0 = arith.constant 0 : i32
    %c0_i32_1 = arith.constant 0 : i32
    return %c0_i32, %c0_i32_0 : i32, i32
  }
  func.func @transform_29(%arg0: i32) -> (i32, i32) {
    %c0_i32 = arith.constant 0 : i32
    %c0_i32_0 = arith.constant 0 : i32
    %c0_i32_1 = arith.constant 0 : i32
    return %c0_i32, %c0_i32_0 : i32, i32
  }
  func.func @transform_30(%arg0: i32) -> (i32, i32) {
    %c0_i32 = arith.constant 0 : i32
    %c0_i32_0 = arith.constant 0 : i32
    %c0_i32_1 = arith.constant 0 : i32
    return %c0_i32, %c0_i32_0 : i32, i32
  }
  func.func @transform_31(%arg0: i32) -> (i32, i32) {
    %c0_i32 = arith.constant 0 : i32
    %c0_i32_0 = arith.constant 0 : i32
    %c0_i32_1 = arith.constant 0 : i32
    return %c0_i32, %c0_i32_0 : i32, i32
  }
}

</mosaic_0001>

<llo_original>
// kernel: decoder_layer_forward.1
$region0: #{decoder_layer_forward.1}
  #allocation0 [shape = 'u32[]', space=smem, size = 0x4, offset = 0x4, fixed_abs, tag = 'smem constant byte address 0x4 - core index']
  #allocation1 [shape = 'u32[72,128]{1,0:T(1,128)}', space=vmem, size = 0x9000, scoped, tag = 'internal scratch']
  #allocation2 [shape = 'f32[16,32]{1,0:T(8,128)}', space=vmem, size = 0x2000, scoped, tag = 'scratch operand']
  %s0 = inlined_call_operand.smem [shape: u32[32], index: -1, kind: input, shape index: {}]
  %s1 = sld [smem:[%s0]]
  %s2 = scalar_lea.smem %s0, 1
  %s3 = sld [smem:[%s2]]
  %s4 = scalar_lea.smem %s0, 2
  %s5 = sld [smem:[%s4]]
  %s6 = scalar_lea.smem %s0, 3
  %s7 = sld [smem:[%s6]]
  %s8 = scalar_lea.smem %s0, 4
  %s9 = sld [smem:[%s8]]
  %s10 = scalar_lea.smem %s0, 5
  %s11 = sld [smem:[%s10]]
  %s12 = scalar_lea.smem %s0, 6
  %s13 = sld [smem:[%s12]]
  %s14 = scalar_lea.smem %s0, 7
  %s15 = sld [smem:[%s14]]
  %s16 = scalar_lea.smem %s0, 8
  %s17 = sld [smem:[%s16]]
  %s18 = scalar_lea.smem %s0, 9
  %s19 = sld [smem:[%s18]]
  %s20 = scalar_lea.smem %s0, 10
  %s21 = sld [smem:[%s20]]
  %s22 = scalar_lea.smem %s0, 11
  %s23 = sld [smem:[%s22]]
  %s24 = scalar_lea.smem %s0, 12
  %s25 = sld [smem:[%s24]]
  %s26 = scalar_lea.smem %s0, 13
  %s27 = sld [smem:[%s26]]
  %s28 = scalar_lea.smem %s0, 14
  %s29 = sld [smem:[%s28]]
  %s30 = scalar_lea.smem %s0, 15
  %s31 = sld [smem:[%s30]]
  %s32 = scalar_lea.smem %s0, 16
  %s33 = sld [smem:[%s32]]
  %s34 = scalar_lea.smem %s0, 17
  %s35 = sld [smem:[%s34]]
  %s36 = scalar_lea.smem %s0, 18
  %s37 = sld [smem:[%s36]]
  %s38 = scalar_lea.smem %s0, 19
  %s39 = sld [smem:[%s38]]
  %s40 = scalar_lea.smem %s0, 20
  %s41 = sld [smem:[%s40]]
  %s42 = scalar_lea.smem %s0, 21
  %s43 = sld [smem:[%s42]]
  %s44 = scalar_lea.smem %s0, 22
  %s45 = sld [smem:[%s44]]
  %s46 = scalar_lea.smem %s0, 23
  %s47 = sld [smem:[%s46]]
  %s48 = scalar_lea.smem %s0, 24
  %s49 = sld [smem:[%s48]]
  %s50 = scalar_lea.smem %s0, 25
  %s51 = sld [smem:[%s50]]
  %s52 = scalar_lea.smem %s0, 26
  %s53 = sld [smem:[%s52]]
  %s54 = scalar_lea.smem %s0, 27
  %s55 = sld [smem:[%s54]]
  %s56 = scalar_lea.smem %s0, 28
  %s57 = sld [smem:[%s56]]
  %s58 = scalar_lea.smem %s0, 29
  %s59 = sld [smem:[%s58]]
  %s60 = scalar_lea.smem %s0, 30
  %s61 = sld [smem:[%s60]]
  %s62 = scalar_lea.smem %s0, 31
  %s63 = sld [smem:[%s62]]
  %s64 = sld [smem:[#allocation0]]
  $region138: #{decoder_layer_forward.1} parent=0
    _
  %s66 = ssub.s32 1, %s64
  %s67 = scalar_select 0, %s66, %s64
  $region1: #{decoder_layer_forward.1} parent=0
    #allocation3 [shape = 'u8[16384]{0}', space=vmem, size = 0x4000, scoped, tag = 'input window, operand 27, single buffered']
    #allocation4 [shape = 's32[1]{0}', space=sflag, size = 0x4, scoped, tag = 'scoped memory for decoder_layer_forward.1']
    %68 = vsyncpa [#allocation4], 0
    // Predicated region
    $region2: #{decoder_layer_forward.1} parent=1 // pred_check
      _
    $region3: #{decoder_layer_forward.1} parent=1 // pred_check_branch
      %70 = sbr.rel (0) target = $region5
    $region4: #{decoder_layer_forward.1} parent=1 // pred_region
      _
    $region5: #{decoder_layer_forward.1} parent=1 // pred_fallthru
      _
    // Predicated region
    $region6: #{decoder_layer_forward.1} parent=1 // pred_check
      _
    $region7: #{decoder_layer_forward.1} parent=1 // pred_check_branch
      %72 = sbr.rel (0) target = $region9
    $region8: #{decoder_layer_forward.1} parent=1 // pred_region
      _
    $region9: #{decoder_layer_forward.1} parent=1 // pred_fallthru
      _
    // Predicated region
    $region10: #{decoder_layer_forward.1} parent=1 // pred_check
      _
    $region11: #{decoder_layer_forward.1} parent=1 // pred_check_branch
      %74 = sbr.rel (0) target = $region13
    $region12: #{decoder_layer_forward.1} parent=1 // pred_region
      _
    $region13: #{decoder_layer_forward.1} parent=1 // pred_fallthru
      _
    // Predicated region
    $region14: #{decoder_layer_forward.1} parent=1 // pred_check
      _
    $region15: #{decoder_layer_forward.1} parent=1 // pred_check_branch
      %76 = sbr.rel (0) target = $region17
    $region16: #{decoder_layer_forward.1} parent=1 // pred_region
      _
    $region17: #{decoder_layer_forward.1} parent=1 // pred_fallthru
      _
    // Predicated region
    $region18: #{decoder_layer_forward.1} parent=1 // pred_check
      _
    $region19: #{decoder_layer_forward.1} parent=1 // pred_check_branch
      %78 = sbr.rel (0) target = $region21
    $region20: #{decoder_layer_forward.1} parent=1 // pred_region
      _
    $region21: #{decoder_layer_forward.1} parent=1 // pred_fallthru
      _
    // Predicated region
    $region22: #{decoder_layer_forward.1} parent=1 // pred_check
      _
    $region23: #{decoder_layer_forward.1} parent=1 // pred_check_branch
      %80 = sbr.rel (0) target = $region25
    $region24: #{decoder_layer_forward.1} parent=1 // pred_region
      _
    $region25: #{decoder_layer_forward.1} parent=1 // pred_fallthru
      _
    // Predicated region
    $region26: #{decoder_layer_forward.1} parent=1 // pred_check
      _
    $region27: #{decoder_layer_forward.1} parent=1 // pred_check_branch
      %82 = sbr.rel (0) target = $region29
    $region28: #{decoder_layer_forward.1} parent=1 // pred_region
      _
    $region29: #{decoder_layer_forward.1} parent=1 // pred_fallthru
      _
    // Predicated region
    $region30: #{decoder_layer_forward.1} parent=1 // pred_check
      _
    $region31: #{decoder_layer_forward.1} parent=1 // pred_check_branch
      %84 = sbr.rel (0) target = $region33
    $region32: #{decoder_layer_forward.1} parent=1 // pred_region
      _
    $region33: #{decoder_layer_forward.1} parent=1 // pred_fallthru
      _
    // Predicated region
    $region34: #{decoder_layer_forward.1} parent=1 // pred_check
      _
    $region35: #{decoder_layer_forward.1} parent=1 // pred_check_branch
      %86 = sbr.rel (0) target = $region37
    $region36: #{decoder_layer_forward.1} parent=1 // pred_region
      _
    $region37: #{decoder_layer_forward.1} parent=1 // pred_fallthru
      _
    // Predicated region
    $region38: #{decoder_layer_forward.1} parent=1 // pred_check
      _
    $region39: #{decoder_layer_forward.1} parent=1 // pred_check_branch
      %88 = sbr.rel (0) target = $region41
    $region40: #{decoder_layer_forward.1} parent=1 // pred_region
      _
    $region41: #{decoder_layer_forward.1} parent=1 // pred_fallthru
      _
    // Predicated region
    $region42: #{decoder_layer_forward.1} parent=1 // pred_check
      _
    $region43: #{decoder_layer_forward.1} parent=1 // pred_check_branch
      %90 = sbr.rel (0) target = $region45
    $region44: #{decoder_layer_forward.1} parent=1 // pred_region
      _
    $region45: #{decoder_layer_forward.1} parent=1 // pred_fallthru
      _
    // Predicated region
    $region46: #{decoder_layer_forward.1} parent=1 // pred_check
      _
    $region47: #{decoder_layer_forward.1} parent=1 // pred_check_branch
      %92 = sbr.rel (0) target = $region49
    $region48: #{decoder_layer_forward.1} parent=1 // pred_region
      _
    $region49: #{decoder_layer_forward.1} parent=1 // pred_fallthru
      _
    // Predicated region
    $region50: #{decoder_layer_forward.1} parent=1 // pred_check
      _
    $region51: #{decoder_layer_forward.1} parent=1 // pred_check_branch
      %94 = sbr.rel (0) target = $region53
    $region52: #{decoder_layer_forward.1} parent=1 // pred_region
      _
    $region53: #{decoder_layer_forward.1} parent=1 // pred_fallthru
      _
    // Predicated region
    $region54: #{decoder_layer_forward.1} parent=1 // pred_check
      _
    $region55: #{decoder_layer_forward.1} parent=1 // pred_check_branch
      %96 = sbr.rel (0) target = $region57
    $region56: #{decoder_layer_forward.1} parent=1 // pred_region
      _
    $region57: #{decoder_layer_forward.1} parent=1 // pred_fallthru
      _
    // Predicated region
    $region58: #{decoder_layer_forward.1} parent=1 // pred_check
      _
    $region59: #{decoder_layer_forward.1} parent=1 // pred_check_branch
      %98 = sbr.rel (0) target = $region61
    $region60: #{decoder_layer_forward.1} parent=1 // pred_region
      _
    $region61: #{decoder_layer_forward.1} parent=1 // pred_fallthru
      _
    // Predicated region
    $region62: #{decoder_layer_forward.1} parent=1 // pred_check
      _
    $region63: #{decoder_layer_forward.1} parent=1 // pred_check_branch
      %100 = sbr.rel (0) target = $region65
    $region64: #{decoder_layer_forward.1} parent=1 // pred_region
      _
    $region65: #{decoder_layer_forward.1} parent=1 // pred_fallthru
      _
    // Predicated region
    $region66: #{decoder_layer_forward.1} parent=1 // pred_check
      _
    $region67: #{decoder_layer_forward.1} parent=1 // pred_check_branch
      %102 = sbr.rel (0) target = $region69
    $region68: #{decoder_layer_forward.1} parent=1 // pred_region
      _
    $region69: #{decoder_layer_forward.1} parent=1 // pred_fallthru
      _
    // Predicated region
    $region70: #{decoder_layer_forward.1} parent=1 // pred_check
      _
    $region71: #{decoder_layer_forward.1} parent=1 // pred_check_branch
      %104 = sbr.rel (0) target = $region73
    $region72: #{decoder_layer_forward.1} parent=1 // pred_region
      _
    $region73: #{decoder_layer_forward.1} parent=1 // pred_fallthru
      _
    // Predicated region
    $region74: #{decoder_layer_forward.1} parent=1 // pred_check
      _
    $region75: #{decoder_layer_forward.1} parent=1 // pred_check_branch
      %106 = sbr.rel (0) target = $region77
    $region76: #{decoder_layer_forward.1} parent=1 // pred_region
      _
    $region77: #{decoder_layer_forward.1} parent=1 // pred_fallthru
      _
    // Predicated region
    $region78: #{decoder_layer_forward.1} parent=1 // pred_check
      _
    $region79: #{decoder_layer_forward.1} parent=1 // pred_check_branch
      %108 = sbr.rel (0) target = $region81
    $region80: #{decoder_layer_forward.1} parent=1 // pred_region
      _
    $region81: #{decoder_layer_forward.1} parent=1 // pred_fallthru
      _
    // Predicated region
    $region82: #{decoder_layer_forward.1} parent=1 // pred_check
      _
    $region83: #{decoder_layer_forward.1} parent=1 // pred_check_branch
      %110 = sbr.rel (0) target = $region85
    $region84: #{decoder_layer_forward.1} parent=1 // pred_region
      _
    $region85: #{decoder_layer_forward.1} parent=1 // pred_fallthru
      _
    // Predicated region
    $region86: #{decoder_layer_forward.1} parent=1 // pred_check
      _
    $region87: #{decoder_layer_forward.1} parent=1 // pred_check_branch
      %112 = sbr.rel (0) target = $region89
    $region88: #{decoder_layer_forward.1} parent=1 // pred_region
      _
    $region89: #{decoder_layer_forward.1} parent=1 // pred_fallthru
      _
    // Predicated region
    $region90: #{decoder_layer_forward.1} parent=1 // pred_check
      _
    $region91: #{decoder_layer_forward.1} parent=1 // pred_check_branch
      %114 = sbr.rel (0) target = $region93
    $region92: #{decoder_layer_forward.1} parent=1 // pred_region
      _
    $region93: #{decoder_layer_forward.1} parent=1 // pred_fallthru
      _
    // Predicated region
    $region94: #{decoder_layer_forward.1} parent=1 // pred_check
      _
    $region95: #{decoder_layer_forward.1} parent=1 // pred_check_branch
      %116 = sbr.rel (0) target = $region97
    $region96: #{decoder_layer_forward.1} parent=1 // pred_region
      _
    $region97: #{decoder_layer_forward.1} parent=1 // pred_fallthru
      _
    // Predicated region
    $region98: #{decoder_layer_forward.1} parent=1 // pred_check
      _
    $region99: #{decoder_layer_forward.1} parent=1 // pred_check_branch
      %118 = sbr.rel (0) target = $region101
    $region100: #{decoder_layer_forward.1} parent=1 // pred_region
      _
    $region101: #{decoder_layer_forward.1} parent=1 // pred_fallthru
      _
    // Predicated region
    $region102: #{decoder_layer_forward.1} parent=1 // pred_check
      _
    $region103: #{decoder_layer_forward.1} parent=1 // pred_check_branch
      %120 = sbr.rel (0) target = $region105
    $region104: #{decoder_layer_forward.1} parent=1 // pred_region
      _
    $region105: #{decoder_layer_forward.1} parent=1 // pred_fallthru
      _
    // Predicated region
    $region106: #{decoder_layer_forward.1} parent=1 // pred_check
      _
    $region107: #{decoder_layer_forward.1} parent=1 // pred_check_branch
      %122 = sbr.rel (0) target = $region109
    $region108: #{decoder_layer_forward.1} parent=1 // pred_region
      _
    $region109: #{decoder_layer_forward.1} parent=1 // pred_fallthru
      _
    // Predicated region
    $region110: #{decoder_layer_forward.1} parent=1 // pred_check
      _
    $region111: #{decoder_layer_forward.1} parent=1 // pred_check_branch
      %124 = sbr.rel (0) target = $region113
    $region112: #{decoder_layer_forward.1} parent=1 // pred_region
      %126 = vsyncadd [#allocation4], 0
      %s127 = sshll.u32 %s55, 4
      %s128 = int_to_ptr.hbm [resolvable:$true] %s127
      %s129 = sshll.u32 [#allocation3], 4
      %s130 = int_to_ptr.vmem [resolvable:$true] %s129
      %135 = dma.hbm_to_vmem [thread:$0]  %s128, 512, %s130, [#allocation4], 128, 128, 8
    $region113: #{decoder_layer_forward.1} parent=1 // pred_fallthru
      _
    // Predicated region
    $region114: #{decoder_layer_forward.1} parent=1 // pred_check
      _
    $region115: #{decoder_layer_forward.1} parent=1 // pred_check_branch
      %137 = sbr.rel (0) target = $region117
    $region116: #{decoder_layer_forward.1} parent=1 // pred_region
      _
    $region117: #{decoder_layer_forward.1} parent=1 // pred_fallthru
      _
    // Predicated region
    $region118: #{decoder_layer_forward.1} parent=1 // pred_check
      _
    $region119: #{decoder_layer_forward.1} parent=1 // pred_check_branch
      %139 = sbr.rel (0) target = $region121
    $region120: #{decoder_layer_forward.1} parent=1 // pred_region
      _
    $region121: #{decoder_layer_forward.1} parent=1 // pred_fallthru
      _
    // Predicated region
    $region122: #{decoder_layer_forward.1} parent=1 // pred_check
      _
    $region123: #{decoder_layer_forward.1} parent=1 // pred_check_branch
      %141 = sbr.rel (0) target = $region125
    $region124: #{decoder_layer_forward.1} parent=1 // pred_region
      _
    $region125: #{decoder_layer_forward.1} parent=1 // pred_fallthru
      _
    // Predicated region
    $region126: #{decoder_layer_forward.1} parent=1 // pred_check
      _
    $region127: #{decoder_layer_forward.1} parent=1 // pred_check_branch
      %143 = sbr.rel (0) target = $region129
    $region128: #{decoder_layer_forward.1} parent=1 // pred_region
      %145 = dma.done [#allocation4], 512
    $region129: #{decoder_layer_forward.1} parent=1 // pred_fallthru
      _
    %v146 = vld [vmem:[%s1] sm:$0xff]
    %v147 = vld [vmem:[%s1 + $0x8] sm:$0xff]
    %v148 = vld [vmem:[%s3] sm:$0xff]
    %v149 = vld [vmem:[%s3 + $0x8] sm:$0xff]
    %v150 = vadd.f32 %v146, %v148
    %v151 = vadd.f32 %v147, %v149
    %v152 = vld [vmem:[%s11] sm:$0xff]
    %v153 = vld [vmem:[%s11 + $0x8] sm:$0xff]
    %v154 = vld [vmem:[%s11 + $0x10] sm:$0xff]
    %v155 = vld [vmem:[%s11 + $0x18] sm:$0xff]
    %v156 = vld [vmem:[%s13] sm:$0x1]
    %v158 = vperm.slane %v156, 0
    %vm160 = vcmask 261120
    %v162 = vsel %vm160, %v150, 0
    %v165 = vsel %vm160, %v151, 0
    %167 = vmatpush.msra.mxu0 0.0
    %168 = vmatpush.msra.mxu0 0.0
    %169 = vmatpush.msra.mxu0 0.0
    %170 = vmatpush.msra.mxu0 0.0
    %171 = vmatpush.msra.mxu0 0.0
    %172 = vmatpush.msra.mxu0 0.0
    %173 = vmatpush.msra.mxu0 0.0
    %174 = vmatpush.msra.mxu0 0.0
    %175 = vmatpush.msra.mxu0 0.0
    %176 = vmatpush.msra.mxu0 0.0
    %177 = vmatpush.msra.mxu0 0.0
    %178 = vmatpush.msra.mxu0 0.0
    %179 = vmatpush.msra.mxu0 %v155
    %180 = vmatpush.msra.mxu0 %v154
    %181 = vmatpush.msra.mxu0 %v153
    %182 = vmatpush.msra.mxu0 %v152
    %183 = vmatmul.f32.gmra.mxu0 %v162
    %v184 = vpop.f32.mrf.mxu0
    %v185 = vadd.f32 %v158, %v184
    %186 = vmatmul.f32.gmra.mxu0 %v165
    %v187 = vpop.f32.mrf.mxu0
    %v188 = vadd.f32 %v158, %v187
    %189 = vdwg.mxu0
    %v190 = vld [vmem:[%s15] sm:$0xff]
    %v191 = vld [vmem:[%s15 + $0x8] sm:$0xff]
    %v192 = vld [vmem:[%s15 + $0x10] sm:$0xff]
    %v193 = vld [vmem:[%s15 + $0x18] sm:$0xff]
    %v194 = vld [vmem:[%s17] sm:$0x1]
    %v196 = vperm.slane %v194, 0
    %198 = vmatpush.msra.mxu0 0.0
    %199 = vmatpush.msra.mxu0 0.0
    %200 = vmatpush.msra.mxu0 0.0
    %201 = vmatpush.msra.mxu0 0.0
    %202 = vmatpush.msra.mxu0 0.0
    %203 = vmatpush.msra.mxu0 0.0
    %204 = vmatpush.msra.mxu0 0.0
    %205 = vmatpush.msra.mxu0 0.0
    %206 = vmatpush.msra.mxu0 0.0
    %207 = vmatpush.msra.mxu0 0.0
    %208 = vmatpush.msra.mxu0 0.0
    %209 = vmatpush.msra.mxu0 0.0
    %210 = vmatpush.msra.mxu0 %v193
    %211 = vmatpush.msra.mxu0 %v192
    %212 = vmatpush.msra.mxu0 %v191
    %213 = vmatpush.msra.mxu0 %v190
    %214 = vmatmul.f32.gmra.mxu0 %v162
    %v215 = vpop.f32.mrf.mxu0
    %v216 = vadd.f32 %v196, %v215
    %217 = vmatmul.f32.gmra.mxu0 %v165
    %v218 = vpop.f32.mrf.mxu0
    %v219 = vadd.f32 %v196, %v218
    %220 = vdwg.mxu0
    %v221 = vld [vmem:[%s19] sm:$0xff]
    %v222 = vld [vmem:[%s19 + $0x8] sm:$0xff]
    %v223 = vld [vmem:[%s19 + $0x10] sm:$0xff]
    %v224 = vld [vmem:[%s19 + $0x18] sm:$0xff]
    %v225 = vld [vmem:[%s21] sm:$0x1]
    %v227 = vperm.slane %v225, 0
    %v230 = vsel %vm160, %v146, 0
    %v233 = vsel %vm160, %v147, 0
    %235 = vmatpush.msra.mxu0 0.0
    %236 = vmatpush.msra.mxu0 0.0
    %237 = vmatpush.msra.mxu0 0.0
    %238 = vmatpush.msra.mxu0 0.0
    %239 = vmatpush.msra.mxu0 0.0
    %240 = vmatpush.msra.mxu0 0.0
    %241 = vmatpush.msra.mxu0 0.0
    %242 = vmatpush.msra.mxu0 0.0
    %243 = vmatpush.msra.mxu0 0.0
    %244 = vmatpush.msra.mxu0 0.0
    %245 = vmatpush.msra.mxu0 0.0
    %246 = vmatpush.msra.mxu0 0.0
    %247 = vmatpush.msra.mxu0 %v224
    %248 = vmatpush.msra.mxu0 %v223
    %249 = vmatpush.msra.mxu0 %v222
    %250 = vmatpush.msra.mxu0 %v221
    %251 = vmatmul.f32.gmra.mxu0 %v230
    %v252 = vpop.f32.mrf.mxu0
    %v253 = vadd.f32 %v227, %v252
    %254 = vmatmul.f32.gmra.mxu0 %v233
    %v255 = vpop.f32.mrf.mxu0
    %v256 = vadd.f32 %v227, %v255
    %257 = vdwg.mxu0
    %v258 = vlaneseq
    %v259 = vand.u32 %v258, 127
    %vm260 = vcmp.ge.s32.totalorder %v259, 0
    %vm261 = vcmp.lt.s32.totalorder %v259, 8
    %vm262 = vmand %vm260, %vm261
    %vm263 = vcmp.ge.s32.totalorder %v259, 8
    %vm264 = vcmp.lt.s32.totalorder %v259, 16
    %vm265 = vmand %vm263, %vm264
    %vm266 = vcmp.ge.s32.totalorder %v259, 16
    %vm267 = vcmp.lt.s32.totalorder %v259, 24
    %vm268 = vmand %vm266, %vm267
    %vm269 = vcmp.ge.s32.totalorder %v259, 24
    %vm270 = vcmp.lt.s32.totalorder %v259, 32
    %vm271 = vmand %vm269, %vm270
    %v272 = vsel %vm262, %v185, 0.0
    %v273 = vsel %vm262, %v253, 0.0
    %v275 = vsel %vm160, %v272, 0
    %v278 = vsel %vm160, %v216, 0
    %280 = vmatpush.xpose.msra.mxu0 0.0
    %281 = vmatpush.xpose.msra.mxu0 0.0
    %282 = vmatpush.xpose.msra.mxu0 0.0
    %283 = vmatpush.xpose.msra.mxu0 0.0
    %284 = vmatpush.xpose.msra.mxu0 0.0
    %285 = vmatpush.xpose.msra.mxu0 0.0
    %286 = vmatpush.xpose.msra.mxu0 0.0
    %287 = vmatpush.xpose.msra.mxu0 0.0
    %288 = vmatpush.xpose.msra.mxu0 0.0
    %289 = vmatpush.xpose.msra.mxu0 0.0
    %290 = vmatpush.xpose.msra.mxu0 0.0
    %291 = vmatpush.xpose.msra.mxu0 0.0
    %292 = vmatpush.xpose.msra.mxu0 0.0
    %293 = vmatpush.xpose.msra.mxu0 0.0
    %294 = vmatpush.xpose.msra.mxu0 0.0
    %295 = vmatpush.xpose.msra.mxu0 %v278
    %296 = vmatmul.f32.gmra.mxu0 %v275
    %v297 = vpop.f32.mrf.mxu0
    %v298 = vadd.f32 0.0, %v297
    %299 = vdwg.mxu0
    %v300 = vmul.f32 %v298, 0.35355338
    %vm301 = vcmask 64512
    %v302 = vsel %vm301, %v300, -inf
    %303 = vmax.xlane.f32.xlu0 %v302
    %v304 = vpop.xlane.xlu0 %303
    %v305 = vsub.f32 %v300, %v304
    %v306 = vmul.f32 %v305, 1.442695
    %v307 = vpow.pop %v306
    %v308 = vsel %vm301, %v307, 0.0
    %309 = vadd.xlane.f32.xlu0 %v308
    %v310 = vpop.xlane.xlu0 %309
    %v311 = vrcp.pop %v310
    %v312 = vmul.f32 %v307, %v311
    %v313 = vsel %vm265, %v185, 0.0
    %v314 = vsel %vm265, %v253, 0.0
    %v316 = vsel %vm160, %v313, 0
    %318 = vmatpush.xpose.msra.mxu0 0.0
    %319 = vmatpush.xpose.msra.mxu0 0.0
    %320 = vmatpush.xpose.msra.mxu0 0.0
    %321 = vmatpush.xpose.msra.mxu0 0.0
    %322 = vmatpush.xpose.msra.mxu0 0.0
    %323 = vmatpush.xpose.msra.mxu0 0.0
    %324 = vmatpush.xpose.msra.mxu0 0.0
    %325 = vmatpush.xpose.msra.mxu0 0.0
    %326 = vmatpush.xpose.msra.mxu0 0.0
    %327 = vmatpush.xpose.msra.mxu0 0.0
    %328 = vmatpush.xpose.msra.mxu0 0.0
    %329 = vmatpush.xpose.msra.mxu0 0.0
    %330 = vmatpush.xpose.msra.mxu0 0.0
    %331 = vmatpush.xpose.msra.mxu0 0.0
    %332 = vmatpush.xpose.msra.mxu0 0.0
    %333 = vmatpush.xpose.msra.mxu0 %v278
    %334 = vmatmul.f32.gmra.mxu0 %v316
    %v335 = vpop.f32.mrf.mxu0
    %v336 = vadd.f32 0.0, %v335
    %337 = vdwg.mxu0
    %v338 = vmul.f32 %v336, 0.35355338
    %v339 = vsel %vm301, %v338, -inf
    %340 = vmax.xlane.f32.xlu0 %v339
    %v341 = vpop.xlane.xlu0 %340
    %v342 = vsub.f32 %v338, %v341
    %v343 = vmul.f32 %v342, 1.442695
    %v344 = vpow.pop %v343
    %v345 = vsel %vm301, %v344, 0.0
    %346 = vadd.xlane.f32.xlu0 %v345
    %v347 = vpop.xlane.xlu0 %346
    %v348 = vrcp.pop %v347
    %v349 = vmul.f32 %v344, %v348
    %v351 = vsel %vm301, %v349, 0
    %353 = vmatpush.msra.mxu0 0.0
    %354 = vmatpush.msra.mxu0 0.0
    %355 = vmatpush.msra.mxu0 0.0
    %356 = vmatpush.msra.mxu0 0.0
    %357 = vmatpush.msra.mxu0 0.0
    %358 = vmatpush.msra.mxu0 0.0
    %359 = vmatpush.msra.mxu0 0.0
    %360 = vmatpush.msra.mxu0 0.0
    %361 = vmatpush.msra.mxu0 0.0
    %362 = vmatpush.msra.mxu0 0.0
    %363 = vmatpush.msra.mxu0 0.0
    %364 = vmatpush.msra.mxu0 0.0
    %365 = vmatpush.msra.mxu0 0.0
    %366 = vmatpush.msra.mxu0 0.0
    %367 = vmatpush.msra.mxu0 0.0
    %368 = vmatpush.msra.mxu0 %v314
    %369 = vmatmul.f32.gmra.mxu0 %v351
    %v370 = vpop.f32.mrf.mxu0
    %v371 = vadd.f32 0.0, %v370
    %372 = vdwg.mxu0
    %v374 = vsel %vm301, %v312, 0
    %376 = vmatpush.msra.mxu0 0.0
    %377 = vmatpush.msra.mxu0 0.0
    %378 = vmatpush.msra.mxu0 0.0
    %379 = vmatpush.msra.mxu0 0.0
    %380 = vmatpush.msra.mxu0 0.0
    %381 = vmatpush.msra.mxu0 0.0
    %382 = vmatpush.msra.mxu0 0.0
    %383 = vmatpush.msra.mxu0 0.0
    %384 = vmatpush.msra.mxu0 0.0
    %385 = vmatpush.msra.mxu0 0.0
    %386 = vmatpush.msra.mxu0 0.0
    %387 = vmatpush.msra.mxu0 0.0
    %388 = vmatpush.msra.mxu0 0.0
    %389 = vmatpush.msra.mxu0 0.0
    %390 = vmatpush.msra.mxu0 0.0
    %391 = vmatpush.msra.mxu0 %v273
    %392 = vmatmul.f32.gmra.mxu0 %v374
    %v393 = vpop.f32.mrf.mxu0
    %v394 = vadd.f32 %v371, %v393
    %395 = vdwg.mxu0
    %v396 = vsel %vm268, %v185, 0.0
    %v397 = vsel %vm268, %v253, 0.0
    %v399 = vsel %vm160, %v396, 0
    %401 = vmatpush.xpose.msra.mxu0 0.0
    %402 = vmatpush.xpose.msra.mxu0 0.0
    %403 = vmatpush.xpose.msra.mxu0 0.0
    %404 = vmatpush.xpose.msra.mxu0 0.0
    %405 = vmatpush.xpose.msra.mxu0 0.0
    %406 = vmatpush.xpose.msra.mxu0 0.0
    %407 = vmatpush.xpose.msra.mxu0 0.0
    %408 = vmatpush.xpose.msra.mxu0 0.0
    %409 = vmatpush.xpose.msra.mxu0 0.0
    %410 = vmatpush.xpose.msra.mxu0 0.0
    %411 = vmatpush.xpose.msra.mxu0 0.0
    %412 = vmatpush.xpose.msra.mxu0 0.0
    %413 = vmatpush.xpose.msra.mxu0 0.0
    %414 = vmatpush.xpose.msra.mxu0 0.0
    %415 = vmatpush.xpose.msra.mxu0 0.0
    %416 = vmatpush.xpose.msra.mxu0 %v278
    %417 = vmatmul.f32.gmra.mxu0 %v399
    %v418 = vpop.f32.mrf.mxu0
    %v419 = vadd.f32 0.0, %v418
    %420 = vdwg.mxu0
    %v421 = vmul.f32 %v419, 0.35355338
    %v422 = vsel %vm301, %v421, -inf
    %423 = vmax.xlane.f32.xlu0 %v422
    %v424 = vpop.xlane.xlu0 %423
    %v425 = vsub.f32 %v421, %v424
    %v426 = vmul.f32 %v425, 1.442695
    %v427 = vpow.pop %v426
    %v428 = vsel %vm301, %v427, 0.0
    %429 = vadd.xlane.f32.xlu0 %v428
    %v430 = vpop.xlane.xlu0 %429
    %v431 = vrcp.pop %v430
    %v432 = vmul.f32 %v427, %v431
    %v434 = vsel %vm301, %v432, 0
    %436 = vmatpush.msra.mxu0 0.0
    %437 = vmatpush.msra.mxu0 0.0
    %438 = vmatpush.msra.mxu0 0.0
    %439 = vmatpush.msra.mxu0 0.0
    %440 = vmatpush.msra.mxu0 0.0
    %441 = vmatpush.msra.mxu0 0.0
    %442 = vmatpush.msra.mxu0 0.0
    %443 = vmatpush.msra.mxu0 0.0
    %444 = vmatpush.msra.mxu0 0.0
    %445 = vmatpush.msra.mxu0 0.0
    %446 = vmatpush.msra.mxu0 0.0
    %447 = vmatpush.msra.mxu0 0.0
    %448 = vmatpush.msra.mxu0 0.0
    %449 = vmatpush.msra.mxu0 0.0
    %450 = vmatpush.msra.mxu0 0.0
    %451 = vmatpush.msra.mxu0 %v397
    %452 = vmatmul.f32.gmra.mxu0 %v434
    %v453 = vpop.f32.mrf.mxu0
    %v454 = vadd.f32 0.0, %v453
    %455 = vdwg.mxu0
    %v456 = vadd.f32 %v394, %v454
    %v457 = vsel %vm271, %v185, 0.0
    %v458 = vsel %vm271, %v253, 0.0
    %v460 = vsel %vm160, %v457, 0
    %462 = vmatpush.xpose.msra.mxu0 0.0
    %463 = vmatpush.xpose.msra.mxu0 0.0
    %464 = vmatpush.xpose.msra.mxu0 0.0
    %465 = vmatpush.xpose.msra.mxu0 0.0
    %466 = vmatpush.xpose.msra.mxu0 0.0
    %467 = vmatpush.xpose.msra.mxu0 0.0
    %468 = vmatpush.xpose.msra.mxu0 0.0
    %469 = vmatpush.xpose.msra.mxu0 0.0
    %470 = vmatpush.xpose.msra.mxu0 0.0
    %471 = vmatpush.xpose.msra.mxu0 0.0
    %472 = vmatpush.xpose.msra.mxu0 0.0
    %473 = vmatpush.xpose.msra.mxu0 0.0
    %474 = vmatpush.xpose.msra.mxu0 0.0
    %475 = vmatpush.xpose.msra.mxu0 0.0
    %476 = vmatpush.xpose.msra.mxu0 0.0
    %477 = vmatpush.xpose.msra.mxu0 %v278
    %478 = vmatmul.f32.gmra.mxu0 %v460
    %v479 = vpop.f32.mrf.mxu0
    %v480 = vadd.f32 0.0, %v479
    %481 = vdwg.mxu0
    %v482 = vmul.f32 %v480, 0.35355338
    %v483 = vsel %vm301, %v482, -inf
    %484 = vmax.xlane.f32.xlu0 %v483
    %v485 = vpop.xlane.xlu0 %484
    %v486 = vsub.f32 %v482, %v485
    %v487 = vmul.f32 %v486, 1.442695
    %v488 = vpow.pop %v487
    %v489 = vsel %vm301, %v488, 0.0
    %490 = vadd.xlane.f32.xlu0 %v489
    %v491 = vpop.xlane.xlu0 %490
    %v492 = vrcp.pop %v491
    %v493 = vmul.f32 %v488, %v492
    %v495 = vsel %vm301, %v493, 0
    %497 = vmatpush.msra.mxu0 0.0
    %498 = vmatpush.msra.mxu0 0.0
    %499 = vmatpush.msra.mxu0 0.0
    %500 = vmatpush.msra.mxu0 0.0
    %501 = vmatpush.msra.mxu0 0.0
    %502 = vmatpush.msra.mxu0 0.0
    %503 = vmatpush.msra.mxu0 0.0
    %504 = vmatpush.msra.mxu0 0.0
    %505 = vmatpush.msra.mxu0 0.0
    %506 = vmatpush.msra.mxu0 0.0
    %507 = vmatpush.msra.mxu0 0.0
    %508 = vmatpush.msra.mxu0 0.0
    %509 = vmatpush.msra.mxu0 0.0
    %510 = vmatpush.msra.mxu0 0.0
    %511 = vmatpush.msra.mxu0 0.0
    %512 = vmatpush.msra.mxu0 %v458
    %513 = vmatmul.f32.gmra.mxu0 %v495
    %v514 = vpop.f32.mrf.mxu0
    %v515 = vadd.f32 0.0, %v514
    %516 = vdwg.mxu0
    %v517 = vadd.f32 %v456, %v515
    %518 = vst.msk [vmem:[#allocation2] sm:$0xff] %vm160, %v517
    %v519 = vsel %vm262, %v188, 0.0
    %v520 = vsel %vm262, %v256, 0.0
    %v522 = vsel %vm160, %v519, 0
    %v525 = vsel %vm160, %v219, 0
    %527 = vmatpush.xpose.msra.mxu0 0.0
    %528 = vmatpush.xpose.msra.mxu0 0.0
    %529 = vmatpush.xpose.msra.mxu0 0.0
    %530 = vmatpush.xpose.msra.mxu0 0.0
    %531 = vmatpush.xpose.msra.mxu0 0.0
    %532 = vmatpush.xpose.msra.mxu0 0.0
    %533 = vmatpush.xpose.msra.mxu0 0.0
    %534 = vmatpush.xpose.msra.mxu0 0.0
    %535 = vmatpush.xpose.msra.mxu0 0.0
    %536 = vmatpush.xpose.msra.mxu0 0.0
    %537 = vmatpush.xpose.msra.mxu0 0.0
    %538 = vmatpush.xpose.msra.mxu0 0.0
    %539 = vmatpush.xpose.msra.mxu0 0.0
    %540 = vmatpush.xpose.msra.mxu0 0.0
    %541 = vmatpush.xpose.msra.mxu0 0.0
    %542 = vmatpush.xpose.msra.mxu0 %v525
    %543 = vmatmul.f32.gmra.mxu0 %v522
    %v544 = vpop.f32.mrf.mxu0
    %v545 = vadd.f32 0.0, %v544
    %546 = vdwg.mxu0
    %v547 = vmul.f32 %v545, 0.35355338
    %v548 = vsel %vm301, %v547, -inf
    %549 = vmax.xlane.f32.xlu0 %v548
    %v550 = vpop.xlane.xlu0 %549
    %v551 = vsub.f32 %v547, %v550
    %v552 = vmul.f32 %v551, 1.442695
    %v553 = vpow.pop %v552
    %v554 = vsel %vm301, %v553, 0.0
    %555 = vadd.xlane.f32.xlu0 %v554
    %v556 = vpop.xlane.xlu0 %555
    %v557 = vrcp.pop %v556
    %v558 = vmul.f32 %v553, %v557
    %v559 = vsel %vm265, %v188, 0.0
    %v560 = vsel %vm265, %v256, 0.0
    %v562 = vsel %vm160, %v559, 0
    %564 = vmatpush.xpose.msra.mxu0 0.0
    %565 = vmatpush.xpose.msra.mxu0 0.0
    %566 = vmatpush.xpose.msra.mxu0 0.0
    %567 = vmatpush.xpose.msra.mxu0 0.0
    %568 = vmatpush.xpose.msra.mxu0 0.0
    %569 = vmatpush.xpose.msra.mxu0 0.0
    %570 = vmatpush.xpose.msra.mxu0 0.0
    %571 = vmatpush.xpose.msra.mxu0 0.0
    %572 = vmatpush.xpose.msra.mxu0 0.0
    %573 = vmatpush.xpose.msra.mxu0 0.0
    %574 = vmatpush.xpose.msra.mxu0 0.0
    %575 = vmatpush.xpose.msra.mxu0 0.0
    %576 = vmatpush.xpose.msra.mxu0 0.0
    %577 = vmatpush.xpose.msra.mxu0 0.0
    %578 = vmatpush.xpose.msra.mxu0 0.0
    %579 = vmatpush.xpose.msra.mxu0 %v525
    %580 = vmatmul.f32.gmra.mxu0 %v562
    %v581 = vpop.f32.mrf.mxu0
    %v582 = vadd.f32 0.0, %v581
    %583 = vdwg.mxu0
    %v584 = vmul.f32 %v582, 0.35355338
    %v585 = vsel %vm301, %v584, -inf
    %586 = vmax.xlane.f32.xlu0 %v585
    %v587 = vpop.xlane.xlu0 %586
    %v588 = vsub.f32 %v584, %v587
    %v589 = vmul.f32 %v588, 1.442695
    %v590 = vpow.pop %v589
    %v591 = vsel %vm301, %v590, 0.0
    %592 = vadd.xlane.f32.xlu0 %v591
    %v593 = vpop.xlane.xlu0 %592
    %v594 = vrcp.pop %v593
    %v595 = vmul.f32 %v590, %v594
    %v597 = vsel %vm301, %v595, 0
    %599 = vmatpush.msra.mxu0 0.0
    %600 = vmatpush.msra.mxu0 0.0
    %601 = vmatpush.msra.mxu0 0.0
    %602 = vmatpush.msra.mxu0 0.0
    %603 = vmatpush.msra.mxu0 0.0
    %604 = vmatpush.msra.mxu0 0.0
    %605 = vmatpush.msra.mxu0 0.0
    %606 = vmatpush.msra.mxu0 0.0
    %607 = vmatpush.msra.mxu0 0.0
    %608 = vmatpush.msra.mxu0 0.0
    %609 = vmatpush.msra.mxu0 0.0
    %610 = vmatpush.msra.mxu0 0.0
    %611 = vmatpush.msra.mxu0 0.0
    %612 = vmatpush.msra.mxu0 0.0
    %613 = vmatpush.msra.mxu0 0.0
    %614 = vmatpush.msra.mxu0 %v560
    %615 = vmatmul.f32.gmra.mxu0 %v597
    %v616 = vpop.f32.mrf.mxu0
    %v617 = vadd.f32 0.0, %v616
    %618 = vdwg.mxu0
    %v620 = vsel %vm301, %v558, 0
    %622 = vmatpush.msra.mxu0 0.0
    %623 = vmatpush.msra.mxu0 0.0
    %624 = vmatpush.msra.mxu0 0.0
    %625 = vmatpush.msra.mxu0 0.0
    %626 = vmatpush.msra.mxu0 0.0
    %627 = vmatpush.msra.mxu0 0.0
    %628 = vmatpush.msra.mxu0 0.0
    %629 = vmatpush.msra.mxu0 0.0
    %630 = vmatpush.msra.mxu0 0.0
    %631 = vmatpush.msra.mxu0 0.0
    %632 = vmatpush.msra.mxu0 0.0
    %633 = vmatpush.msra.mxu0 0.0
    %634 = vmatpush.msra.mxu0 0.0
    %635 = vmatpush.msra.mxu0 0.0
    %636 = vmatpush.msra.mxu0 0.0
    %637 = vmatpush.msra.mxu0 %v520
    %638 = vmatmul.f32.gmra.mxu0 %v620
    %v639 = vpop.f32.mrf.mxu0
    %v640 = vadd.f32 %v617, %v639
    %641 = vdwg.mxu0
    %v642 = vsel %vm268, %v188, 0.0
    %v643 = vsel %vm268, %v256, 0.0
    %v645 = vsel %vm160, %v642, 0
    %647 = vmatpush.xpose.msra.mxu0 0.0
    %648 = vmatpush.xpose.msra.mxu0 0.0
    %649 = vmatpush.xpose.msra.mxu0 0.0
    %650 = vmatpush.xpose.msra.mxu0 0.0
    %651 = vmatpush.xpose.msra.mxu0 0.0
    %652 = vmatpush.xpose.msra.mxu0 0.0
    %653 = vmatpush.xpose.msra.mxu0 0.0
    %654 = vmatpush.xpose.msra.mxu0 0.0
    %655 = vmatpush.xpose.msra.mxu0 0.0
    %656 = vmatpush.xpose.msra.mxu0 0.0
    %657 = vmatpush.xpose.msra.mxu0 0.0
    %658 = vmatpush.xpose.msra.mxu0 0.0
    %659 = vmatpush.xpose.msra.mxu0 0.0
    %660 = vmatpush.xpose.msra.mxu0 0.0
    %661 = vmatpush.xpose.msra.mxu0 0.0
    %662 = vmatpush.xpose.msra.mxu0 %v525
    %663 = vmatmul.f32.gmra.mxu0 %v645
    %v664 = vpop.f32.mrf.mxu0
    %v665 = vadd.f32 0.0, %v664
    %666 = vdwg.mxu0
    %v667 = vmul.f32 %v665, 0.35355338
    %v668 = vsel %vm301, %v667, -inf
    %669 = vmax.xlane.f32.xlu0 %v668
    %v670 = vpop.xlane.xlu0 %669
    %v671 = vsub.f32 %v667, %v670
    %v672 = vmul.f32 %v671, 1.442695
    %v673 = vpow.pop %v672
    %v674 = vsel %vm301, %v673, 0.0
    %675 = vadd.xlane.f32.xlu0 %v674
    %v676 = vpop.xlane.xlu0 %675
    %v677 = vrcp.pop %v676
    %v678 = vmul.f32 %v673, %v677
    %v680 = vsel %vm301, %v678, 0
    %682 = vmatpush.msra.mxu0 0.0
    %683 = vmatpush.msra.mxu0 0.0
    %684 = vmatpush.msra.mxu0 0.0
    %685 = vmatpush.msra.mxu0 0.0
    %686 = vmatpush.msra.mxu0 0.0
    %687 = vmatpush.msra.mxu0 0.0
    %688 = vmatpush.msra.mxu0 0.0
    %689 = vmatpush.msra.mxu0 0.0
    %690 = vmatpush.msra.mxu0 0.0
    %691 = vmatpush.msra.mxu0 0.0
    %692 = vmatpush.msra.mxu0 0.0
    %693 = vmatpush.msra.mxu0 0.0
    %694 = vmatpush.msra.mxu0 0.0
    %695 = vmatpush.msra.mxu0 0.0
    %696 = vmatpush.msra.mxu0 0.0
    %697 = vmatpush.msra.mxu0 %v643
    %698 = vmatmul.f32.gmra.mxu0 %v680
    %v699 = vpop.f32.mrf.mxu0
    %v700 = vadd.f32 0.0, %v699
    %701 = vdwg.mxu0
    %v702 = vadd.f32 %v640, %v700
    %v703 = vsel %vm271, %v188, 0.0
    %v704 = vsel %vm271, %v256, 0.0
    %v706 = vsel %vm160, %v703, 0
    %708 = vmatpush.xpose.msra.mxu0 0.0
    %709 = vmatpush.xpose.msra.mxu0 0.0
    %710 = vmatpush.xpose.msra.mxu0 0.0
    %711 = vmatpush.xpose.msra.mxu0 0.0
    %712 = vmatpush.xpose.msra.mxu0 0.0
    %713 = vmatpush.xpose.msra.mxu0 0.0
    %714 = vmatpush.xpose.msra.mxu0 0.0
    %715 = vmatpush.xpose.msra.mxu0 0.0
    %716 = vmatpush.xpose.msra.mxu0 0.0
    %717 = vmatpush.xpose.msra.mxu0 0.0
    %718 = vmatpush.xpose.msra.mxu0 0.0
    %719 = vmatpush.xpose.msra.mxu0 0.0
    %720 = vmatpush.xpose.msra.mxu0 0.0
    %721 = vmatpush.xpose.msra.mxu0 0.0
    %722 = vmatpush.xpose.msra.mxu0 0.0
    %723 = vmatpush.xpose.msra.mxu0 %v525
    %724 = vmatmul.f32.gmra.mxu0 %v706
    %v725 = vpop.f32.mrf.mxu0
    %v726 = vadd.f32 0.0, %v725
    %727 = vdwg.mxu0
    %v728 = vmul.f32 %v726, 0.35355338
    %v729 = vsel %vm301, %v728, -inf
    %730 = vmax.xlane.f32.xlu0 %v729
    %v731 = vpop.xlane.xlu0 %730
    %v732 = vsub.f32 %v728, %v731
    %v733 = vmul.f32 %v732, 1.442695
    %v734 = vpow.pop %v733
    %v735 = vsel %vm301, %v734, 0.0
    %736 = vadd.xlane.f32.xlu0 %v735
    %v737 = vpop.xlane.xlu0 %736
    %v738 = vrcp.pop %v737
    %v739 = vmul.f32 %v734, %v738
    %v741 = vsel %vm301, %v739, 0
    %743 = vmatpush.msra.mxu0 0.0
    %744 = vmatpush.msra.mxu0 0.0
    %745 = vmatpush.msra.mxu0 0.0
    %746 = vmatpush.msra.mxu0 0.0
    %747 = vmatpush.msra.mxu0 0.0
    %748 = vmatpush.msra.mxu0 0.0
    %749 = vmatpush.msra.mxu0 0.0
    %750 = vmatpush.msra.mxu0 0.0
    %751 = vmatpush.msra.mxu0 0.0
    %752 = vmatpush.msra.mxu0 0.0
    %753 = vmatpush.msra.mxu0 0.0
    %754 = vmatpush.msra.mxu0 0.0
    %755 = vmatpush.msra.mxu0 0.0
    %756 = vmatpush.msra.mxu0 0.0
    %757 = vmatpush.msra.mxu0 0.0
    %758 = vmatpush.msra.mxu0 %v704
    %759 = vmatmul.f32.gmra.mxu0 %v741
    %v760 = vpop.f32.mrf.mxu0
    %v761 = vadd.f32 0.0, %v760
    %762 = vdwg.mxu0
    %v763 = vadd.f32 %v702, %v761
    %764 = vst.msk [vmem:[#allocation2 + $0x8] sm:$0xff] %vm160, %v763
    %v765 = vld [vmem:[#allocation2] sm:$0xff]
    %v766 = vld [vmem:[#allocation2 + $0x8] sm:$0xff]
    %v767 = vld [vmem:[%s23] sm:$0xff]
    %v768 = vld [vmem:[%s23 + $0x8] sm:$0xff]
    %v769 = vld [vmem:[%s23 + $0x10] sm:$0xff]
    %v770 = vld [vmem:[%s23 + $0x18] sm:$0xff]
    %v771 = vld [vmem:[%s25] sm:$0x1]
    %v773 = vperm.slane %v771, 0
    %v776 = vsel %vm160, %v765, 0
    %v779 = vsel %vm160, %v766, 0
    %781 = vmatpush.msra.mxu0 0.0
    %782 = vmatpush.msra.mxu0 0.0
    %783 = vmatpush.msra.mxu0 0.0
    %784 = vmatpush.msra.mxu0 0.0
    %785 = vmatpush.msra.mxu0 0.0
    %786 = vmatpush.msra.mxu0 0.0
    %787 = vmatpush.msra.mxu0 0.0
    %788 = vmatpush.msra.mxu0 0.0
    %789 = vmatpush.msra.mxu0 0.0
    %790 = vmatpush.msra.mxu0 0.0
    %791 = vmatpush.msra.mxu0 0.0
    %792 = vmatpush.msra.mxu0 0.0
    %793 = vmatpush.msra.mxu0 %v770
    %794 = vmatpush.msra.mxu0 %v769
    %795 = vmatpush.msra.mxu0 %v768
    %796 = vmatpush.msra.mxu0 %v767
    %797 = vmatmul.f32.gmra.mxu0 %v776
    %v798 = vpop.f32.mrf.mxu0
    %v799 = vadd.f32 %v773, %v798
    %800 = vmatmul.f32.gmra.mxu0 %v779
    %v801 = vpop.f32.mrf.mxu0
    %v802 = vadd.f32 %v773, %v801
    %803 = vdwg.mxu0
    %v804 = vadd.f32 %v146, %v799
    %v805 = vadd.f32 %v147, %v802
    %v806 = vld [vmem:[%s43] sm:$0x1]
    %v807 = vld [vmem:[%s45] sm:$0x1]
    %v808 = vsel %vm160, %v804, 0.0
    %809 = vadd.xlane.f32.xlu0 %v808
    %v810 = vpop.xlane.xlu0 %809
    %v811 = vsel %vm160, %v805, 0.0
    %812 = vadd.xlane.f32.xlu0 %v811
    %v813 = vpop.xlane.xlu0 %812
    %v814 = vrcp.pop 32.0
    %v815 = vmul.f32 32.0, %v814
    %v816 = vsub.f32 1.0, %v815
    %v817 = vmul.f32 %v814, %v816
    %v818 = vadd.f32 %v814, %v817
    %vm819 = vweird.f32 %v814
    %v820 = vsel %vm819, %v814, %v818
    %v821 = vmul.f32 %v810, %v820
    %v822 = vmul.f32 %v813, %v820
    %v823 = vsub.f32 %v804, %v821
    %v824 = vsub.f32 %v805, %v822
    %v825 = vmul.f32 %v823, %v823
    %v826 = vmul.f32 %v824, %v824
    %v827 = vsel %vm160, %v825, 0.0
    %828 = vadd.xlane.f32.xlu0 %v827
    %v829 = vpop.xlane.xlu0 %828
    %v830 = vsel %vm160, %v826, 0.0
    %831 = vadd.xlane.f32.xlu0 %v830
    %v832 = vpop.xlane.xlu0 %831
    %v833 = vmul.f32 %v829, %v820
    %v834 = vmul.f32 %v832, %v820
    %v835 = vadd.f32 %v833, 1e-05
    %v836 = vadd.f32 %v834, 1e-05
    %v837 = vrsqrt.pop %v835
    %v838 = vmul.f32 %v837, %v835
    %v839 = vmul.f32 %v838, %v837
    %v840 = vmul.f32 0.5, %v839
    %v841 = vsub.f32 1.5, %v840
    %v842 = vmul.f32 %v837, %v841
    %vm843 = vweird.f32 %v835
    %vm844 = vweird.f32 %v837
    %vm845 = vmor %vm843, %vm844
    %v846 = vsel %vm845, %v837, %v842
    %v847 = vrsqrt.pop %v836
    %v848 = vmul.f32 %v847, %v836
    %v849 = vmul.f32 %v848, %v847
    %v850 = vmul.f32 0.5, %v849
    %v851 = vsub.f32 1.5, %v850
    %v852 = vmul.f32 %v847, %v851
    %vm853 = vweird.f32 %v836
    %vm854 = vweird.f32 %v847
    %vm855 = vmor %vm853, %vm854
    %v856 = vsel %vm855, %v847, %v852
    %v857 = vmul.f32 %v823, %v846
    %v858 = vmul.f32 %v824, %v856
    %v860 = vperm.slane %v806, 0
    %v862 = vmul.f32 %v857, %v860
    %v863 = vmul.f32 %v858, %v860
    %v865 = vperm.slane %v807, 0
    %v867 = vadd.f32 %v862, %v865
    %v868 = vadd.f32 %v863, %v865
    %v869 = vld [vmem:[%s5] sm:$0xff]
    %v870 = vld [vmem:[%s5 + $0x8] sm:$0xff]
    %v871 = vld [vmem:[%s5 + $0x10] sm:$0xff]
    %v872 = vld [vmem:[%s5 + $0x18] sm:$0xff]
    %v873 = vld [vmem:[%s7] sm:$0xff]
    %v874 = vld [vmem:[%s7 + $0x8] sm:$0xff]
    %v875 = vadd.f32 %v867, %v873
    %v876 = vadd.f32 %v868, %v874
    %v877 = vld [vmem:[%s27] sm:$0xff]
    %v878 = vld [vmem:[%s27 + $0x8] sm:$0xff]
    %v879 = vld [vmem:[%s27 + $0x10] sm:$0xff]
    %v880 = vld [vmem:[%s27 + $0x18] sm:$0xff]
    %v881 = vld [vmem:[%s29] sm:$0x1]
    %v883 = vperm.slane %v881, 0
    %v886 = vsel %vm160, %v875, 0
    %v889 = vsel %vm160, %v876, 0
    %891 = vmatpush.msra.mxu0 0.0
    %892 = vmatpush.msra.mxu0 0.0
    %893 = vmatpush.msra.mxu0 0.0
    %894 = vmatpush.msra.mxu0 0.0
    %895 = vmatpush.msra.mxu0 0.0
    %896 = vmatpush.msra.mxu0 0.0
    %897 = vmatpush.msra.mxu0 0.0
    %898 = vmatpush.msra.mxu0 0.0
    %899 = vmatpush.msra.mxu0 0.0
    %900 = vmatpush.msra.mxu0 0.0
    %901 = vmatpush.msra.mxu0 0.0
    %902 = vmatpush.msra.mxu0 0.0
    %903 = vmatpush.msra.mxu0 %v880
    %904 = vmatpush.msra.mxu0 %v879
    %905 = vmatpush.msra.mxu0 %v878
    %906 = vmatpush.msra.mxu0 %v877
    %907 = vmatmul.f32.gmra.mxu0 %v886
    %v908 = vpop.f32.mrf.mxu0
    %v909 = vadd.f32 %v883, %v908
    %910 = vmatmul.f32.gmra.mxu0 %v889
    %v911 = vpop.f32.mrf.mxu0
    %v912 = vadd.f32 %v883, %v911
    %913 = vdwg.mxu0
    %v914 = vld [vmem:[%s9] sm:$0xff]
    %v915 = vld [vmem:[%s9 + $0x8] sm:$0xff]
    %v916 = vld [vmem:[%s9 + $0x10] sm:$0xff]
    %v917 = vld [vmem:[%s9 + $0x18] sm:$0xff]
    %v918 = vadd.f32 %v869, %v914
    %v919 = vadd.f32 %v870, %v915
    %v920 = vadd.f32 %v871, %v916
    %v921 = vadd.f32 %v872, %v917
    %v922 = vld [vmem:[%s31] sm:$0xff]
    %v923 = vld [vmem:[%s31 + $0x8] sm:$0xff]
    %v924 = vld [vmem:[%s31 + $0x10] sm:$0xff]
    %v925 = vld [vmem:[%s31 + $0x18] sm:$0xff]
    %v926 = vld [vmem:[%s33] sm:$0x1]
    %v928 = vperm.slane %v926, 0
    %v931 = vsel %vm160, %v918, 0
    %v934 = vsel %vm160, %v919, 0
    %v937 = vsel %vm160, %v920, 0
    %v940 = vsel %vm160, %v921, 0
    %942 = vmatpush.msra.mxu0 0.0
    %943 = vmatpush.msra.mxu0 0.0
    %944 = vmatpush.msra.mxu0 0.0
    %945 = vmatpush.msra.mxu0 0.0
    %946 = vmatpush.msra.mxu0 0.0
    %947 = vmatpush.msra.mxu0 0.0
    %948 = vmatpush.msra.mxu0 0.0
    %949 = vmatpush.msra.mxu0 0.0
    %950 = vmatpush.msra.mxu0 0.0
    %951 = vmatpush.msra.mxu0 0.0
    %952 = vmatpush.msra.mxu0 0.0
    %953 = vmatpush.msra.mxu0 0.0
    %954 = vmatpush.msra.mxu0 %v925
    %955 = vmatpush.msra.mxu0 %v924
    %956 = vmatpush.msra.mxu0 %v923
    %957 = vmatpush.msra.mxu0 %v922
    %958 = vmatmul.f32.gmra.mxu0 %v931
    %v959 = vpop.f32.mrf.mxu0
    %v960 = vadd.f32 %v928, %v959
    %961 = vmatmul.f32.gmra.mxu0 %v934
    %v962 = vpop.f32.mrf.mxu0
    %v963 = vadd.f32 %v928, %v962
    %964 = vmatmul.f32.gmra.mxu0 %v937
    %v965 = vpop.f32.mrf.mxu0
    %v966 = vadd.f32 %v928, %v965
    %967 = vmatmul.f32.gmra.mxu0 %v940
    %v968 = vpop.f32.mrf.mxu0
    %v969 = vadd.f32 %v928, %v968
    %970 = vdwg.mxu0
    %v971 = vld [vmem:[%s35] sm:$0xff]
    %v972 = vld [vmem:[%s35 + $0x8] sm:$0xff]
    %v973 = vld [vmem:[%s35 + $0x10] sm:$0xff]
    %v974 = vld [vmem:[%s35 + $0x18] sm:$0xff]
    %v975 = vld [vmem:[%s37] sm:$0x1]
    %v977 = vperm.slane %v975, 0
    %v980 = vsel %vm160, %v869, 0
    %v983 = vsel %vm160, %v870, 0
    %v986 = vsel %vm160, %v871, 0
    %v989 = vsel %vm160, %v872, 0
    %991 = vmatpush.msra.mxu0 0.0
    %992 = vmatpush.msra.mxu0 0.0
    %993 = vmatpush.msra.mxu0 0.0
    %994 = vmatpush.msra.mxu0 0.0
    %995 = vmatpush.msra.mxu0 0.0
    %996 = vmatpush.msra.mxu0 0.0
    %997 = vmatpush.msra.mxu0 0.0
    %998 = vmatpush.msra.mxu0 0.0
    %999 = vmatpush.msra.mxu0 0.0
    %1000 = vmatpush.msra.mxu0 0.0
    %1001 = vmatpush.msra.mxu0 0.0
    %1002 = vmatpush.msra.mxu0 0.0
    %1003 = vmatpush.msra.mxu0 %v974
    %1004 = vmatpush.msra.mxu0 %v973
    %1005 = vmatpush.msra.mxu0 %v972
    %1006 = vmatpush.msra.mxu0 %v971
    %1007 = vmatmul.f32.gmra.mxu0 %v980
    %v1008 = vpop.f32.mrf.mxu0
    %v1009 = vadd.f32 %v977, %v1008
    %1010 = vmatmul.f32.gmra.mxu0 %v983
    %v1011 = vpop.f32.mrf.mxu0
    %v1012 = vadd.f32 %v977, %v1011
    %1013 = vmatmul.f32.gmra.mxu0 %v986
    %v1014 = vpop.f32.mrf.mxu0
    %v1015 = vadd.f32 %v977, %v1014
    %1016 = vmatmul.f32.gmra.mxu0 %v989
    %v1017 = vpop.f32.mrf.mxu0
    %v1018 = vadd.f32 %v977, %v1017
    %1019 = vdwg.mxu0
    %v1020 = vsel %vm262, %v909, 0.0
    %v1021 = vsel %vm262, %v1009, 0.0
    %v1022 = vsel %vm262, %v1012, 0.0
    %v1024 = vsel %vm160, %v1020, 0
    %v1027 = vsel %vm160, %v960, 0
    %v1030 = vsel %vm160, %v963, 0
    %1032 = vmatpush.xpose.msra.mxu0 0.0
    %1033 = vmatpush.xpose.msra.mxu0 0.0
    %1034 = vmatpush.xpose.msra.mxu0 0.0
    %1035 = vmatpush.xpose.msra.mxu0 0.0
    %1036 = vmatpush.xpose.msra.mxu0 0.0
    %1037 = vmatpush.xpose.msra.mxu0 0.0
    %1038 = vmatpush.xpose.msra.mxu0 0.0
    %1039 = vmatpush.xpose.msra.mxu0 0.0
    %1040 = vmatpush.xpose.msra.mxu0 0.0
    %1041 = vmatpush.xpose.msra.mxu0 0.0
    %1042 = vmatpush.xpose.msra.mxu0 0.0
    %1043 = vmatpush.xpose.msra.mxu0 0.0
    %1044 = vmatpush.xpose.msra.mxu0 0.0
    %1045 = vmatpush.xpose.msra.mxu0 0.0
    %1046 = vmatpush.xpose.msra.mxu0 %v1030
    %1047 = vmatpush.xpose.msra.mxu0 %v1027
    %1048 = vmatmul.f32.gmra.mxu0 %v1024
    %v1049 = vpop.f32.mrf.mxu0
    %v1050 = vadd.f32 0.0, %v1049
    %1051 = vdwg.mxu0
    %v1052 = vmul.f32 %v1050, 0.35355338
    %vm1053 = vcmask 130048
    %v1054 = vsel %vm1053, %v1052, -inf
    %1055 = vmax.xlane.f32.xlu0 %v1054
    %v1056 = vpop.xlane.xlu0 %1055
    %v1057 = vsub.f32 %v1052, %v1056
    %v1058 = vmul.f32 %v1057, 1.442695
    %v1059 = vpow.pop %v1058
    %v1060 = vsel %vm1053, %v1059, 0.0
    %1061 = vadd.xlane.f32.xlu0 %v1060
    %v1062 = vpop.xlane.xlu0 %1061
    %v1063 = vrcp.pop %v1062
    %v1064 = vmul.f32 %v1059, %v1063
    %v1065 = vsel %vm265, %v909, 0.0
    %v1066 = vsel %vm265, %v1009, 0.0
    %v1067 = vsel %vm265, %v1012, 0.0
    %v1069 = vsel %vm160, %v1065, 0
    %1071 = vmatpush.xpose.msra.mxu0 0.0
    %1072 = vmatpush.xpose.msra.mxu0 0.0
    %1073 = vmatpush.xpose.msra.mxu0 0.0
    %1074 = vmatpush.xpose.msra.mxu0 0.0
    %1075 = vmatpush.xpose.msra.mxu0 0.0
    %1076 = vmatpush.xpose.msra.mxu0 0.0
    %1077 = vmatpush.xpose.msra.mxu0 0.0
    %1078 = vmatpush.xpose.msra.mxu0 0.0
    %1079 = vmatpush.xpose.msra.mxu0 0.0
    %1080 = vmatpush.xpose.msra.mxu0 0.0
    %1081 = vmatpush.xpose.msra.mxu0 0.0
    %1082 = vmatpush.xpose.msra.mxu0 0.0
    %1083 = vmatpush.xpose.msra.mxu0 0.0
    %1084 = vmatpush.xpose.msra.mxu0 0.0
    %1085 = vmatpush.xpose.msra.mxu0 %v1030
    %1086 = vmatpush.xpose.msra.mxu0 %v1027
    %1087 = vmatmul.f32.gmra.mxu0 %v1069
    %v1088 = vpop.f32.mrf.mxu0
    %v1089 = vadd.f32 0.0, %v1088
    %1090 = vdwg.mxu0
    %v1091 = vmul.f32 %v1089, 0.35355338
    %v1092 = vsel %vm1053, %v1091, -inf
    %1093 = vmax.xlane.f32.xlu0 %v1092
    %v1094 = vpop.xlane.xlu0 %1093
    %v1095 = vsub.f32 %v1091, %v1094
    %v1096 = vmul.f32 %v1095, 1.442695
    %v1097 = vpow.pop %v1096
    %v1098 = vsel %vm1053, %v1097, 0.0
    %1099 = vadd.xlane.f32.xlu0 %v1098
    %v1100 = vpop.xlane.xlu0 %1099
    %v1101 = vrcp.pop %v1100
    %v1102 = vmul.f32 %v1097, %v1101
    %v1104 = vsel %vm1053, %v1102, 0
    %1106 = vmatpush.msra.mxu0 0.0
    %1107 = vmatpush.msra.mxu0 0.0
    %1108 = vmatpush.msra.mxu0 0.0
    %1109 = vmatpush.msra.mxu0 0.0
    %1110 = vmatpush.msra.mxu0 0.0
    %1111 = vmatpush.msra.mxu0 0.0
    %1112 = vmatpush.msra.mxu0 0.0
    %1113 = vmatpush.msra.mxu0 0.0
    %1114 = vmatpush.msra.mxu0 0.0
    %1115 = vmatpush.msra.mxu0 0.0
    %1116 = vmatpush.msra.mxu0 0.0
    %1117 = vmatpush.msra.mxu0 0.0
    %1118 = vmatpush.msra.mxu0 0.0
    %1119 = vmatpush.msra.mxu0 0.0
    %1120 = vmatpush.msra.mxu0 %v1067
    %1121 = vmatpush.msra.mxu0 %v1066
    %1122 = vmatmul.f32.gmra.mxu0 %v1104
    %v1123 = vpop.f32.mrf.mxu0
    %v1124 = vadd.f32 0.0, %v1123
    %1125 = vdwg.mxu0
    %v1127 = vsel %vm1053, %v1064, 0
    %1129 = vmatpush.msra.mxu0 0.0
    %1130 = vmatpush.msra.mxu0 0.0
    %1131 = vmatpush.msra.mxu0 0.0
    %1132 = vmatpush.msra.mxu0 0.0
    %1133 = vmatpush.msra.mxu0 0.0
    %1134 = vmatpush.msra.mxu0 0.0
    %1135 = vmatpush.msra.mxu0 0.0
    %1136 = vmatpush.msra.mxu0 0.0
    %1137 = vmatpush.msra.mxu0 0.0
    %1138 = vmatpush.msra.mxu0 0.0
    %1139 = vmatpush.msra.mxu0 0.0
    %1140 = vmatpush.msra.mxu0 0.0
    %1141 = vmatpush.msra.mxu0 0.0
    %1142 = vmatpush.msra.mxu0 0.0
    %1143 = vmatpush.msra.mxu0 %v1022
    %1144 = vmatpush.msra.mxu0 %v1021
    %1145 = vmatmul.f32.gmra.mxu0 %v1127
    %v1146 = vpop.f32.mrf.mxu0
    %v1147 = vadd.f32 %v1124, %v1146
    %1148 = vdwg.mxu0
    %v1149 = vsel %vm268, %v909, 0.0
    %v1150 = vsel %vm268, %v1009, 0.0
    %v1151 = vsel %vm268, %v1012, 0.0
    %v1153 = vsel %vm160, %v1149, 0
    %1155 = vmatpush.xpose.msra.mxu0 0.0
    %1156 = vmatpush.xpose.msra.mxu0 0.0
    %1157 = vmatpush.xpose.msra.mxu0 0.0
    %1158 = vmatpush.xpose.msra.mxu0 0.0
    %1159 = vmatpush.xpose.msra.mxu0 0.0
    %1160 = vmatpush.xpose.msra.mxu0 0.0
    %1161 = vmatpush.xpose.msra.mxu0 0.0
    %1162 = vmatpush.xpose.msra.mxu0 0.0
    %1163 = vmatpush.xpose.msra.mxu0 0.0
    %1164 = vmatpush.xpose.msra.mxu0 0.0
    %1165 = vmatpush.xpose.msra.mxu0 0.0
    %1166 = vmatpush.xpose.msra.mxu0 0.0
    %1167 = vmatpush.xpose.msra.mxu0 0.0
    %1168 = vmatpush.xpose.msra.mxu0 0.0
    %1169 = vmatpush.xpose.msra.mxu0 %v1030
    %1170 = vmatpush.xpose.msra.mxu0 %v1027
    %1171 = vmatmul.f32.gmra.mxu0 %v1153
    %v1172 = vpop.f32.mrf.mxu0
    %v1173 = vadd.f32 0.0, %v1172
    %1174 = vdwg.mxu0
    %v1175 = vmul.f32 %v1173, 0.35355338
    %v1176 = vsel %vm1053, %v1175, -inf
    %1177 = vmax.xlane.f32.xlu0 %v1176
    %v1178 = vpop.xlane.xlu0 %1177
    %v1179 = vsub.f32 %v1175, %v1178
    %v1180 = vmul.f32 %v1179, 1.442695
    %v1181 = vpow.pop %v1180
    %v1182 = vsel %vm1053, %v1181, 0.0
    %1183 = vadd.xlane.f32.xlu0 %v1182
    %v1184 = vpop.xlane.xlu0 %1183
    %v1185 = vrcp.pop %v1184
    %v1186 = vmul.f32 %v1181, %v1185
    %v1188 = vsel %vm1053, %v1186, 0
    %1190 = vmatpush.msra.mxu0 0.0
    %1191 = vmatpush.msra.mxu0 0.0
    %1192 = vmatpush.msra.mxu0 0.0
    %1193 = vmatpush.msra.mxu0 0.0
    %1194 = vmatpush.msra.mxu0 0.0
    %1195 = vmatpush.msra.mxu0 0.0
    %1196 = vmatpush.msra.mxu0 0.0
    %1197 = vmatpush.msra.mxu0 0.0
    %1198 = vmatpush.msra.mxu0 0.0
    %1199 = vmatpush.msra.mxu0 0.0
    %1200 = vmatpush.msra.mxu0 0.0
    %1201 = vmatpush.msra.mxu0 0.0
    %1202 = vmatpush.msra.mxu0 0.0
    %1203 = vmatpush.msra.mxu0 0.0
    %1204 = vmatpush.msra.mxu0 %v1151
    %1205 = vmatpush.msra.mxu0 %v1150
    %1206 = vmatmul.f32.gmra.mxu0 %v1188
    %v1207 = vpop.f32.mrf.mxu0
    %v1208 = vadd.f32 0.0, %v1207
    %1209 = vdwg.mxu0
    %v1210 = vadd.f32 %v1147, %v1208
    %v1211 = vsel %vm271, %v909, 0.0
    %v1212 = vsel %vm271, %v1009, 0.0
    %v1213 = vsel %vm271, %v1012, 0.0
    %v1215 = vsel %vm160, %v1211, 0
    %1217 = vmatpush.xpose.msra.mxu0 0.0
    %1218 = vmatpush.xpose.msra.mxu0 0.0
    %1219 = vmatpush.xpose.msra.mxu0 0.0
    %1220 = vmatpush.xpose.msra.mxu0 0.0
    %1221 = vmatpush.xpose.msra.mxu0 0.0
    %1222 = vmatpush.xpose.msra.mxu0 0.0
    %1223 = vmatpush.xpose.msra.mxu0 0.0
    %1224 = vmatpush.xpose.msra.mxu0 0.0
    %1225 = vmatpush.xpose.msra.mxu0 0.0
    %1226 = vmatpush.xpose.msra.mxu0 0.0
    %1227 = vmatpush.xpose.msra.mxu0 0.0
    %1228 = vmatpush.xpose.msra.mxu0 0.0
    %1229 = vmatpush.xpose.msra.mxu0 0.0
    %1230 = vmatpush.xpose.msra.mxu0 0.0
    %1231 = vmatpush.xpose.msra.mxu0 %v1030
    %1232 = vmatpush.xpose.msra.mxu0 %v1027
    %1233 = vmatmul.f32.gmra.mxu0 %v1215
    %v1234 = vpop.f32.mrf.mxu0
    %v1235 = vadd.f32 0.0, %v1234
    %1236 = vdwg.mxu0
    %v1237 = vmul.f32 %v1235, 0.35355338
    %v1238 = vsel %vm1053, %v1237, -inf
    %1239 = vmax.xlane.f32.xlu0 %v1238
    %v1240 = vpop.xlane.xlu0 %1239
    %v1241 = vsub.f32 %v1237, %v1240
    %v1242 = vmul.f32 %v1241, 1.442695
    %v1243 = vpow.pop %v1242
    %v1244 = vsel %vm1053, %v1243, 0.0
    %1245 = vadd.xlane.f32.xlu0 %v1244
    %v1246 = vpop.xlane.xlu0 %1245
    %v1247 = vrcp.pop %v1246
    %v1248 = vmul.f32 %v1243, %v1247
    %v1250 = vsel %vm1053, %v1248, 0
    %1252 = vmatpush.msra.mxu0 0.0
    %1253 = vmatpush.msra.mxu0 0.0
    %1254 = vmatpush.msra.mxu0 0.0
    %1255 = vmatpush.msra.mxu0 0.0
    %1256 = vmatpush.msra.mxu0 0.0
    %1257 = vmatpush.msra.mxu0 0.0
    %1258 = vmatpush.msra.mxu0 0.0
    %1259 = vmatpush.msra.mxu0 0.0
    %1260 = vmatpush.msra.mxu0 0.0
    %1261 = vmatpush.msra.mxu0 0.0
    %1262 = vmatpush.msra.mxu0 0.0
    %1263 = vmatpush.msra.mxu0 0.0
    %1264 = vmatpush.msra.mxu0 0.0
    %1265 = vmatpush.msra.mxu0 0.0
    %1266 = vmatpush.msra.mxu0 %v1213
    %1267 = vmatpush.msra.mxu0 %v1212
    %1268 = vmatmul.f32.gmra.mxu0 %v1250
    %v1269 = vpop.f32.mrf.mxu0
    %v1270 = vadd.f32 0.0, %v1269
    %1271 = vdwg.mxu0
    %v1272 = vadd.f32 %v1210, %v1270
    %1273 = vst.msk [vmem:[#allocation2] sm:$0xff] %vm160, %v1272
    %v1274 = vsel %vm262, %v912, 0.0
    %v1275 = vsel %vm262, %v1015, 0.0
    %v1276 = vsel %vm262, %v1018, 0.0
    %v1278 = vsel %vm160, %v1274, 0
    %v1281 = vsel %vm160, %v966, 0
    %v1284 = vsel %vm160, %v969, 0
    %1286 = vmatpush.xpose.msra.mxu0 0.0
    %1287 = vmatpush.xpose.msra.mxu0 0.0
    %1288 = vmatpush.xpose.msra.mxu0 0.0
    %1289 = vmatpush.xpose.msra.mxu0 0.0
    %1290 = vmatpush.xpose.msra.mxu0 0.0
    %1291 = vmatpush.xpose.msra.mxu0 0.0
    %1292 = vmatpush.xpose.msra.mxu0 0.0
    %1293 = vmatpush.xpose.msra.mxu0 0.0
    %1294 = vmatpush.xpose.msra.mxu0 0.0
    %1295 = vmatpush.xpose.msra.mxu0 0.0
    %1296 = vmatpush.xpose.msra.mxu0 0.0
    %1297 = vmatpush.xpose.msra.mxu0 0.0
    %1298 = vmatpush.xpose.msra.mxu0 0.0
    %1299 = vmatpush.xpose.msra.mxu0 0.0
    %1300 = vmatpush.xpose.msra.mxu0 %v1284
    %1301 = vmatpush.xpose.msra.mxu0 %v1281
    %1302 = vmatmul.f32.gmra.mxu0 %v1278
    %v1303 = vpop.f32.mrf.mxu0
    %v1304 = vadd.f32 0.0, %v1303
    %1305 = vdwg.mxu0
    %v1306 = vmul.f32 %v1304, 0.35355338
    %v1307 = vsel %vm1053, %v1306, -inf
    %1308 = vmax.xlane.f32.xlu0 %v1307
    %v1309 = vpop.xlane.xlu0 %1308
    %v1310 = vsub.f32 %v1306, %v1309
    %v1311 = vmul.f32 %v1310, 1.442695
    %v1312 = vpow.pop %v1311
    %v1313 = vsel %vm1053, %v1312, 0.0
    %1314 = vadd.xlane.f32.xlu0 %v1313
    %v1315 = vpop.xlane.xlu0 %1314
    %v1316 = vrcp.pop %v1315
    %v1317 = vmul.f32 %v1312, %v1316
    %v1318 = vsel %vm265, %v912, 0.0
    %v1319 = vsel %vm265, %v1015, 0.0
    %v1320 = vsel %vm265, %v1018, 0.0
    %v1322 = vsel %vm160, %v1318, 0
    %1324 = vmatpush.xpose.msra.mxu0 0.0
    %1325 = vmatpush.xpose.msra.mxu0 0.0
    %1326 = vmatpush.xpose.msra.mxu0 0.0
    %1327 = vmatpush.xpose.msra.mxu0 0.0
    %1328 = vmatpush.xpose.msra.mxu0 0.0
    %1329 = vmatpush.xpose.msra.mxu0 0.0
    %1330 = vmatpush.xpose.msra.mxu0 0.0
    %1331 = vmatpush.xpose.msra.mxu0 0.0
    %1332 = vmatpush.xpose.msra.mxu0 0.0
    %1333 = vmatpush.xpose.msra.mxu0 0.0
    %1334 = vmatpush.xpose.msra.mxu0 0.0
    %1335 = vmatpush.xpose.msra.mxu0 0.0
    %1336 = vmatpush.xpose.msra.mxu0 0.0
    %1337 = vmatpush.xpose.msra.mxu0 0.0
    %1338 = vmatpush.xpose.msra.mxu0 %v1284
    %1339 = vmatpush.xpose.msra.mxu0 %v1281
    %1340 = vmatmul.f32.gmra.mxu0 %v1322
    %v1341 = vpop.f32.mrf.mxu0
    %v1342 = vadd.f32 0.0, %v1341
    %1343 = vdwg.mxu0
    %v1344 = vmul.f32 %v1342, 0.35355338
    %v1345 = vsel %vm1053, %v1344, -inf
    %1346 = vmax.xlane.f32.xlu0 %v1345
    %v1347 = vpop.xlane.xlu0 %1346
    %v1348 = vsub.f32 %v1344, %v1347
    %v1349 = vmul.f32 %v1348, 1.442695
    %v1350 = vpow.pop %v1349
    %v1351 = vsel %vm1053, %v1350, 0.0
    %1352 = vadd.xlane.f32.xlu0 %v1351
    %v1353 = vpop.xlane.xlu0 %1352
    %v1354 = vrcp.pop %v1353
    %v1355 = vmul.f32 %v1350, %v1354
    %v1357 = vsel %vm1053, %v1355, 0
    %1359 = vmatpush.msra.mxu0 0.0
    %1360 = vmatpush.msra.mxu0 0.0
    %1361 = vmatpush.msra.mxu0 0.0
    %1362 = vmatpush.msra.mxu0 0.0
    %1363 = vmatpush.msra.mxu0 0.0
    %1364 = vmatpush.msra.mxu0 0.0
    %1365 = vmatpush.msra.mxu0 0.0
    %1366 = vmatpush.msra.mxu0 0.0
    %1367 = vmatpush.msra.mxu0 0.0
    %1368 = vmatpush.msra.mxu0 0.0
    %1369 = vmatpush.msra.mxu0 0.0
    %1370 = vmatpush.msra.mxu0 0.0
    %1371 = vmatpush.msra.mxu0 0.0
    %1372 = vmatpush.msra.mxu0 0.0
    %1373 = vmatpush.msra.mxu0 %v1320
    %1374 = vmatpush.msra.mxu0 %v1319
    %1375 = vmatmul.f32.gmra.mxu0 %v1357
    %v1376 = vpop.f32.mrf.mxu0
    %v1377 = vadd.f32 0.0, %v1376
    %1378 = vdwg.mxu0
    %v1380 = vsel %vm1053, %v1317, 0
    %1382 = vmatpush.msra.mxu0 0.0
    %1383 = vmatpush.msra.mxu0 0.0
    %1384 = vmatpush.msra.mxu0 0.0
    %1385 = vmatpush.msra.mxu0 0.0
    %1386 = vmatpush.msra.mxu0 0.0
    %1387 = vmatpush.msra.mxu0 0.0
    %1388 = vmatpush.msra.mxu0 0.0
    %1389 = vmatpush.msra.mxu0 0.0
    %1390 = vmatpush.msra.mxu0 0.0
    %1391 = vmatpush.msra.mxu0 0.0
    %1392 = vmatpush.msra.mxu0 0.0
    %1393 = vmatpush.msra.mxu0 0.0
    %1394 = vmatpush.msra.mxu0 0.0
    %1395 = vmatpush.msra.mxu0 0.0
    %1396 = vmatpush.msra.mxu0 %v1276
    %1397 = vmatpush.msra.mxu0 %v1275
    %1398 = vmatmul.f32.gmra.mxu0 %v1380
    %v1399 = vpop.f32.mrf.mxu0
    %v1400 = vadd.f32 %v1377, %v1399
    %1401 = vdwg.mxu0
    %v1402 = vsel %vm268, %v912, 0.0
    %v1403 = vsel %vm268, %v1015, 0.0
    %v1404 = vsel %vm268, %v1018, 0.0
    %v1406 = vsel %vm160, %v1402, 0
    %1408 = vmatpush.xpose.msra.mxu0 0.0
    %1409 = vmatpush.xpose.msra.mxu0 0.0
    %1410 = vmatpush.xpose.msra.mxu0 0.0
    %1411 = vmatpush.xpose.msra.mxu0 0.0
    %1412 = vmatpush.xpose.msra.mxu0 0.0
    %1413 = vmatpush.xpose.msra.mxu0 0.0
    %1414 = vmatpush.xpose.msra.mxu0 0.0
    %1415 = vmatpush.xpose.msra.mxu0 0.0
    %1416 = vmatpush.xpose.msra.mxu0 0.0
    %1417 = vmatpush.xpose.msra.mxu0 0.0
    %1418 = vmatpush.xpose.msra.mxu0 0.0
    %1419 = vmatpush.xpose.msra.mxu0 0.0
    %1420 = vmatpush.xpose.msra.mxu0 0.0
    %1421 = vmatpush.xpose.msra.mxu0 0.0
    %1422 = vmatpush.xpose.msra.mxu0 %v1284
    %1423 = vmatpush.xpose.msra.mxu0 %v1281
    %1424 = vmatmul.f32.gmra.mxu0 %v1406
    %v1425 = vpop.f32.mrf.mxu0
    %v1426 = vadd.f32 0.0, %v1425
    %1427 = vdwg.mxu0
    %v1428 = vmul.f32 %v1426, 0.35355338
    %v1429 = vsel %vm1053, %v1428, -inf
    %1430 = vmax.xlane.f32.xlu0 %v1429
    %v1431 = vpop.xlane.xlu0 %1430
    %v1432 = vsub.f32 %v1428, %v1431
    %v1433 = vmul.f32 %v1432, 1.442695
    %v1434 = vpow.pop %v1433
    %v1435 = vsel %vm1053, %v1434, 0.0
    %1436 = vadd.xlane.f32.xlu0 %v1435
    %v1437 = vpop.xlane.xlu0 %1436
    %v1438 = vrcp.pop %v1437
    %v1439 = vmul.f32 %v1434, %v1438
    %v1441 = vsel %vm1053, %v1439, 0
    %1443 = vmatpush.msra.mxu0 0.0
    %1444 = vmatpush.msra.mxu0 0.0
    %1445 = vmatpush.msra.mxu0 0.0
    %1446 = vmatpush.msra.mxu0 0.0
    %1447 = vmatpush.msra.mxu0 0.0
    %1448 = vmatpush.msra.mxu0 0.0
    %1449 = vmatpush.msra.mxu0 0.0
    %1450 = vmatpush.msra.mxu0 0.0
    %1451 = vmatpush.msra.mxu0 0.0
    %1452 = vmatpush.msra.mxu0 0.0
    %1453 = vmatpush.msra.mxu0 0.0
    %1454 = vmatpush.msra.mxu0 0.0
    %1455 = vmatpush.msra.mxu0 0.0
    %1456 = vmatpush.msra.mxu0 0.0
    %1457 = vmatpush.msra.mxu0 %v1404
    %1458 = vmatpush.msra.mxu0 %v1403
    %1459 = vmatmul.f32.gmra.mxu0 %v1441
    %v1460 = vpop.f32.mrf.mxu0
    %v1461 = vadd.f32 0.0, %v1460
    %1462 = vdwg.mxu0
    %v1463 = vadd.f32 %v1400, %v1461
    %v1464 = vsel %vm271, %v912, 0.0
    %v1465 = vsel %vm271, %v1015, 0.0
    %v1466 = vsel %vm271, %v1018, 0.0
    %v1468 = vsel %vm160, %v1464, 0
    %1470 = vmatpush.xpose.msra.mxu0 0.0
    %1471 = vmatpush.xpose.msra.mxu0 0.0
    %1472 = vmatpush.xpose.msra.mxu0 0.0
    %1473 = vmatpush.xpose.msra.mxu0 0.0
    %1474 = vmatpush.xpose.msra.mxu0 0.0
    %1475 = vmatpush.xpose.msra.mxu0 0.0
    %1476 = vmatpush.xpose.msra.mxu0 0.0
    %1477 = vmatpush.xpose.msra.mxu0 0.0
    %1478 = vmatpush.xpose.msra.mxu0 0.0
    %1479 = vmatpush.xpose.msra.mxu0 0.0
    %1480 = vmatpush.xpose.msra.mxu0 0.0
    %1481 = vmatpush.xpose.msra.mxu0 0.0
    %1482 = vmatpush.xpose.msra.mxu0 0.0
    %1483 = vmatpush.xpose.msra.mxu0 0.0
    %1484 = vmatpush.xpose.msra.mxu0 %v1284
    %1485 = vmatpush.xpose.msra.mxu0 %v1281
    %1486 = vmatmul.f32.gmra.mxu0 %v1468
    %v1487 = vpop.f32.mrf.mxu0
    %v1488 = vadd.f32 0.0, %v1487
    %1489 = vdwg.mxu0
    %v1490 = vmul.f32 %v1488, 0.35355338
    %v1491 = vsel %vm1053, %v1490, -inf
    %1492 = vmax.xlane.f32.xlu0 %v1491
    %v1493 = vpop.xlane.xlu0 %1492
    %v1494 = vsub.f32 %v1490, %v1493
    %v1495 = vmul.f32 %v1494, 1.442695
    %v1496 = vpow.pop %v1495
    %v1497 = vsel %vm1053, %v1496, 0.0
    %1498 = vadd.xlane.f32.xlu0 %v1497
    %v1499 = vpop.xlane.xlu0 %1498
    %v1500 = vrcp.pop %v1499
    %v1501 = vmul.f32 %v1496, %v1500
    %v1503 = vsel %vm1053, %v1501, 0
    %1505 = vmatpush.msra.mxu0 0.0
    %1506 = vmatpush.msra.mxu0 0.0
    %1507 = vmatpush.msra.mxu0 0.0
    %1508 = vmatpush.msra.mxu0 0.0
    %1509 = vmatpush.msra.mxu0 0.0
    %1510 = vmatpush.msra.mxu0 0.0
    %1511 = vmatpush.msra.mxu0 0.0
    %1512 = vmatpush.msra.mxu0 0.0
    %1513 = vmatpush.msra.mxu0 0.0
    %1514 = vmatpush.msra.mxu0 0.0
    %1515 = vmatpush.msra.mxu0 0.0
    %1516 = vmatpush.msra.mxu0 0.0
    %1517 = vmatpush.msra.mxu0 0.0
    %1518 = vmatpush.msra.mxu0 0.0
    %1519 = vmatpush.msra.mxu0 %v1466
    %1520 = vmatpush.msra.mxu0 %v1465
    %1521 = vmatmul.f32.gmra.mxu0 %v1503
    %v1522 = vpop.f32.mrf.mxu0
    %v1523 = vadd.f32 0.0, %v1522
    %1524 = vdwg.mxu0
    %v1525 = vadd.f32 %v1463, %v1523
    %1526 = vst.msk [vmem:[#allocation2 + $0x8] sm:$0xff] %vm160, %v1525
    %v1527 = vld [vmem:[#allocation2] sm:$0xff]
    %v1528 = vld [vmem:[#allocation2 + $0x8] sm:$0xff]
    %v1529 = vld [vmem:[%s39] sm:$0xff]
    %v1530 = vld [vmem:[%s39 + $0x8] sm:$0xff]
    %v1531 = vld [vmem:[%s39 + $0x10] sm:$0xff]
    %v1532 = vld [vmem:[%s39 + $0x18] sm:$0xff]
    %v1533 = vld [vmem:[%s41] sm:$0x1]
    %v1535 = vperm.slane %v1533, 0
    %v1538 = vsel %vm160, %v1527, 0
    %v1541 = vsel %vm160, %v1528, 0
    %1543 = vmatpush.msra.mxu0 0.0
    %1544 = vmatpush.msra.mxu0 0.0
    %1545 = vmatpush.msra.mxu0 0.0
    %1546 = vmatpush.msra.mxu0 0.0
    %1547 = vmatpush.msra.mxu0 0.0
    %1548 = vmatpush.msra.mxu0 0.0
    %1549 = vmatpush.msra.mxu0 0.0
    %1550 = vmatpush.msra.mxu0 0.0
    %1551 = vmatpush.msra.mxu0 0.0
    %1552 = vmatpush.msra.mxu0 0.0
    %1553 = vmatpush.msra.mxu0 0.0
    %1554 = vmatpush.msra.mxu0 0.0
    %1555 = vmatpush.msra.mxu0 %v1532
    %1556 = vmatpush.msra.mxu0 %v1531
    %1557 = vmatpush.msra.mxu0 %v1530
    %1558 = vmatpush.msra.mxu0 %v1529
    %1559 = vmatmul.f32.gmra.mxu0 %v1538
    %v1560 = vpop.f32.mrf.mxu0
    %v1561 = vadd.f32 %v1535, %v1560
    %1562 = vmatmul.f32.gmra.mxu0 %v1541
    %v1563 = vpop.f32.mrf.mxu0
    %v1564 = vadd.f32 %v1535, %v1563
    %1565 = vdwg.mxu0
    %v1566 = vadd.f32 %v867, %v1561
    %v1567 = vadd.f32 %v868, %v1564
    %v1568 = vld [vmem:[%s47] sm:$0x1]
    %v1569 = vld [vmem:[%s49] sm:$0x1]
    %v1570 = vsel %vm160, %v1566, 0.0
    %1571 = vadd.xlane.f32.xlu0 %v1570
    %v1572 = vpop.xlane.xlu0 %1571
    %v1573 = vsel %vm160, %v1567, 0.0
    %1574 = vadd.xlane.f32.xlu0 %v1573
    %v1575 = vpop.xlane.xlu0 %1574
    %v1576 = vmul.f32 %v1572, %v820
    %v1577 = vmul.f32 %v1575, %v820
    %v1578 = vsub.f32 %v1566, %v1576
    %v1579 = vsub.f32 %v1567, %v1577
    %v1580 = vmul.f32 %v1578, %v1578
    %v1581 = vmul.f32 %v1579, %v1579
    %v1582 = vsel %vm160, %v1580, 0.0
    %1583 = vadd.xlane.f32.xlu0 %v1582
    %v1584 = vpop.xlane.xlu0 %1583
    %v1585 = vsel %vm160, %v1581, 0.0
    %1586 = vadd.xlane.f32.xlu0 %v1585
    %v1587 = vpop.xlane.xlu0 %1586
    %v1588 = vmul.f32 %v1584, %v820
    %v1589 = vmul.f32 %v1587, %v820
    %v1590 = vadd.f32 %v1588, 1e-05
    %v1591 = vadd.f32 %v1589, 1e-05
    %v1592 = vrsqrt.pop %v1590
    %v1593 = vmul.f32 %v1592, %v1590
    %v1594 = vmul.f32 %v1593, %v1592
    %v1595 = vmul.f32 0.5, %v1594
    %v1596 = vsub.f32 1.5, %v1595
    %v1597 = vmul.f32 %v1592, %v1596
    %vm1598 = vweird.f32 %v1590
    %vm1599 = vweird.f32 %v1592
    %vm1600 = vmor %vm1598, %vm1599
    %v1601 = vsel %vm1600, %v1592, %v1597
    %v1602 = vrsqrt.pop %v1591
    %v1603 = vmul.f32 %v1602, %v1591
    %v1604 = vmul.f32 %v1603, %v1602
    %v1605 = vmul.f32 0.5, %v1604
    %v1606 = vsub.f32 1.5, %v1605
    %v1607 = vmul.f32 %v1602, %v1606
    %vm1608 = vweird.f32 %v1591
    %vm1609 = vweird.f32 %v1602
    %vm1610 = vmor %vm1608, %vm1609
    %v1611 = vsel %vm1610, %v1602, %v1607
    %v1612 = vmul.f32 %v1578, %v1601
    %v1613 = vmul.f32 %v1579, %v1611
    %v1615 = vperm.slane %v1568, 0
    %v1617 = vmul.f32 %v1612, %v1615
    %v1618 = vmul.f32 %v1613, %v1615
    %v1620 = vperm.slane %v1569, 0
    %v1622 = vadd.f32 %v1617, %v1620
    %v1623 = vadd.f32 %v1618, %v1620
    %v1624 = vld [vmem:[#allocation3] sm:$0xff]
    %v1625 = vld [vmem:[#allocation3 + $0x8] sm:$0xff]
    %v1626 = vld [vmem:[#allocation3 + $0x10] sm:$0xff]
    %v1627 = vld [vmem:[#allocation3 + $0x18] sm:$0xff]
    %v1628 = vld [vmem:[%s57] sm:$0x1]
    %v1630 = vperm.slane %v1628, 0
    %v1633 = vsel %vm160, %v1622, 0
    %v1636 = vsel %vm160, %v1623, 0
    %1638 = vmatpush.msra.mxu0 0.0
    %1639 = vmatpush.msra.mxu0 0.0
    %1640 = vmatpush.msra.mxu0 0.0
    %1641 = vmatpush.msra.mxu0 0.0
    %1642 = vmatpush.msra.mxu0 0.0
    %1643 = vmatpush.msra.mxu0 0.0
    %1644 = vmatpush.msra.mxu0 0.0
    %1645 = vmatpush.msra.mxu0 0.0
    %1646 = vmatpush.msra.mxu0 0.0
    %1647 = vmatpush.msra.mxu0 0.0
    %1648 = vmatpush.msra.mxu0 0.0
    %1649 = vmatpush.msra.mxu0 0.0
    %1650 = vmatpush.msra.mxu0 %v1627
    %1651 = vmatpush.msra.mxu0 %v1626
    %1652 = vmatpush.msra.mxu0 %v1625
    %1653 = vmatpush.msra.mxu0 %v1624
    %1654 = vmatmul.f32.gmra.mxu0 %v1633
    %v1655 = vpop.f32.mrf.mxu0
    %v1656 = vadd.f32 %v1630, %v1655
    %1657 = vmatmul.f32.gmra.mxu0 %v1636
    %v1658 = vpop.f32.mrf.mxu0
    %v1659 = vadd.f32 %v1630, %v1658
    %1660 = vdwg.mxu0
    %v1661 = vmax.f32 %v1656, 0.0
    %v1662 = vmax.f32 %v1659, 0.0
    %v1663 = vld [vmem:[%s59] sm:$0xff]
    %v1664 = vld [vmem:[%s59 + $0x8] sm:$0xff]
    %v1665 = vld [vmem:[%s59 + $0x10] sm:$0xff]
    %v1666 = vld [vmem:[%s59 + $0x18] sm:$0xff]
    %v1667 = vld [vmem:[%s59 + $0x20] sm:$0xff]
    %v1668 = vld [vmem:[%s59 + $0x28] sm:$0xff]
    %v1669 = vld [vmem:[%s59 + $0x30] sm:$0xff]
    %v1670 = vld [vmem:[%s59 + $0x38] sm:$0xff]
    %v1671 = vld [vmem:[%s61] sm:$0x1]
    %v1673 = vperm.slane %v1671, 0
    %vm1675 = vcmask 523264
    %v1677 = vsel %vm1675, %v1661, 0
    %v1680 = vsel %vm1675, %v1662, 0
    %1682 = vmatpush.msra.mxu0 0.0
    %1683 = vmatpush.msra.mxu0 0.0
    %1684 = vmatpush.msra.mxu0 0.0
    %1685 = vmatpush.msra.mxu0 0.0
    %1686 = vmatpush.msra.mxu0 0.0
    %1687 = vmatpush.msra.mxu0 0.0
    %1688 = vmatpush.msra.mxu0 0.0
    %1689 = vmatpush.msra.mxu0 0.0
    %1690 = vmatpush.msra.mxu0 %v1670
    %1691 = vmatpush.msra.mxu0 %v1669
    %1692 = vmatpush.msra.mxu0 %v1668
    %1693 = vmatpush.msra.mxu0 %v1667
    %1694 = vmatpush.msra.mxu0 %v1666
    %1695 = vmatpush.msra.mxu0 %v1665
    %1696 = vmatpush.msra.mxu0 %v1664
    %1697 = vmatpush.msra.mxu0 %v1663
    %1698 = vmatmul.f32.gmra.mxu0 %v1677
    %v1699 = vpop.f32.mrf.mxu0
    %v1700 = vadd.f32 %v1673, %v1699
    %1701 = vmatmul.f32.gmra.mxu0 %v1680
    %v1702 = vpop.f32.mrf.mxu0
    %v1703 = vadd.f32 %v1673, %v1702
    %1704 = vdwg.mxu0
    %v1705 = vadd.f32 %v1622, %v1700
    %v1706 = vadd.f32 %v1623, %v1703
    %v1707 = vld [vmem:[%s51] sm:$0x1]
    %v1708 = vld [vmem:[%s53] sm:$0x1]
    %v1709 = vsel %vm160, %v1705, 0.0
    %1710 = vadd.xlane.f32.xlu0 %v1709
    %v1711 = vpop.xlane.xlu0 %1710
    %v1712 = vsel %vm160, %v1706, 0.0
    %1713 = vadd.xlane.f32.xlu0 %v1712
    %v1714 = vpop.xlane.xlu0 %1713
    %v1715 = vmul.f32 %v1711, %v820
    %v1716 = vmul.f32 %v1714, %v820
    %v1717 = vsub.f32 %v1705, %v1715
    %v1718 = vsub.f32 %v1706, %v1716
    %v1719 = vmul.f32 %v1717, %v1717
    %v1720 = vmul.f32 %v1718, %v1718
    %v1721 = vsel %vm160, %v1719, 0.0
    %1722 = vadd.xlane.f32.xlu0 %v1721
    %v1723 = vpop.xlane.xlu0 %1722
    %v1724 = vsel %vm160, %v1720, 0.0
    %1725 = vadd.xlane.f32.xlu0 %v1724
    %v1726 = vpop.xlane.xlu0 %1725
    %v1727 = vmul.f32 %v1723, %v820
    %v1728 = vmul.f32 %v1726, %v820
    %v1729 = vadd.f32 %v1727, 1e-05
    %v1730 = vadd.f32 %v1728, 1e-05
    %v1731 = vrsqrt.pop %v1729
    %v1732 = vmul.f32 %v1731, %v1729
    %v1733 = vmul.f32 %v1732, %v1731
    %v1734 = vmul.f32 0.5, %v1733
    %v1735 = vsub.f32 1.5, %v1734
    %v1736 = vmul.f32 %v1731, %v1735
    %vm1737 = vweird.f32 %v1729
    %vm1738 = vweird.f32 %v1731
    %vm1739 = vmor %vm1737, %vm1738
    %v1740 = vsel %vm1739, %v1731, %v1736
    %v1741 = vrsqrt.pop %v1730
    %v1742 = vmul.f32 %v1741, %v1730
    %v1743 = vmul.f32 %v1742, %v1741
    %v1744 = vmul.f32 0.5, %v1743
    %v1745 = vsub.f32 1.5, %v1744
    %v1746 = vmul.f32 %v1741, %v1745
    %vm1747 = vweird.f32 %v1730
    %vm1748 = vweird.f32 %v1741
    %vm1749 = vmor %vm1747, %vm1748
    %v1750 = vsel %vm1749, %v1741, %v1746
    %v1751 = vmul.f32 %v1717, %v1740
    %v1752 = vmul.f32 %v1718, %v1750
    %v1754 = vperm.slane %v1707, 0
    %v1756 = vmul.f32 %v1751, %v1754
    %v1757 = vmul.f32 %v1752, %v1754
    %v1759 = vperm.slane %v1708, 0
    %v1761 = vadd.f32 %v1756, %v1759
    %v1762 = vadd.f32 %v1757, %v1759
    %1763 = vst.msk [vmem:[%s63] sm:$0xff] %vm160, %v1761
    %1764 = vst.msk [vmem:[%s63 + $0x8] sm:$0xff] %vm160, %v1762
    // Predicated region
    $region130: #{decoder_layer_forward.1} parent=1 // pred_check
      _
    $region131: #{decoder_layer_forward.1} parent=1 // pred_check_branch
      %1766 = sbr.rel (0) target = $region133
    $region132: #{decoder_layer_forward.1} parent=1 // pred_region
      _
    $region133: #{decoder_layer_forward.1} parent=1 // pred_fallthru
      _
    // Predicated region
    $region134: #{decoder_layer_forward.1} parent=1 // pred_check
      _
    $region135: #{decoder_layer_forward.1} parent=1 // pred_check_branch
      %1768 = sbr.rel (0) target = $region137
    $region136: #{decoder_layer_forward.1} parent=1 // pred_region
      _
    $region137: #{decoder_layer_forward.1} parent=1 // pred_fallthru
      _
    %1769 = vsyncpa [#allocation4], 1

</llo_original>
